<compile_context>
chip_gen: v6e
topology: v6e:2x2x1
jax: 0.10.0
libtpu: 0.0.40
codegen_flags: <defaults>
</compile_context>

<pallas_src>
import functools

import jax
import jax.numpy as jnp
from jax.experimental import pallas as pl
from jax.experimental.pallas import tpu as pltpu


def _round_up(x, m):
    return (x + m - 1) // m * m


def _fused_conv_kernel(x_ref, w1_ref, b1_ref, w2_ref, b2_ref, o_ref, rbuf,
                       *, ws, hp, wp):
    """Fused conv1(1x1,pad=1)+relu -> conv2(3x3,pad=1) -> mul with relu(v1).

    Layout: channels in sublanes, flattened padded pixels (row stride `ws`,
    a power of two) in lanes.
      x_ref : (1, Cin, EXT)  zero-padded input, flat row-major with stride ws
      w1_ref: (Cin, C1, 1)   conv1 weight, one (C1,1) column per input channel
      b1_ref: (C1, 1)        conv1 bias
      w2_ref: (9*C2, C1)     conv2 weight, tap t=(dy*3+dx) occupies rows
                             [t*C2, (t+1)*C2)
      b2_ref: (C2, 1)        conv2 bias
      o_ref : (1, C2, OP)    v6 on the flat padded grid (non-valid lanes = 0)
      rbuf  : VMEM (C1, EXT) scratch holding relu(v1) with conv2 zero padding
    """
    cin = x_ref.shape[1]
    c2, op = o_ref.shape[1], o_ref.shape[2]
    ext = rbuf.shape[1]
    log2ws = ws.bit_length() - 1

    # ---- conv1 (1x1, padding=1) + ReLU: Cin broadcast FMAs on the VPU. ----
    xv = x_ref[0]                                    # (Cin, EXT)
    acc = b1_ref[...]                                # (C1, 1), broadcasts
    for k in range(cin):                             # static unroll (Cin == 3)
        acc = acc + w1_ref[k] * xv[k:k + 1, :]       # (C1,1)*(1,EXT)->(C1,EXT)

    # Zero everything outside the Hp x Wp conv1-output region: this realizes
    # conv2's zero padding.  Mask built in-kernel (ws is a power of two, so
    # row/col are a shift and a bitwise-and -- cheap VPU ops, no extra DMA).
    pos = jax.lax.broadcasted_iota(jnp.int32, (1, ext), 1)
    row = pos >> log2ws
    col = pos & (ws - 1)
    valid = (row >= 1) & (row <= hp) & (col >= 1) & (col <= wp)
    rbuf[...] = jnp.where(valid, jnp.maximum(acc, 0.0), 0.0)

    # ---- conv2 (3x3, padding=1): 9 accumulating MXU matmuls, no im2col. ----
    # dy offsets (dy*ws) are vreg-aligned; only dx in {1,2} shifts lanes.
    acc2 = jnp.broadcast_to(b2_ref[...], (c2, op)).astype(jnp.float32)
    for dy in range(3):
        for dx in range(3):
            t = dy * 3 + dx
            start = dy * ws + dx                          # static
            tap = rbuf[:, start:start + op]               # (C1, OP)
            w_t = w2_ref[t * c2:(t + 1) * c2, :]          # (C2, C1)
            acc2 = acc2 + jnp.dot(w_t, tap,
                                  preferred_element_type=jnp.float32)

    v5 = rbuf[:, ws + 1:ws + 1 + op]     # center tap == relu(v1) on out grid
    # v5 is exactly zero on every non-valid lane, so any garbage in acc2 there
    # is zeroed by the multiply (v6 = v3 * v5).
    o_ref[0] = (acc2 * v5).astype(o_ref.dtype)


@jax.jit
def model_forward(x_nchw, w1, b1, w2, b2):
    """x: (N,Cin,H,W); w1: (C1,Cin,1,1); w2: (C2,C1,3,3). Returns (N,C2,H+2,W+2)."""
    N, Cin, H, W = x_nchw.shape
    C1 = w1.shape[0]
    C2 = w2.shape[0]
    assert C2 == C1, "adjusted graph requires C2 == C1 for v3 * v5"

    Hp, Wp = H + 2, W + 2            # conv1 output size (1x1 kernel, pad=1)
    Wpp = Wp + 2                     # conv2 zero-padded width
    WS = max(8, 1 << (Wpp - 1).bit_length())      # power-of-two row stride
    align = max(128, WS)
    OP = _round_up(Hp * WS, align)                # flat output lanes
    EXT = _round_up(2 * WS + 2 + OP, align)       # flat padded-input lanes
    rows = EXT // WS

    x = x_nchw.astype(jnp.float32)
    # Single pad realizing conv1-pad + conv2-pad + row-stride/lane padding,
    # followed by a free reshape into the flat lane layout.
    xe = jnp.pad(x, ((0, 0), (0, 0), (2, rows - H - 2),
                     (2, WS - W - 2))).reshape(N, Cin, EXT)

    # One-off tiny weight preps.
    w1m = jnp.transpose(w1.reshape(C1, Cin), (1, 0)).reshape(Cin, C1, 1)
    b1m = b1.reshape(C1, 1).astype(jnp.float32)
    # conv2 weights stacked per tap along sublanes: tap t = dy*3+dx.
    w2s = jnp.transpose(w2, (2, 3, 0, 1)).reshape(9 * C2, C1)
    b2m = b2.reshape(C2, 1).astype(jnp.float32)

    kernel = functools.partial(_fused_conv_kernel, ws=WS, hp=Hp, wp=Wp)
    out = pl.pallas_call(
        kernel,
        out_shape=jax.ShapeDtypeStruct((N, C2, OP), jnp.float32),
        grid=(N,),
        in_specs=[
            pl.BlockSpec((1, Cin, EXT), lambda n: (n, 0, 0)),
            pl.BlockSpec((Cin, C1, 1), lambda n: (0, 0, 0)),
            pl.BlockSpec((C1, 1), lambda n: (0, 0)),
            pl.BlockSpec((9 * C2, C1), lambda n: (0, 0)),
            pl.BlockSpec((C2, 1), lambda n: (0, 0)),
        ],
        out_specs=pl.BlockSpec((1, C2, OP), lambda n: (n, 0, 0)),
        scratch_shapes=[pltpu.VMEM((C1, EXT), jnp.float32)],
        compiler_params=pltpu.CompilerParams(
            dimension_semantics=("parallel",)),
    )(xe, w1m, b1m, w2s, b2m)

    # Free reshape + one slice to drop the stride / round-up padding.
    return out.reshape(N, C2, OP // WS, WS)[:, :, :Hp, :Wp]


def _reference(x_nchw, w1, b1, w2, b2):
    """Pure-JAX reference of the same (adjusted) graph."""
    dn = ("NCHW", "OIHW", "NCHW")
    v1 = jax.lax.conv_general_dilated(
        x_nchw, w1, (1, 1), ((1, 1), (1, 1)), dimension_numbers=dn
    ) + b1.reshape(1, -1, 1, 1)
    v2 = jnp.maximum(v1, 0.0)
    v3 = jax.lax.conv_general_dilated(
        v2, w2, (1, 1), ((1, 1), (1, 1)), dimension_numbers=dn
    ) + b2.reshape(1, -1, 1, 1)
    v5 = jnp.maximum(v1, 0.0)
    return v3 * v5


if __name__ == "__main__":
    key = jax.random.PRNGKey(0)
    kx, k1w, k1b, k2w, k2b = jax.random.split(key, 5)

    N, Cin, H, W = 2, 3, 16, 16
    C1, C2 = 16, 16

    x = jax.random.normal(kx, (N, Cin, H, W), dtype=jnp.float32)

    # Deterministic PyTorch-like init (uniform +- 1/sqrt(fan_in)).
    bound1 = 1.0 / (Cin * 1 * 1) ** 0.5
    w1 = jax.random.uniform(k1w, (C1, Cin, 1, 1), jnp.float32, -bound1, bound1)
    b1 = jax.random.uniform(k1b, (C1,), jnp.float32, -bound1, bound1)
    bound2 = 1.0 / (C1 * 3 * 3) ** 0.5
    w2 = jax.random.uniform(k2w, (C2, C1, 3, 3), jnp.float32, -bound2, bound2)
    b2 = jax.random.uniform(k2b, (C2,), jnp.float32, -bound2, bound2)

    out = model_forward(x, w1, b1, w2, b2)
    out = jax.block_until_ready(out)

    ref = jax.block_until_ready(_reference(x, w1, b1, w2, b2))
    assert out.shape == (N, C2, H + 2, W + 2), out.shape
    assert jnp.allclose(out, ref, atol=2e-3, rtol=2e-3), "mismatch vs reference"

    print("KERNEL_OK")
</pallas_src>

<mosaic_0001>
module attributes {stable_mosaic.version = 11 : i64} {
  func.func @_fused_conv_kernel(%arg0: i32, %arg1: memref<1x3x768xf32, #tpu.memory_space<vmem>>, %arg2: memref<3x16x1xf32, #tpu.memory_space<vmem>>, %arg3: memref<16x1xf32, #tpu.memory_space<vmem>>, %arg4: memref<144x16xf32, #tpu.memory_space<vmem>>, %arg5: memref<16x1xf32, #tpu.memory_space<vmem>>, %arg6: memref<1x16x640xf32, #tpu.memory_space<vmem>>, %arg7: memref<16x768xf32, #tpu.memory_space<vmem>>) attributes {dimension_semantics = [#tpu.dimension_semantics<parallel>], iteration_bounds = array<i64: 2>, scalar_prefetch = 0 : i64, scratch_operands = 1 : i64, tpu.core_type = #tpu.core_type<tc>, window_params = [{transform_indices = @transform_0, window_bounds = array<i64: 1, 3, 768>}, {pipeline_mode = #tpu.pipeline_mode<synchronous>, transform_indices = @transform_1, window_bounds = array<i64: 3, 16, 1>}, {pipeline_mode = #tpu.pipeline_mode<synchronous>, transform_indices = @transform_2, window_bounds = array<i64: 16, 1>}, {pipeline_mode = #tpu.pipeline_mode<synchronous>, transform_indices = @transform_3, window_bounds = array<i64: 144, 16>}, {pipeline_mode = #tpu.pipeline_mode<synchronous>, transform_indices = @transform_4, window_bounds = array<i64: 16, 1>}, {transform_indices = @transform_5, window_bounds = array<i64: 1, 16, 640>}]} {
    %c0 = arith.constant 0 : index
    %c0_0 = arith.constant 0 : index
    %c0_1 = arith.constant 0 : index
    %0 = vector.load %arg1[%c0, %c0_0, %c0_1] : memref<1x3x768xf32, #tpu.memory_space<vmem>>, vector<1x3x768xf32>
    %1 = vector.shape_cast %0 : vector<1x3x768xf32> to vector<3x768xf32>
    %c0_2 = arith.constant 0 : index
    %c0_3 = arith.constant 0 : index
    %2 = vector.load %arg3[%c0_2, %c0_3] : memref<16x1xf32, #tpu.memory_space<vmem>>, vector<16x1xf32>
    %c0_4 = arith.constant 0 : index
    %c0_5 = arith.constant 0 : index
    %c0_6 = arith.constant 0 : index
    %3 = vector.load %arg2[%c0_4, %c0_5, %c0_6] : memref<3x16x1xf32, #tpu.memory_space<vmem>>, vector<1x16x1xf32>
    %4 = vector.shape_cast %3 : vector<1x16x1xf32> to vector<16x1xf32>
    %5 = vector.extract_strided_slice %1 {offsets = [0, 0], sizes = [1, 768], strides = [1, 1]} : vector<3x768xf32> to vector<1x768xf32>
    %6 = vector.broadcast %4 : vector<16x1xf32> to vector<16x768xf32>
    %7 = vector.broadcast %5 : vector<1x768xf32> to vector<16x768xf32>
    %8 = arith.mulf %6, %7 : vector<16x768xf32>
    %9 = vector.broadcast %2 : vector<16x1xf32> to vector<16x768xf32>
    %10 = arith.addf %9, %8 : vector<16x768xf32>
    %c1 = arith.constant 1 : index
    %c0_7 = arith.constant 0 : index
    %c0_8 = arith.constant 0 : index
    %11 = vector.load %arg2[%c1, %c0_7, %c0_8] : memref<3x16x1xf32, #tpu.memory_space<vmem>>, vector<1x16x1xf32>
    %12 = vector.shape_cast %11 : vector<1x16x1xf32> to vector<16x1xf32>
    %13 = vector.extract_strided_slice %1 {offsets = [1, 0], sizes = [1, 768], strides = [1, 1]} : vector<3x768xf32> to vector<1x768xf32>
    %14 = vector.broadcast %12 : vector<16x1xf32> to vector<16x768xf32>
    %15 = vector.broadcast %13 : vector<1x768xf32> to vector<16x768xf32>
    %16 = arith.mulf %14, %15 : vector<16x768xf32>
    %17 = arith.addf %10, %16 : vector<16x768xf32>
    %c2 = arith.constant 2 : index
    %c0_9 = arith.constant 0 : index
    %c0_10 = arith.constant 0 : index
    %18 = vector.load %arg2[%c2, %c0_9, %c0_10] : memref<3x16x1xf32, #tpu.memory_space<vmem>>, vector<1x16x1xf32>
    %19 = vector.shape_cast %18 : vector<1x16x1xf32> to vector<16x1xf32>
    %20 = vector.extract_strided_slice %1 {offsets = [2, 0], sizes = [1, 768], strides = [1, 1]} : vector<3x768xf32> to vector<1x768xf32>
    %21 = vector.broadcast %19 : vector<16x1xf32> to vector<16x768xf32>
    %22 = vector.broadcast %20 : vector<1x768xf32> to vector<16x768xf32>
    %23 = arith.mulf %21, %22 : vector<16x768xf32>
    %24 = arith.addf %17, %23 : vector<16x768xf32>
    %25 = tpu.iota {dimensions = array<i32: 1>} : vector<1x768xi32>
    %c5_i32 = arith.constant 5 : i32
    %26 = vector.broadcast %c5_i32 : i32 to vector<1x768xi32>
    %27 = arith.shrsi %25, %26 : vector<1x768xi32>
    %c31_i32 = arith.constant 31 : i32
    %28 = vector.broadcast %c31_i32 : i32 to vector<1x768xi32>
    %29 = arith.andi %25, %28 : vector<1x768xi32>
    %c1_i32 = arith.constant 1 : i32
    %30 = vector.broadcast %c1_i32 : i32 to vector<1x768xi32>
    %31 = arith.cmpi sge, %27, %30 : vector<1x768xi32>
    %c18_i32 = arith.constant 18 : i32
    %32 = vector.broadcast %c18_i32 : i32 to vector<1x768xi32>
    %33 = arith.cmpi sle, %27, %32 : vector<1x768xi32>
    %34 = arith.andi %31, %33 : vector<1x768xi1>
    %c1_i32_11 = arith.constant 1 : i32
    %35 = vector.broadcast %c1_i32_11 : i32 to vector<1x768xi32>
    %36 = arith.cmpi sge, %29, %35 : vector<1x768xi32>
    %37 = arith.andi %34, %36 : vector<1x768xi1>
    %c18_i32_12 = arith.constant 18 : i32
    %38 = vector.broadcast %c18_i32_12 : i32 to vector<1x768xi32>
    %39 = arith.cmpi sle, %29, %38 : vector<1x768xi32>
    %40 = arith.andi %37, %39 : vector<1x768xi1>
    %cst = arith.constant 0.000000e+00 : f32
    %41 = vector.broadcast %cst : f32 to vector<16x768xf32>
    %42 = arith.maximumf %24, %41 : vector<16x768xf32>
    %cst_13 = arith.constant 0.000000e+00 : f32
    %43 = vector.shape_cast %40 : vector<1x768xi1> to vector<1x768xi1>
    %44 = vector.broadcast %43 : vector<1x768xi1> to vector<16x768xi1>
    %45 = vector.broadcast %cst_13 : f32 to vector<16x768xf32>
    %46 = arith.select %44, %42, %45 : vector<16x768xi1>, vector<16x768xf32>
    %c0_14 = arith.constant 0 : index
    %c0_15 = arith.constant 0 : index
    %47 = vector.load %arg7[%c0_14, %c0_15] : memref<16x768xf32, #tpu.memory_space<vmem>>, vector<16x768xf32>
    tpu.vector_store %arg7[%c0_14, %c0_15], %46 {strides = array<i32>} : memref<16x768xf32, #tpu.memory_space<vmem>>, vector<16x768xf32>,
    %c0_16 = arith.constant 0 : index
    %c0_17 = arith.constant 0 : index
    %48 = vector.load %arg5[%c0_16, %c0_17] : memref<16x1xf32, #tpu.memory_space<vmem>>, vector<16x1xf32>
    %49 = vector.shape_cast %48 : vector<16x1xf32> to vector<16x1xf32>
    %50 = vector.broadcast %49 : vector<16x1xf32> to vector<16x640xf32>
    %c0_18 = arith.constant 0 : index
    %c0_19 = arith.constant 0 : index
    %51 = vector.load %arg7[%c0_18, %c0_19] : memref<16x768xf32, #tpu.memory_space<vmem>>, vector<16x640xf32>
    %c0_20 = arith.constant 0 : index
    %c0_21 = arith.constant 0 : index
    %52 = vector.load %arg4[%c0_20, %c0_21] : memref<144x16xf32, #tpu.memory_space<vmem>>, vector<16x16xf32>
    %cst_22 = arith.constant dense<0.000000e+00> : vector<16x640xf32>
    %53 = tpu.matmul %52, %51, %cst_22 {dimension_numbers = #tpu.dot_dimension_numbers<[1], [0], [0], [1], [0, 0, 1, 1], [], []>} : vector<16x16xf32>, vector<16x640xf32>, vector<16x640xf32> -> vector<16x640xf32>
    %54 = arith.addf %50, %53 : vector<16x640xf32>
    %c0_23 = arith.constant 0 : index
    %c1_24 = arith.constant 1 : index
    %55 = vector.load %arg7[%c0_23, %c1_24] : memref<16x768xf32, #tpu.memory_space<vmem>>, vector<16x640xf32>
    %c16 = arith.constant 16 : index
    %c0_25 = arith.constant 0 : index
    %56 = vector.load %arg4[%c16, %c0_25] : memref<144x16xf32, #tpu.memory_space<vmem>>, vector<16x16xf32>
    %cst_26 = arith.constant dense<0.000000e+00> : vector<16x640xf32>
    %57 = tpu.matmul %56, %55, %cst_26 {dimension_numbers = #tpu.dot_dimension_numbers<[1], [0], [0], [1], [0, 0, 1, 1], [], []>} : vector<16x16xf32>, vector<16x640xf32>, vector<16x640xf32> -> vector<16x640xf32>
    %58 = arith.addf %54, %57 : vector<16x640xf32>
    %c0_27 = arith.constant 0 : index
    %c2_28 = arith.constant 2 : index
    %59 = vector.load %arg7[%c0_27, %c2_28] : memref<16x768xf32, #tpu.memory_space<vmem>>, vector<16x640xf32>
    %c32 = arith.constant 32 : index
    %c0_29 = arith.constant 0 : index
    %60 = vector.load %arg4[%c32, %c0_29] : memref<144x16xf32, #tpu.memory_space<vmem>>, vector<16x16xf32>
    %cst_30 = arith.constant dense<0.000000e+00> : vector<16x640xf32>
    %61 = tpu.matmul %60, %59, %cst_30 {dimension_numbers = #tpu.dot_dimension_numbers<[1], [0], [0], [1], [0, 0, 1, 1], [], []>} : vector<16x16xf32>, vector<16x640xf32>, vector<16x640xf32> -> vector<16x640xf32>
    %62 = arith.addf %58, %61 : vector<16x640xf32>
    %c0_31 = arith.constant 0 : index
    %c32_32 = arith.constant 32 : index
    %63 = vector.load %arg7[%c0_31, %c32_32] : memref<16x768xf32, #tpu.memory_space<vmem>>, vector<16x640xf32>
    %c48 = arith.constant 48 : index
    %c0_33 = arith.constant 0 : index
    %64 = vector.load %arg4[%c48, %c0_33] : memref<144x16xf32, #tpu.memory_space<vmem>>, vector<16x16xf32>
    %cst_34 = arith.constant dense<0.000000e+00> : vector<16x640xf32>
    %65 = tpu.matmul %64, %63, %cst_34 {dimension_numbers = #tpu.dot_dimension_numbers<[1], [0], [0], [1], [0, 0, 1, 1], [], []>} : vector<16x16xf32>, vector<16x640xf32>, vector<16x640xf32> -> vector<16x640xf32>
    %66 = arith.addf %62, %65 : vector<16x640xf32>
    %c0_35 = arith.constant 0 : index
    %c33 = arith.constant 33 : index
    %67 = vector.load %arg7[%c0_35, %c33] : memref<16x768xf32, #tpu.memory_space<vmem>>, vector<16x640xf32>
    %c64 = arith.constant 64 : index
    %c0_36 = arith.constant 0 : index
    %68 = vector.load %arg4[%c64, %c0_36] : memref<144x16xf32, #tpu.memory_space<vmem>>, vector<16x16xf32>
    %cst_37 = arith.constant dense<0.000000e+00> : vector<16x640xf32>
    %69 = tpu.matmul %68, %67, %cst_37 {dimension_numbers = #tpu.dot_dimension_numbers<[1], [0], [0], [1], [0, 0, 1, 1], [], []>} : vector<16x16xf32>, vector<16x640xf32>, vector<16x640xf32> -> vector<16x640xf32>
    %70 = arith.addf %66, %69 : vector<16x640xf32>
    %c0_38 = arith.constant 0 : index
    %c34 = arith.constant 34 : index
    %71 = vector.load %arg7[%c0_38, %c34] : memref<16x768xf32, #tpu.memory_space<vmem>>, vector<16x640xf32>
    %c80 = arith.constant 80 : index
    %c0_39 = arith.constant 0 : index
    %72 = vector.load %arg4[%c80, %c0_39] : memref<144x16xf32, #tpu.memory_space<vmem>>, vector<16x16xf32>
    %cst_40 = arith.constant dense<0.000000e+00> : vector<16x640xf32>
    %73 = tpu.matmul %72, %71, %cst_40 {dimension_numbers = #tpu.dot_dimension_numbers<[1], [0], [0], [1], [0, 0, 1, 1], [], []>} : vector<16x16xf32>, vector<16x640xf32>, vector<16x640xf32> -> vector<16x640xf32>
    %74 = arith.addf %70, %73 : vector<16x640xf32>
    %c0_41 = arith.constant 0 : index
    %c64_42 = arith.constant 64 : index
    %75 = vector.load %arg7[%c0_41, %c64_42] : memref<16x768xf32, #tpu.memory_space<vmem>>, vector<16x640xf32>
    %c96 = arith.constant 96 : index
    %c0_43 = arith.constant 0 : index
    %76 = vector.load %arg4[%c96, %c0_43] : memref<144x16xf32, #tpu.memory_space<vmem>>, vector<16x16xf32>
    %cst_44 = arith.constant dense<0.000000e+00> : vector<16x640xf32>
    %77 = tpu.matmul %76, %75, %cst_44 {dimension_numbers = #tpu.dot_dimension_numbers<[1], [0], [0], [1], [0, 0, 1, 1], [], []>} : vector<16x16xf32>, vector<16x640xf32>, vector<16x640xf32> -> vector<16x640xf32>
    %78 = arith.addf %74, %77 : vector<16x640xf32>
    %c0_45 = arith.constant 0 : index
    %c65 = arith.constant 65 : index
    %79 = vector.load %arg7[%c0_45, %c65] : memref<16x768xf32, #tpu.memory_space<vmem>>, vector<16x640xf32>
    %c112 = arith.constant 112 : index
    %c0_46 = arith.constant 0 : index
    %80 = vector.load %arg4[%c112, %c0_46] : memref<144x16xf32, #tpu.memory_space<vmem>>, vector<16x16xf32>
    %cst_47 = arith.constant dense<0.000000e+00> : vector<16x640xf32>
    %81 = tpu.matmul %80, %79, %cst_47 {dimension_numbers = #tpu.dot_dimension_numbers<[1], [0], [0], [1], [0, 0, 1, 1], [], []>} : vector<16x16xf32>, vector<16x640xf32>, vector<16x640xf32> -> vector<16x640xf32>
    %82 = arith.addf %78, %81 : vector<16x640xf32>
    %c0_48 = arith.constant 0 : index
    %c66 = arith.constant 66 : index
    %83 = vector.load %arg7[%c0_48, %c66] : memref<16x768xf32, #tpu.memory_space<vmem>>, vector<16x640xf32>
    %c128 = arith.constant 128 : index
    %c0_49 = arith.constant 0 : index
    %84 = vector.load %arg4[%c128, %c0_49] : memref<144x16xf32, #tpu.memory_space<vmem>>, vector<16x16xf32>
    %cst_50 = arith.constant dense<0.000000e+00> : vector<16x640xf32>
    %85 = tpu.matmul %84, %83, %cst_50 {dimension_numbers = #tpu.dot_dimension_numbers<[1], [0], [0], [1], [0, 0, 1, 1], [], []>} : vector<16x16xf32>, vector<16x640xf32>, vector<16x640xf32> -> vector<16x640xf32>
    %86 = arith.addf %82, %85 : vector<16x640xf32>
    %c0_51 = arith.constant 0 : index
    %c33_52 = arith.constant 33 : index
    %87 = vector.load %arg7[%c0_51, %c33_52] : memref<16x768xf32, #tpu.memory_space<vmem>>, vector<16x640xf32>
    %88 = arith.mulf %86, %87 : vector<16x640xf32>
    %c0_53 = arith.constant 0 : index
    %c0_54 = arith.constant 0 : index
    %c0_55 = arith.constant 0 : index
    %89 = vector.load %arg6[%c0_53, %c0_54, %c0_55] : memref<1x16x640xf32, #tpu.memory_space<vmem>>, vector<1x16x640xf32>
    %90 = vector.shape_cast %89 : vector<1x16x640xf32> to vector<16x640xf32>
    %91 = vector.shape_cast %88 : vector<16x640xf32> to vector<1x16x640xf32>
    tpu.vector_store %arg6[%c0_53, %c0_54, %c0_55], %91 {strides = array<i32>} : memref<1x16x640xf32, #tpu.memory_space<vmem>>, vector<1x16x640xf32>,
    return
  }
  func.func @transform_0(%arg0: i32) -> (i32, i32, i32) {
    %c0_i32 = arith.constant 0 : i32
    %c0_i32_0 = arith.constant 0 : i32
    %c0_i32_1 = arith.constant 0 : i32
    return %arg0, %c0_i32, %c0_i32_0 : i32, i32, i32
  }
  func.func @transform_1(%arg0: i32) -> (i32, i32, i32) {
    %c0_i32 = arith.constant 0 : i32
    %c0_i32_0 = arith.constant 0 : i32
    %c0_i32_1 = arith.constant 0 : i32
    %c0_i32_2 = arith.constant 0 : i32
    return %c0_i32, %c0_i32_0, %c0_i32_1 : i32, i32, i32
  }
  func.func @transform_2(%arg0: i32) -> (i32, i32) {
    %c0_i32 = arith.constant 0 : i32
    %c0_i32_0 = arith.constant 0 : i32
    %c0_i32_1 = arith.constant 0 : i32
    return %c0_i32, %c0_i32_0 : i32, i32
  }
  func.func @transform_3(%arg0: i32) -> (i32, i32) {
    %c0_i32 = arith.constant 0 : i32
    %c0_i32_0 = arith.constant 0 : i32
    %c0_i32_1 = arith.constant 0 : i32
    return %c0_i32, %c0_i32_0 : i32, i32
  }
  func.func @transform_4(%arg0: i32) -> (i32, i32) {
    %c0_i32 = arith.constant 0 : i32
    %c0_i32_0 = arith.constant 0 : i32
    %c0_i32_1 = arith.constant 0 : i32
    return %c0_i32, %c0_i32_0 : i32, i32
  }
  func.func @transform_5(%arg0: i32) -> (i32, i32, i32) {
    %c0_i32 = arith.constant 0 : i32
    %c0_i32_0 = arith.constant 0 : i32
    %c0_i32_1 = arith.constant 0 : i32
    return %arg0, %c0_i32, %c0_i32_0 : i32, i32, i32
  }
}

</mosaic_0001>

<llo_original>
// kernel: model_forward.1
$region0: #{model_forward.1}
  #allocation0 [shape = 'u32[]', space=smem, size = 0x4, offset = 0x4, fixed_abs, tag = 'smem constant byte address 0x4 - core index']
  #allocation1 [shape = 'u32[144,128]{1,0:T(1,128)}', space=vmem, size = 0x12000, scoped, tag = 'internal scratch']
  #allocation2 [shape = 'f32[16,768]{1,0:T(8,128)}', space=vmem, size = 0xc000, scoped, tag = 'scratch operand']
  %s0 = inlined_call_operand.vmem [shape: f32[2,3,768], index: 0, kind: input, shape index: {}]
  %s1 = inlined_call_operand.vmem [shape: f32[3,16,1], index: 1, kind: input, shape index: {}]
  %s2 = inlined_call_operand.vmem [shape: f32[16,1], index: 2, kind: input, shape index: {}]
  %s3 = inlined_call_operand.vmem [shape: f32[144,16], index: 3, kind: input, shape index: {}]
  %s4 = inlined_call_operand.vmem [shape: f32[16,1], index: 4, kind: input, shape index: {}]
  %s5 = inlined_call_operand.vmem [shape: f32[2,16,640], index: 5, kind: output, shape index: {}]
  %s6 = sld [smem:[#allocation0]]
  $region53: #{model_forward.1} parent=0
    _
  %s8 = ssub.s32 1, %s6
  %s9 = scalar_select 0, %s8, %s6
  loop: start=0, step=1, limit=4
  $region2: #{model_forward.1} parent=0 // loop_pre_header
    _
  $region3: #{model_forward.1} parent=0 // loop_header
    %s11 = sphi 0, %s15
    %p12 = scmp.ge.s32.totalorder %s11, 4
    %s21 = sphi 0, %s23
    %s24 = sphi 0, %s21
    %s25 = sphi 0, %s24
    %s41 = sphi 0, %s25
    %s45 = sphi 0, %s45
    %s47 = sphi 0, %s45
    %s48 = sphi 0, %s47
    %s62 = sphi 0, %s48
    %s66 = sphi 0, %s66
    %s68 = sphi 0, %s66
    %s69 = sphi 0, %s68
    %s83 = sphi 0, %s69
    %s87 = sphi 0, %s87
    %s89 = sphi 0, %s87
    %s90 = sphi 0, %s89
    %s104 = sphi 0, %s90
    %s108 = sphi 0, %s108
    %s110 = sphi 0, %s108
    %s111 = sphi 0, %s110
    %s125 = sphi 0, %s111
    %s131 = sphi 0, %s133
    %s134 = sphi 0, %s131
    %s135 = sphi 0, %s134
    %s151 = sphi 0, %s135
  $region4: #{model_forward.1} parent=0 // loop_header_branch
    %14 = sbr.rel (%p12) target = $region8
  $region5: #{model_forward.1} parent=0 // loop_body
    %s16 = ssub.s32 %s11, 1
    %s17 = ssub.s32 %s11, 2
    %s18 = sadd.s32 %s11, 1
    %s19 = ssub.s32 %s11, %s18
    %p20 = scmp.eq.s32.totalorder %s19, 0
    %s22 = sadd.s32 %s21, 1
    %s23 = scalar_select %p20, %s21, %s22
    %p26 = pneg %p20
    %p27 = scmp.eq.s32.totalorder %s11, 1
    %p28 = por %p26, %p27
    %p29 = scmp.ne.s32.totalorder %s21, %s24
    %p30 = scmp.eq.s32.totalorder %s11, 0
    %p31 = por %p29, %p30
    %p32 = scmp.ne.s32.totalorder %s21, %s24
    %p33 = scmp.eq.s32.totalorder %s16, 1
    %p34 = por %p32, %p33
    %p35 = scmp.ne.s32.totalorder %s24, %s25
    %p36 = scmp.eq.s32.totalorder %s16, 0
    %p37 = por %p35, %p36
    %p38 = scmp.ne.s32.totalorder %s24, %s25
    %p39 = scmp.eq.s32.totalorder %s17, 1
    %p40 = por %p38, %p39
    %p42 = scmp.ne.s32.totalorder %s25, %s41
    %p43 = scmp.eq.s32.totalorder %s17, 0
    %p44 = por %p42, %p43
    %s46 = sadd.s32 %s45, 1
    %p49 = scmp.eq.s32.totalorder %s11, 1
    %p50 = scmp.ne.s32.totalorder %s45, %s47
    %p51 = scmp.eq.s32.totalorder %s11, 0
    %p52 = por %p50, %p51
    %p53 = scmp.ne.s32.totalorder %s45, %s47
    %p54 = scmp.eq.s32.totalorder %s16, 1
    %p55 = por %p53, %p54
    %p56 = scmp.ne.s32.totalorder %s47, %s48
    %p57 = scmp.eq.s32.totalorder %s16, 0
    %p58 = por %p56, %p57
    %p59 = scmp.ne.s32.totalorder %s47, %s48
    %p60 = scmp.eq.s32.totalorder %s17, 1
    %p61 = por %p59, %p60
    %p63 = scmp.ne.s32.totalorder %s48, %s62
    %p64 = scmp.eq.s32.totalorder %s17, 0
    %p65 = por %p63, %p64
    %s67 = sadd.s32 %s66, 1
    %p70 = scmp.eq.s32.totalorder %s11, 1
    %p71 = scmp.ne.s32.totalorder %s66, %s68
    %p72 = scmp.eq.s32.totalorder %s11, 0
    %p73 = por %p71, %p72
    %p74 = scmp.ne.s32.totalorder %s66, %s68
    %p75 = scmp.eq.s32.totalorder %s16, 1
    %p76 = por %p74, %p75
    %p77 = scmp.ne.s32.totalorder %s68, %s69
    %p78 = scmp.eq.s32.totalorder %s16, 0
    %p79 = por %p77, %p78
    %p80 = scmp.ne.s32.totalorder %s68, %s69
    %p81 = scmp.eq.s32.totalorder %s17, 1
    %p82 = por %p80, %p81
    %p84 = scmp.ne.s32.totalorder %s69, %s83
    %p85 = scmp.eq.s32.totalorder %s17, 0
    %p86 = por %p84, %p85
    %s88 = sadd.s32 %s87, 1
    %p91 = scmp.eq.s32.totalorder %s11, 1
    %p92 = scmp.ne.s32.totalorder %s87, %s89
    %p93 = scmp.eq.s32.totalorder %s11, 0
    %p94 = por %p92, %p93
    %p95 = scmp.ne.s32.totalorder %s87, %s89
    %p96 = scmp.eq.s32.totalorder %s16, 1
    %p97 = por %p95, %p96
    %p98 = scmp.ne.s32.totalorder %s89, %s90
    %p99 = scmp.eq.s32.totalorder %s16, 0
    %p100 = por %p98, %p99
    %p101 = scmp.ne.s32.totalorder %s89, %s90
    %p102 = scmp.eq.s32.totalorder %s17, 1
    %p103 = por %p101, %p102
    %p105 = scmp.ne.s32.totalorder %s90, %s104
    %p106 = scmp.eq.s32.totalorder %s17, 0
    %p107 = por %p105, %p106
    %s109 = sadd.s32 %s108, 1
    %p112 = scmp.eq.s32.totalorder %s11, 1
    %p113 = scmp.ne.s32.totalorder %s108, %s110
    %p114 = scmp.eq.s32.totalorder %s11, 0
    %p115 = por %p113, %p114
    %p116 = scmp.ne.s32.totalorder %s108, %s110
    %p117 = scmp.eq.s32.totalorder %s16, 1
    %p118 = por %p116, %p117
    %p119 = scmp.ne.s32.totalorder %s110, %s111
    %p120 = scmp.eq.s32.totalorder %s16, 0
    %p121 = por %p119, %p120
    %p122 = scmp.ne.s32.totalorder %s110, %s111
    %p123 = scmp.eq.s32.totalorder %s17, 1
    %p124 = por %p122, %p123
    %p126 = scmp.ne.s32.totalorder %s111, %s125
    %p127 = scmp.eq.s32.totalorder %s17, 0
    %p128 = por %p126, %p127
    %s129 = ssub.s32 %s11, %s18
    %p130 = scmp.eq.s32.totalorder %s129, 0
    %s132 = sadd.s32 %s131, 1
    %s133 = scalar_select %p130, %s131, %s132
    %p136 = pneg %p130
    %p137 = scmp.eq.s32.totalorder %s11, 1
    %p138 = por %p136, %p137
    %p139 = scmp.ne.s32.totalorder %s131, %s134
    %p140 = scmp.eq.s32.totalorder %s11, 0
    %p141 = por %p139, %p140
    %p142 = scmp.ne.s32.totalorder %s131, %s134
    %p143 = scmp.eq.s32.totalorder %s16, 1
    %p144 = por %p142, %p143
    %p145 = scmp.ne.s32.totalorder %s134, %s135
    %p146 = scmp.eq.s32.totalorder %s16, 0
    %p147 = por %p145, %p146
    %p148 = scmp.ne.s32.totalorder %s134, %s135
    %p149 = scmp.eq.s32.totalorder %s17, 1
    %p150 = por %p148, %p149
    %p152 = scmp.ne.s32.totalorder %s135, %s151
    %p153 = scmp.eq.s32.totalorder %s17, 0
    %p154 = por %p152, %p153
    %p155 = scmp.le.s32.totalorder 1, %s11
    %p156 = scmp.lt.s32.totalorder %s11, 3
    %p157 = pnand %p155, %p156
    %p158 = pneg %p157
    // Predicated region
    $region9: #{model_forward.1} parent=5 // pred_check
      _
    $region10: #{model_forward.1} parent=5 // pred_check_branch
      %160 = sbr.rel (%p157) target = $region12
    $region11: #{model_forward.1} parent=5 // pred_region
      %s161 = ssub.s32 %s11, 1
      // Predicated region
      $region13: #{model_forward.1} parent=11 // pred_check
        %p162 = pneg %p58
      $region14: #{model_forward.1} parent=11 // pred_check_branch
        %164 = sbr.rel (%p162) target = $region16
      $region15: #{model_forward.1} parent=11 // pred_region
        _
      $region16: #{model_forward.1} parent=11 // pred_fallthru
        _
      // Predicated region
      $region17: #{model_forward.1} parent=11 // pred_check
        %p165 = pneg %p79
      $region18: #{model_forward.1} parent=11 // pred_check_branch
        %167 = sbr.rel (%p165) target = $region20
      $region19: #{model_forward.1} parent=11 // pred_region
        _
      $region20: #{model_forward.1} parent=11 // pred_fallthru
        _
      // Predicated region
      $region21: #{model_forward.1} parent=11 // pred_check
        %p168 = pneg %p100
      $region22: #{model_forward.1} parent=11 // pred_check_branch
        %170 = sbr.rel (%p168) target = $region24
      $region23: #{model_forward.1} parent=11 // pred_region
        _
      $region24: #{model_forward.1} parent=11 // pred_fallthru
        _
      // Predicated region
      $region25: #{model_forward.1} parent=11 // pred_check
        %p171 = pneg %p121
      $region26: #{model_forward.1} parent=11 // pred_check_branch
        %173 = sbr.rel (%p171) target = $region28
      $region27: #{model_forward.1} parent=11 // pred_region
        _
      $region28: #{model_forward.1} parent=11 // pred_fallthru
        _
    $region12: #{model_forward.1} parent=5 // pred_fallthru
      _
    %p174 = scmp.lt.s32.totalorder %s11, 2
    // Predicated region
    $region29: #{model_forward.1} parent=5 // pred_check
      %p175 = pneg %p174
    $region30: #{model_forward.1} parent=5 // pred_check_branch
      %177 = sbr.rel (%p175) target = $region32
    $region31: #{model_forward.1} parent=5 // pred_region
      // Predicated region
      $region33: #{model_forward.1} parent=31 // pred_check
        %p178 = pneg %p31
      $region34: #{model_forward.1} parent=31 // pred_check_branch
        %180 = sbr.rel (%p178) target = $region36
      $region35: #{model_forward.1} parent=31 // pred_region
        %p181 = scmp.lt.s32.totalorder %s11, 1
        %s182 = scalar_select %p181, %s11, 1
        %s183 = smul.addr %s182, 6
        %s184 = smul.addr %s183, 4
        %s185 = scalar_lea.vmem %s0, %s184
      $region36: #{model_forward.1} parent=31 // pred_fallthru
        _
    $region32: #{model_forward.1} parent=5 // pred_fallthru
      _
    %p186 = scmp.le.s32.totalorder 1, %s11
    %p187 = scmp.lt.s32.totalorder %s11, 3
    %p188 = pnand %p186, %p187
    %p189 = pneg %p188
    // Predicated region
    $region37: #{model_forward.1} parent=5 // pred_check
      _
    $region38: #{model_forward.1} parent=5 // pred_check_branch
      %191 = sbr.rel (%p188) target = $region40
    $region39: #{model_forward.1} parent=5 // pred_region
      %s192 = ssub.s32 %s11, 1
      %p193 = scmp.lt.s32.totalorder %s16, 1
      %s194 = scalar_select %p193, %s16, 1
      %s195 = smul.addr %s194, 6
      %s196 = smul.addr %s195, 4
      %s197 = scalar_lea.vmem %s0, %s196
      %p198 = pneg %p37
      %p199 = pneg %p34
      %p200 = pneg %p58
      %p201 = pneg %p55
      %p202 = pneg %p79
      %p203 = pneg %p76
      %p204 = pneg %p100
      %p205 = pneg %p97
      %p206 = pneg %p121
      %p207 = pneg %p118
      %p208 = pneg %p147
      %p209 = pneg %p144
      %p210 = scmp.lt.s32.totalorder %s16, 1
      %s211 = scalar_select %p210, %s16, 1
      %s212 = smul.addr %s211, 10
      %s213 = smul.addr %s212, 8
      %s214 = scalar_lea.vmem %s5, %s213
      %p215 = scmp.lt.s32.totalorder %s16, 1
      %s216 = scalar_select %p215, %s16, 1
      %s217 = smul.addr %s216, 6
      %s218 = smul.addr %s217, 4
      %s219 = scalar_lea.vmem %s0, %s218
      %p220 = scmp.lt.s32.totalorder %s16, 1
      %s221 = scalar_select %p220, %s16, 1
      %s222 = smul.addr %s221, 10
      %s223 = smul.addr %s222, 8
      %s224 = scalar_lea.vmem %s5, %s223
      %v225 = vld [vmem:[%s219] sm:$0x77]
      %v226 = vld [vmem:[%s219 + $0x8] sm:$0x77]
      %v227 = vld [vmem:[%s219 + $0x10] sm:$0x77]
      %v228 = vld [vmem:[%s2] sm:$0xff]
      %v229 = vld [vmem:[%s2 + $0x8] sm:$0xff]
      %v230 = vld [vmem:[%s1] sm:$0xff]
      %v231 = vld [vmem:[%s1 + $0x8] sm:$0xff]
      %233 = vset.pattern.permute.xlu0 0
      %234 = vperm.xlu0 %233, %v230
      %v235 = vpop.permute.xlu0 %234
      %238 = vset.pattern.permute.xlu0 0
      %239 = vperm.xlu0 %238, %v231
      %v240 = vpop.permute.xlu0 %239
      %v245 = vlaneseq
      %v246 = vshrl.u32 %v245, 7
      %v247 = vsub.s32 0, %v246
      %v248 = vrot.slane %v225, %v247
      %v249 = vlaneseq
      %v250 = vshrl.u32 %v249, 7
      %v251 = vsub.s32 4, %v250
      %v252 = vrot.slane %v225, %v251
      %v253 = vlaneseq
      %v254 = vshrl.u32 %v253, 7
      %v255 = vsub.s32 0, %v254
      %v256 = vrot.slane %v226, %v255
      %v257 = vlaneseq
      %v258 = vshrl.u32 %v257, 7
      %v259 = vsub.s32 4, %v258
      %v260 = vrot.slane %v226, %v259
      %v261 = vlaneseq
      %v262 = vshrl.u32 %v261, 7
      %v263 = vsub.s32 0, %v262
      %v264 = vrot.slane %v227, %v263
      %v265 = vlaneseq
      %v266 = vshrl.u32 %v265, 7
      %v267 = vsub.s32 4, %v266
      %v268 = vrot.slane %v227, %v267
      %v275 = vlaneseq
      %v276 = vshrl.u32 %v275, 7
      %v277 = vsub.s32 0, %v276
      %v278 = vrot.slane %v248, %v277
      %v279 = vlaneseq
      %v280 = vshrl.u32 %v279, 7
      %v281 = vsub.s32 0, %v280
      %v282 = vrot.slane %v252, %v281
      %v283 = vlaneseq
      %v284 = vshrl.u32 %v283, 7
      %v285 = vsub.s32 0, %v284
      %v286 = vrot.slane %v256, %v285
      %v287 = vlaneseq
      %v288 = vshrl.u32 %v287, 7
      %v289 = vsub.s32 0, %v288
      %v290 = vrot.slane %v260, %v289
      %v291 = vlaneseq
      %v292 = vshrl.u32 %v291, 7
      %v293 = vsub.s32 0, %v292
      %v294 = vrot.slane %v264, %v293
      %v295 = vlaneseq
      %v296 = vshrl.u32 %v295, 7
      %v297 = vsub.s32 0, %v296
      %v298 = vrot.slane %v268, %v297
      %v299 = vmul.f32 %v235, %v278
      %v300 = vmul.f32 %v235, %v282
      %v301 = vmul.f32 %v235, %v286
      %v302 = vmul.f32 %v235, %v290
      %v303 = vmul.f32 %v235, %v294
      %v304 = vmul.f32 %v235, %v298
      %v305 = vmul.f32 %v240, %v278
      %v306 = vmul.f32 %v240, %v282
      %v307 = vmul.f32 %v240, %v286
      %v308 = vmul.f32 %v240, %v290
      %v309 = vmul.f32 %v240, %v294
      %v310 = vmul.f32 %v240, %v298
      %312 = vset.pattern.permute.xlu0 0
      %313 = vperm.xlu0 %312, %v228
      %v314 = vpop.permute.xlu0 %313
      %317 = vset.pattern.permute.xlu0 0
      %318 = vperm.xlu0 %317, %v229
      %v319 = vpop.permute.xlu0 %318
      %v321 = vadd.f32 %v314, %v299
      %v322 = vadd.f32 %v314, %v300
      %v323 = vadd.f32 %v314, %v301
      %v324 = vadd.f32 %v314, %v302
      %v325 = vadd.f32 %v314, %v303
      %v326 = vadd.f32 %v314, %v304
      %v327 = vadd.f32 %v319, %v305
      %v328 = vadd.f32 %v319, %v306
      %v329 = vadd.f32 %v319, %v307
      %v330 = vadd.f32 %v319, %v308
      %v331 = vadd.f32 %v319, %v309
      %v332 = vadd.f32 %v319, %v310
      %s333 = scalar_lea.vmem %s1, 16
      %v334 = vld [vmem:[%s333] sm:$0xff]
      %v335 = vld [vmem:[%s333 + $0x8] sm:$0xff]
      %337 = vset.pattern.permute.xlu0 0
      %338 = vperm.xlu0 %337, %v334
      %v339 = vpop.permute.xlu0 %338
      %342 = vset.pattern.permute.xlu0 0
      %343 = vperm.xlu0 %342, %v335
      %v344 = vpop.permute.xlu0 %343
      %v346 = vlaneseq
      %v347 = vshrl.u32 %v346, 7
      %v348 = vsub.s32 1, %v347
      %v349 = vrot.slane %v225, %v348
      %v350 = vlaneseq
      %v351 = vshrl.u32 %v350, 7
      %v352 = vsub.s32 5, %v351
      %v353 = vrot.slane %v225, %v352
      %v354 = vlaneseq
      %v355 = vshrl.u32 %v354, 7
      %v356 = vsub.s32 1, %v355
      %v357 = vrot.slane %v226, %v356
      %v358 = vlaneseq
      %v359 = vshrl.u32 %v358, 7
      %v360 = vsub.s32 5, %v359
      %v361 = vrot.slane %v226, %v360
      %v362 = vlaneseq
      %v363 = vshrl.u32 %v362, 7
      %v364 = vsub.s32 1, %v363
      %v365 = vrot.slane %v227, %v364
      %v366 = vlaneseq
      %v367 = vshrl.u32 %v366, 7
      %v368 = vsub.s32 5, %v367
      %v369 = vrot.slane %v227, %v368
      %v376 = vlaneseq
      %v377 = vshrl.u32 %v376, 7
      %v378 = vsub.s32 1, %v377
      %v379 = vrot.slane %v349, %v378
      %v380 = vlaneseq
      %v381 = vshrl.u32 %v380, 7
      %v382 = vsub.s32 1, %v381
      %v383 = vrot.slane %v353, %v382
      %v384 = vlaneseq
      %v385 = vshrl.u32 %v384, 7
      %v386 = vsub.s32 1, %v385
      %v387 = vrot.slane %v357, %v386
      %v388 = vlaneseq
      %v389 = vshrl.u32 %v388, 7
      %v390 = vsub.s32 1, %v389
      %v391 = vrot.slane %v361, %v390
      %v392 = vlaneseq
      %v393 = vshrl.u32 %v392, 7
      %v394 = vsub.s32 1, %v393
      %v395 = vrot.slane %v365, %v394
      %v396 = vlaneseq
      %v397 = vshrl.u32 %v396, 7
      %v398 = vsub.s32 1, %v397
      %v399 = vrot.slane %v369, %v398
      %v400 = vmul.f32 %v339, %v379
      %v401 = vmul.f32 %v339, %v383
      %v402 = vmul.f32 %v339, %v387
      %v403 = vmul.f32 %v339, %v391
      %v404 = vmul.f32 %v339, %v395
      %v405 = vmul.f32 %v339, %v399
      %v406 = vmul.f32 %v344, %v379
      %v407 = vmul.f32 %v344, %v383
      %v408 = vmul.f32 %v344, %v387
      %v409 = vmul.f32 %v344, %v391
      %v410 = vmul.f32 %v344, %v395
      %v411 = vmul.f32 %v344, %v399
      %v412 = vadd.f32 %v321, %v400
      %v413 = vadd.f32 %v322, %v401
      %v414 = vadd.f32 %v323, %v402
      %v415 = vadd.f32 %v324, %v403
      %v416 = vadd.f32 %v325, %v404
      %v417 = vadd.f32 %v326, %v405
      %v418 = vadd.f32 %v327, %v406
      %v419 = vadd.f32 %v328, %v407
      %v420 = vadd.f32 %v329, %v408
      %v421 = vadd.f32 %v330, %v409
      %v422 = vadd.f32 %v331, %v410
      %v423 = vadd.f32 %v332, %v411
      %s424 = scalar_lea.vmem %s1, 32
      %v425 = vld [vmem:[%s424] sm:$0xff]
      %v426 = vld [vmem:[%s424 + $0x8] sm:$0xff]
      %428 = vset.pattern.permute.xlu0 0
      %429 = vperm.xlu0 %428, %v425
      %v430 = vpop.permute.xlu0 %429
      %433 = vset.pattern.permute.xlu0 0
      %434 = vperm.xlu0 %433, %v426
      %v435 = vpop.permute.xlu0 %434
      %v437 = vlaneseq
      %v438 = vshrl.u32 %v437, 7
      %v439 = vsub.s32 2, %v438
      %v440 = vrot.slane %v225, %v439
      %v441 = vlaneseq
      %v442 = vshrl.u32 %v441, 7
      %v443 = vsub.s32 6, %v442
      %v444 = vrot.slane %v225, %v443
      %v445 = vlaneseq
      %v446 = vshrl.u32 %v445, 7
      %v447 = vsub.s32 2, %v446
      %v448 = vrot.slane %v226, %v447
      %v449 = vlaneseq
      %v450 = vshrl.u32 %v449, 7
      %v451 = vsub.s32 6, %v450
      %v452 = vrot.slane %v226, %v451
      %v453 = vlaneseq
      %v454 = vshrl.u32 %v453, 7
      %v455 = vsub.s32 2, %v454
      %v456 = vrot.slane %v227, %v455
      %v457 = vlaneseq
      %v458 = vshrl.u32 %v457, 7
      %v459 = vsub.s32 6, %v458
      %v460 = vrot.slane %v227, %v459
      %v467 = vlaneseq
      %v468 = vshrl.u32 %v467, 7
      %v469 = vsub.s32 2, %v468
      %v470 = vrot.slane %v440, %v469
      %v471 = vlaneseq
      %v472 = vshrl.u32 %v471, 7
      %v473 = vsub.s32 2, %v472
      %v474 = vrot.slane %v444, %v473
      %v475 = vlaneseq
      %v476 = vshrl.u32 %v475, 7
      %v477 = vsub.s32 2, %v476
      %v478 = vrot.slane %v448, %v477
      %v479 = vlaneseq
      %v480 = vshrl.u32 %v479, 7
      %v481 = vsub.s32 2, %v480
      %v482 = vrot.slane %v452, %v481
      %v483 = vlaneseq
      %v484 = vshrl.u32 %v483, 7
      %v485 = vsub.s32 2, %v484
      %v486 = vrot.slane %v456, %v485
      %v487 = vlaneseq
      %v488 = vshrl.u32 %v487, 7
      %v489 = vsub.s32 2, %v488
      %v490 = vrot.slane %v460, %v489
      %v491 = vmul.f32 %v430, %v470
      %v492 = vmul.f32 %v430, %v474
      %v493 = vmul.f32 %v430, %v478
      %v494 = vmul.f32 %v430, %v482
      %v495 = vmul.f32 %v430, %v486
      %v496 = vmul.f32 %v430, %v490
      %v497 = vmul.f32 %v435, %v470
      %v498 = vmul.f32 %v435, %v474
      %v499 = vmul.f32 %v435, %v478
      %v500 = vmul.f32 %v435, %v482
      %v501 = vmul.f32 %v435, %v486
      %v502 = vmul.f32 %v435, %v490
      %v503 = vadd.f32 %v412, %v491
      %v504 = vadd.f32 %v413, %v492
      %v505 = vadd.f32 %v414, %v493
      %v506 = vadd.f32 %v415, %v494
      %v507 = vadd.f32 %v416, %v495
      %v508 = vadd.f32 %v417, %v496
      %v509 = vadd.f32 %v418, %v497
      %v510 = vadd.f32 %v419, %v498
      %v511 = vadd.f32 %v420, %v499
      %v512 = vadd.f32 %v421, %v500
      %v513 = vadd.f32 %v422, %v501
      %v514 = vadd.f32 %v423, %v502
      %v515 = vlaneseq
      %v516 = vand.u32 %v515, 127
      %v517 = vadd.s32 %v516, 128
      %v518 = vadd.s32 %v516, 256
      %v519 = vadd.s32 %v516, 384
      %v520 = vadd.s32 %v516, 512
      %v521 = vadd.s32 %v516, 640
      %v522 = vshra.s32 %v516, 5
      %v523 = vshra.s32 %v517, 5
      %v524 = vshra.s32 %v518, 5
      %v525 = vshra.s32 %v519, 5
      %v526 = vshra.s32 %v520, 5
      %v527 = vshra.s32 %v521, 5
      %v528 = vand.u32 %v516, 31
      %v529 = vand.u32 %v517, 31
      %v530 = vand.u32 %v518, 31
      %v531 = vand.u32 %v519, 31
      %v532 = vand.u32 %v520, 31
      %v533 = vand.u32 %v521, 31
      %vm534 = vcmp.ge.s32.totalorder %v522, 1
      %vm535 = vcmp.ge.s32.totalorder %v523, 1
      %vm536 = vcmp.ge.s32.totalorder %v524, 1
      %vm537 = vcmp.ge.s32.totalorder %v525, 1
      %vm538 = vcmp.ge.s32.totalorder %v526, 1
      %vm539 = vcmp.ge.s32.totalorder %v527, 1
      %vm540 = vcmp.le.s32.totalorder %v522, 18
      %vm541 = vcmp.le.s32.totalorder %v523, 18
      %vm542 = vcmp.le.s32.totalorder %v524, 18
      %vm543 = vcmp.le.s32.totalorder %v525, 18
      %vm544 = vcmp.le.s32.totalorder %v526, 18
      %vm545 = vcmp.le.s32.totalorder %v527, 18
      %vm546 = vmand %vm534, %vm540
      %vm547 = vmand %vm535, %vm541
      %vm548 = vmand %vm536, %vm542
      %vm549 = vmand %vm537, %vm543
      %vm550 = vmand %vm538, %vm544
      %vm551 = vmand %vm539, %vm545
      %vm552 = vcmp.ge.s32.totalorder %v528, 1
      %vm553 = vcmp.ge.s32.totalorder %v529, 1
      %vm554 = vcmp.ge.s32.totalorder %v530, 1
      %vm555 = vcmp.ge.s32.totalorder %v531, 1
      %vm556 = vcmp.ge.s32.totalorder %v532, 1
      %vm557 = vcmp.ge.s32.totalorder %v533, 1
      %vm558 = vmand %vm546, %vm552
      %vm559 = vmand %vm547, %vm553
      %vm560 = vmand %vm548, %vm554
      %vm561 = vmand %vm549, %vm555
      %vm562 = vmand %vm550, %vm556
      %vm563 = vmand %vm551, %vm557
      %vm564 = vcmp.le.s32.totalorder %v528, 18
      %vm565 = vcmp.le.s32.totalorder %v529, 18
      %vm566 = vcmp.le.s32.totalorder %v530, 18
      %vm567 = vcmp.le.s32.totalorder %v531, 18
      %vm568 = vcmp.le.s32.totalorder %v532, 18
      %vm569 = vcmp.le.s32.totalorder %v533, 18
      %vm570 = vmand %vm558, %vm564
      %vm571 = vmand %vm559, %vm565
      %vm572 = vmand %vm560, %vm566
      %vm573 = vmand %vm561, %vm567
      %vm574 = vmand %vm562, %vm568
      %vm575 = vmand %vm563, %vm569
      %v576 = vmax.f32 %v503, 0.0
      %v577 = vmax.f32 %v504, 0.0
      %v578 = vmax.f32 %v505, 0.0
      %v579 = vmax.f32 %v506, 0.0
      %v580 = vmax.f32 %v507, 0.0
      %v581 = vmax.f32 %v508, 0.0
      %v582 = vmax.f32 %v509, 0.0
      %v583 = vmax.f32 %v510, 0.0
      %v584 = vmax.f32 %v511, 0.0
      %v585 = vmax.f32 %v512, 0.0
      %v586 = vmax.f32 %v513, 0.0
      %v587 = vmax.f32 %v514, 0.0
      %v588 = vsel %vm570, 1, 0
      %v589 = vsel %vm571, 1, 0
      %v590 = vsel %vm572, 1, 0
      %v591 = vsel %vm573, 1, 0
      %v592 = vsel %vm574, 1, 0
      %v593 = vsel %vm575, 1, 0
      %vm594 = vcmp.eq.s32.totalorder %v588, 1
      %vm595 = vcmp.eq.s32.totalorder %v589, 1
      %vm596 = vcmp.eq.s32.totalorder %v590, 1
      %vm597 = vcmp.eq.s32.totalorder %v591, 1
      %vm598 = vcmp.eq.s32.totalorder %v592, 1
      %vm599 = vcmp.eq.s32.totalorder %v593, 1
      %v600 = vsel %vm594, %v576, 0.0
      %v601 = vsel %vm595, %v577, 0.0
      %v602 = vsel %vm596, %v578, 0.0
      %v603 = vsel %vm597, %v579, 0.0
      %v604 = vsel %vm598, %v580, 0.0
      %v605 = vsel %vm599, %v581, 0.0
      %v606 = vsel %vm594, %v582, 0.0
      %v607 = vsel %vm595, %v583, 0.0
      %v608 = vsel %vm596, %v584, 0.0
      %v609 = vsel %vm597, %v585, 0.0
      %v610 = vsel %vm598, %v586, 0.0
      %v611 = vsel %vm599, %v587, 0.0
      %612 = vst [vmem:[#allocation2] sm:$0xff] %v600
      %613 = vst [vmem:[#allocation2 + $0x8] sm:$0xff] %v601
      %614 = vst [vmem:[#allocation2 + $0x10] sm:$0xff] %v602
      %615 = vst [vmem:[#allocation2 + $0x18] sm:$0xff] %v603
      %616 = vst [vmem:[#allocation2 + $0x20] sm:$0xff] %v604
      %617 = vst [vmem:[#allocation2 + $0x28] sm:$0xff] %v605
      %618 = vst [vmem:[#allocation2 + $0x30] sm:$0xff] %v606
      %619 = vst [vmem:[#allocation2 + $0x38] sm:$0xff] %v607
      %620 = vst [vmem:[#allocation2 + $0x40] sm:$0xff] %v608
      %621 = vst [vmem:[#allocation2 + $0x48] sm:$0xff] %v609
      %622 = vst [vmem:[#allocation2 + $0x50] sm:$0xff] %v610
      %623 = vst [vmem:[#allocation2 + $0x58] sm:$0xff] %v611
      %v624 = vld [vmem:[%s4] sm:$0xff]
      %v625 = vld [vmem:[%s4 + $0x8] sm:$0xff]
      %627 = vset.pattern.permute.xlu0 0
      %628 = vperm.xlu0 %627, %v624
      %v629 = vpop.permute.xlu0 %628
      %632 = vset.pattern.permute.xlu0 0
      %633 = vperm.xlu0 %632, %v625
      %v634 = vpop.permute.xlu0 %633
      %v636 = vld [vmem:[#allocation2] sm:$0xff]
      %v637 = vld [vmem:[#allocation2 + $0x8] sm:$0xff]
      %v638 = vld [vmem:[#allocation2 + $0x10] sm:$0xff]
      %v639 = vld [vmem:[#allocation2 + $0x18] sm:$0xff]
      %v640 = vld [vmem:[#allocation2 + $0x20] sm:$0xff]
      %v641 = vld [vmem:[#allocation2 + $0x30] sm:$0xff]
      %v642 = vld [vmem:[#allocation2 + $0x38] sm:$0xff]
      %v643 = vld [vmem:[#allocation2 + $0x40] sm:$0xff]
      %v644 = vld [vmem:[#allocation2 + $0x48] sm:$0xff]
      %v645 = vld [vmem:[#allocation2 + $0x50] sm:$0xff]
      %v646 = vld [vmem:[%s3] sm:$0xff]
      %v647 = vld [vmem:[%s3 + $0x8] sm:$0xff]
      %vm648 = vcmask 130048
      %v650 = vsel %vm648, %v646, 0
      %v653 = vsel %vm648, %v647, 0
      %655 = vmatprep.subr.mxu0 0.0
      %656 = vmatpush1.msra.mxu0 0.0
      %657 = vmatprep.subr.mxu0 0.0
      %658 = vmatpush1.msra.mxu0 0.0
      %659 = vmatprep.subr.mxu0 0.0
      %660 = vmatpush1.msra.mxu0 0.0
      %661 = vmatprep.subr.mxu0 0.0
      %662 = vmatpush1.msra.mxu0 0.0
      %663 = vmatprep.subr.mxu0 0.0
      %664 = vmatpush1.msra.mxu0 0.0
      %665 = vmatprep.subr.mxu0 0.0
      %666 = vmatpush1.msra.mxu0 0.0
      %667 = vmatprep.subr.mxu0 0.0
      %668 = vmatpush1.msra.mxu0 0.0
      %669 = vmatprep.subr.mxu0 0.0
      %670 = vmatpush1.msra.mxu0 0.0
      %671 = vmatprep.subr.mxu0 0.0
      %672 = vmatpush1.msra.mxu0 0.0
      %673 = vmatprep.subr.mxu0 0.0
      %674 = vmatpush1.msra.mxu0 0.0
      %675 = vmatprep.subr.mxu0 0.0
      %676 = vmatpush1.msra.mxu0 0.0
      %677 = vmatprep.subr.mxu0 0.0
      %678 = vmatpush1.msra.mxu0 0.0
      %679 = vmatprep.subr.mxu0 0.0
      %680 = vmatpush1.msra.mxu0 0.0
      %681 = vmatprep.subr.mxu0 0.0
      %682 = vmatpush1.msra.mxu0 0.0
      %683 = vmatprep.subr.mxu0 %v642
      %684 = vmatpush1.msra.mxu0 %v641
      %685 = vmatprep.subr.mxu0 %v637
      %686 = vmatpush1.msra.mxu0 %v636
      %687 = vmatprep.subr.mxu0 0.0
      %688 = vmatpush2.msra.mxu0 0.0
      %689 = vmatprep.subr.mxu0 0.0
      %690 = vmatpush2.msra.mxu0 0.0
      %691 = vmatprep.subr.mxu0 0.0
      %692 = vmatpush2.msra.mxu0 0.0
      %693 = vmatprep.subr.mxu0 0.0
      %694 = vmatpush2.msra.mxu0 0.0
      %695 = vmatprep.subr.mxu0 0.0
      %696 = vmatpush2.msra.mxu0 0.0
      %697 = vmatprep.subr.mxu0 0.0
      %698 = vmatpush2.msra.mxu0 0.0
      %699 = vmatprep.subr.mxu0 0.0
      %700 = vmatpush2.msra.mxu0 0.0
      %701 = vmatprep.subr.mxu0 0.0
      %702 = vmatpush2.msra.mxu0 0.0
      %703 = vmatprep.subr.mxu0 0.0
      %704 = vmatpush2.msra.mxu0 0.0
      %705 = vmatprep.subr.mxu0 0.0
      %706 = vmatpush2.msra.mxu0 0.0
      %707 = vmatprep.subr.mxu0 0.0
      %708 = vmatpush2.msra.mxu0 0.0
      %709 = vmatprep.subr.mxu0 0.0
      %710 = vmatpush2.msra.mxu0 0.0
      %711 = vmatprep.subr.mxu0 0.0
      %712 = vmatpush2.msra.mxu0 0.0
      %713 = vmatprep.subr.mxu0 0.0
      %714 = vmatpush2.msra.mxu0 0.0
      %715 = vmatprep.subr.mxu0 0.0
      %716 = vmatpush2.msra.mxu0 0.0
      %717 = vmatprep.subr.mxu0 0.0
      %718 = vmatpush2.msra.mxu0 0.0
      %719 = vmatprep.mubr.f32.mxu0 0.0
      %720 = vmatmul.mubr.f32.gmra.mxu0 %v650
      %v721 = vpop.f32.mrf.mxu0
      %v722 = vadd.f32 0.0, %v721
      %v723 = vpop.f32.mrf.mxu0
      %v724 = vadd.f32 0.0, %v723
      %725 = vmatprep.mubr.f32.mxu0 0.0
      %726 = vmatmul.mubr.f32.gmra.mxu0 %v653
      %v727 = vpop.f32.mrf.mxu0
      %v728 = vadd.f32 0.0, %v727
      %v729 = vpop.f32.mrf.mxu0
      %v730 = vadd.f32 0.0, %v729
      %731 = vdwg.mxu0
      %732 = vmatprep.subr.mxu0 0.0
      %733 = vmatpush1.msra.mxu0 0.0
      %734 = vmatprep.subr.mxu0 0.0
      %735 = vmatpush1.msra.mxu0 0.0
      %736 = vmatprep.subr.mxu0 0.0
      %737 = vmatpush1.msra.mxu0 0.0
      %738 = vmatprep.subr.mxu0 0.0
      %739 = vmatpush1.msra.mxu0 0.0
      %740 = vmatprep.subr.mxu0 0.0
      %741 = vmatpush1.msra.mxu0 0.0
      %742 = vmatprep.subr.mxu0 0.0
      %743 = vmatpush1.msra.mxu0 0.0
      %744 = vmatprep.subr.mxu0 0.0
      %745 = vmatpush1.msra.mxu0 0.0
      %746 = vmatprep.subr.mxu0 0.0
      %747 = vmatpush1.msra.mxu0 0.0
      %748 = vmatprep.subr.mxu0 0.0
      %749 = vmatpush1.msra.mxu0 0.0
      %750 = vmatprep.subr.mxu0 0.0
      %751 = vmatpush1.msra.mxu0 0.0
      %752 = vmatprep.subr.mxu0 0.0
      %753 = vmatpush1.msra.mxu0 0.0
      %754 = vmatprep.subr.mxu0 0.0
      %755 = vmatpush1.msra.mxu0 0.0
      %756 = vmatprep.subr.mxu0 0.0
      %757 = vmatpush1.msra.mxu0 0.0
      %758 = vmatprep.subr.mxu0 0.0
      %759 = vmatpush1.msra.mxu0 0.0
      %760 = vmatprep.subr.mxu0 %v644
      %761 = vmatpush1.msra.mxu0 %v643
      %762 = vmatprep.subr.mxu0 %v639
      %763 = vmatpush1.msra.mxu0 %v638
      %764 = vmatprep.subr.mxu0 0.0
      %765 = vmatpush2.msra.mxu0 0.0
      %766 = vmatprep.subr.mxu0 0.0
      %767 = vmatpush2.msra.mxu0 0.0
      %768 = vmatprep.subr.mxu0 0.0
      %769 = vmatpush2.msra.mxu0 0.0
      %770 = vmatprep.subr.mxu0 0.0
      %771 = vmatpush2.msra.mxu0 0.0
      %772 = vmatprep.subr.mxu0 0.0
      %773 = vmatpush2.msra.mxu0 0.0
      %774 = vmatprep.subr.mxu0 0.0
      %775 = vmatpush2.msra.mxu0 0.0
      %776 = vmatprep.subr.mxu0 0.0
      %777 = vmatpush2.msra.mxu0 0.0
      %778 = vmatprep.subr.mxu0 0.0
      %779 = vmatpush2.msra.mxu0 0.0
      %780 = vmatprep.subr.mxu0 0.0
      %781 = vmatpush2.msra.mxu0 0.0
      %782 = vmatprep.subr.mxu0 0.0
      %783 = vmatpush2.msra.mxu0 0.0
      %784 = vmatprep.subr.mxu0 0.0
      %785 = vmatpush2.msra.mxu0 0.0
      %786 = vmatprep.subr.mxu0 0.0
      %787 = vmatpush2.msra.mxu0 0.0
      %788 = vmatprep.subr.mxu0 0.0
      %789 = vmatpush2.msra.mxu0 0.0
      %790 = vmatprep.subr.mxu0 0.0
      %791 = vmatpush2.msra.mxu0 0.0
      %792 = vmatprep.subr.mxu0 0.0
      %793 = vmatpush2.msra.mxu0 0.0
      %794 = vmatprep.subr.mxu0 0.0
      %795 = vmatpush2.msra.mxu0 0.0
      %796 = vmatprep.mubr.f32.mxu0 0.0
      %797 = vmatmul.mubr.f32.gmra.mxu0 %v650
      %v798 = vpop.f32.mrf.mxu0
      %v799 = vadd.f32 0.0, %v798
      %v800 = vpop.f32.mrf.mxu0
      %v801 = vadd.f32 0.0, %v800
      %802 = vmatprep.mubr.f32.mxu0 0.0
      %803 = vmatmul.mubr.f32.gmra.mxu0 %v653
      %v804 = vpop.f32.mrf.mxu0
      %v805 = vadd.f32 0.0, %v804
      %v806 = vpop.f32.mrf.mxu0
      %v807 = vadd.f32 0.0, %v806
      %808 = vdwg.mxu0
      %809 = vmatprep.subr.mxu0 0.0
      %810 = vmatpush1.msra.mxu0 0.0
      %811 = vmatprep.subr.mxu0 0.0
      %812 = vmatpush1.msra.mxu0 0.0
      %813 = vmatprep.subr.mxu0 0.0
      %814 = vmatpush1.msra.mxu0 0.0
      %815 = vmatprep.subr.mxu0 0.0
      %816 = vmatpush1.msra.mxu0 0.0
      %817 = vmatprep.subr.mxu0 0.0
      %818 = vmatpush1.msra.mxu0 0.0
      %819 = vmatprep.subr.mxu0 0.0
      %820 = vmatpush1.msra.mxu0 0.0
      %821 = vmatprep.subr.mxu0 0.0
      %822 = vmatpush1.msra.mxu0 0.0
      %823 = vmatprep.subr.mxu0 0.0
      %824 = vmatpush1.msra.mxu0 0.0
      %825 = vmatprep.subr.mxu0 0.0
      %826 = vmatpush1.msra.mxu0 0.0
      %827 = vmatprep.subr.mxu0 0.0
      %828 = vmatpush1.msra.mxu0 0.0
      %829 = vmatprep.subr.mxu0 0.0
      %830 = vmatpush1.msra.mxu0 0.0
      %831 = vmatprep.subr.mxu0 0.0
      %832 = vmatpush1.msra.mxu0 0.0
      %833 = vmatprep.subr.mxu0 0.0
      %834 = vmatpush1.msra.mxu0 0.0
      %835 = vmatprep.subr.mxu0 0.0
      %836 = vmatpush1.msra.mxu0 0.0
      %837 = vmatprep.subr.mxu0 0.0
      %838 = vmatpush1.msra.mxu0 %v645
      %839 = vmatprep.subr.mxu0 0.0
      %840 = vmatpush1.msra.mxu0 %v640
      %841 = vmatprep.subr.mxu0 0.0
      %842 = vmatpush2.msra.mxu0 0.0
      %843 = vmatprep.subr.mxu0 0.0
      %844 = vmatpush2.msra.mxu0 0.0
      %845 = vmatprep.subr.mxu0 0.0
      %846 = vmatpush2.msra.mxu0 0.0
      %847 = vmatprep.subr.mxu0 0.0
      %848 = vmatpush2.msra.mxu0 0.0
      %849 = vmatprep.subr.mxu0 0.0
      %850 = vmatpush2.msra.mxu0 0.0
      %851 = vmatprep.subr.mxu0 0.0
      %852 = vmatpush2.msra.mxu0 0.0
      %853 = vmatprep.subr.mxu0 0.0
      %854 = vmatpush2.msra.mxu0 0.0
      %855 = vmatprep.subr.mxu0 0.0
      %856 = vmatpush2.msra.mxu0 0.0
      %857 = vmatprep.subr.mxu0 0.0
      %858 = vmatpush2.msra.mxu0 0.0
      %859 = vmatprep.subr.mxu0 0.0
      %860 = vmatpush2.msra.mxu0 0.0
      %861 = vmatprep.subr.mxu0 0.0
      %862 = vmatpush2.msra.mxu0 0.0
      %863 = vmatprep.subr.mxu0 0.0
      %864 = vmatpush2.msra.mxu0 0.0
      %865 = vmatprep.subr.mxu0 0.0
      %866 = vmatpush2.msra.mxu0 0.0
      %867 = vmatprep.subr.mxu0 0.0
      %868 = vmatpush2.msra.mxu0 0.0
      %869 = vmatprep.subr.mxu0 0.0
      %870 = vmatpush2.msra.mxu0 0.0
      %871 = vmatprep.subr.mxu0 0.0
      %872 = vmatpush2.msra.mxu0 0.0
      %873 = vmatprep.mubr.f32.mxu0 0.0
      %874 = vmatmul.mubr.f32.gmra.mxu0 %v650
      %v875 = vpop.f32.mrf.mxu0
      %v876 = vadd.f32 0.0, %v875
      %v877 = vpop.f32.mrf.mxu0
      %878 = vmatprep.mubr.f32.mxu0 0.0
      %879 = vmatmul.mubr.f32.gmra.mxu0 %v653
      %v880 = vpop.f32.mrf.mxu0
      %v881 = vadd.f32 0.0, %v880
      %v882 = vpop.f32.mrf.mxu0
      %883 = vdwg.mxu0
      %v884 = vadd.f32 %v629, %v722
      %v885 = vadd.f32 %v629, %v724
      %v886 = vadd.f32 %v629, %v799
      %v887 = vadd.f32 %v629, %v801
      %v888 = vadd.f32 %v629, %v876
      %v889 = vadd.f32 %v634, %v728
      %v890 = vadd.f32 %v634, %v730
      %v891 = vadd.f32 %v634, %v805
      %v892 = vadd.f32 %v634, %v807
      %v893 = vadd.f32 %v634, %v881
      %v894 = vld [vmem:[#allocation2] sm:$0xff]
      %v895 = vld [vmem:[#allocation2 + $0x8] sm:$0xff]
      %v896 = vld [vmem:[#allocation2 + $0x10] sm:$0xff]
      %v897 = vld [vmem:[#allocation2 + $0x18] sm:$0xff]
      %v898 = vld [vmem:[#allocation2 + $0x20] sm:$0xff]
      %v899 = vld [vmem:[#allocation2 + $0x28] sm:$0xff]
      %v900 = vld [vmem:[#allocation2 + $0x30] sm:$0xff]
      %v901 = vld [vmem:[#allocation2 + $0x38] sm:$0xff]
      %v902 = vld [vmem:[#allocation2 + $0x40] sm:$0xff]
      %v903 = vld [vmem:[#allocation2 + $0x48] sm:$0xff]
      %v904 = vld [vmem:[#allocation2 + $0x50] sm:$0xff]
      %v905 = vld [vmem:[#allocation2 + $0x58] sm:$0xff]
      %v906 = vld [vmem:[%s3 + $0x10] sm:$0xff]
      %v907 = vld [vmem:[%s3 + $0x18] sm:$0xff]
      %920 = vrot.lane.b32.xlu0 %v894, 127
      %v921 = vpop.permute.xlu0 %920
      %922 = vrot.lane.b32.xlu0 %v895, 127
      %v923 = vpop.permute.xlu0 %922
      %924 = vrot.lane.b32.xlu0 %v896, 127
      %v925 = vpop.permute.xlu0 %924
      %926 = vrot.lane.b32.xlu0 %v897, 127
      %v927 = vpop.permute.xlu0 %926
      %928 = vrot.lane.b32.xlu0 %v898, 127
      %v929 = vpop.permute.xlu0 %928
      %930 = vrot.lane.b32.xlu0 %v899, 127
      %v931 = vpop.permute.xlu0 %930
      %932 = vrot.lane.b32.xlu0 %v900, 127
      %v933 = vpop.permute.xlu0 %932
      %934 = vrot.lane.b32.xlu0 %v901, 127
      %v935 = vpop.permute.xlu0 %934
      %936 = vrot.lane.b32.xlu0 %v902, 127
      %v937 = vpop.permute.xlu0 %936
      %938 = vrot.lane.b32.xlu0 %v903, 127
      %v939 = vpop.permute.xlu0 %938
      %940 = vrot.lane.b32.xlu0 %v904, 127
      %v941 = vpop.permute.xlu0 %940
      %942 = vrot.lane.b32.xlu0 %v905, 127
      %v943 = vpop.permute.xlu0 %942
      %vm944 = vcmask 1039360
      %v945 = vsel %vm944, %v921, %v923
      %v946 = vsel %vm944, %v923, %v925
      %v947 = vsel %vm944, %v925, %v927
      %v948 = vsel %vm944, %v927, %v929
      %v949 = vsel %vm944, %v929, %v931
      %v950 = vsel %vm944, %v933, %v935
      %v951 = vsel %vm944, %v935, %v937
      %v952 = vsel %vm944, %v937, %v939
      %v953 = vsel %vm944, %v939, %v941
      %v954 = vsel %vm944, %v941, %v943
      %v966 = vsel %vm648, %v906, 0
      %v969 = vsel %vm648, %v907, 0
      %971 = vmatprep.subr.mxu0 0.0
      %972 = vmatpush1.msra.mxu0 0.0
      %973 = vmatprep.subr.mxu0 0.0
      %974 = vmatpush1.msra.mxu0 0.0
      %975 = vmatprep.subr.mxu0 0.0
      %976 = vmatpush1.msra.mxu0 0.0
      %977 = vmatprep.subr.mxu0 0.0
      %978 = vmatpush1.msra.mxu0 0.0
      %979 = vmatprep.subr.mxu0 0.0
      %980 = vmatpush1.msra.mxu0 0.0
      %981 = vmatprep.subr.mxu0 0.0
      %982 = vmatpush1.msra.mxu0 0.0
      %983 = vmatprep.subr.mxu0 0.0
      %984 = vmatpush1.msra.mxu0 0.0
      %985 = vmatprep.subr.mxu0 0.0
      %986 = vmatpush1.msra.mxu0 0.0
      %987 = vmatprep.subr.mxu0 0.0
      %988 = vmatpush1.msra.mxu0 0.0
      %989 = vmatprep.subr.mxu0 0.0
      %990 = vmatpush1.msra.mxu0 0.0
      %991 = vmatprep.subr.mxu0 0.0
      %992 = vmatpush1.msra.mxu0 0.0
      %993 = vmatprep.subr.mxu0 0.0
      %994 = vmatpush1.msra.mxu0 0.0
      %995 = vmatprep.subr.mxu0 0.0
      %996 = vmatpush1.msra.mxu0 0.0
      %997 = vmatprep.subr.mxu0 0.0
      %998 = vmatpush1.msra.mxu0 0.0
      %999 = vmatprep.subr.mxu0 %v951
      %1000 = vmatpush1.msra.mxu0 %v950
      %1001 = vmatprep.subr.mxu0 %v946
      %1002 = vmatpush1.msra.mxu0 %v945
      %1003 = vmatprep.subr.mxu0 0.0
      %1004 = vmatpush2.msra.mxu0 0.0
      %1005 = vmatprep.subr.mxu0 0.0
      %1006 = vmatpush2.msra.mxu0 0.0
      %1007 = vmatprep.subr.mxu0 0.0
      %1008 = vmatpush2.msra.mxu0 0.0
      %1009 = vmatprep.subr.mxu0 0.0
      %1010 = vmatpush2.msra.mxu0 0.0
      %1011 = vmatprep.subr.mxu0 0.0
      %1012 = vmatpush2.msra.mxu0 0.0
      %1013 = vmatprep.subr.mxu0 0.0
      %1014 = vmatpush2.msra.mxu0 0.0
      %1015 = vmatprep.subr.mxu0 0.0
      %1016 = vmatpush2.msra.mxu0 0.0
      %1017 = vmatprep.subr.mxu0 0.0
      %1018 = vmatpush2.msra.mxu0 0.0
      %1019 = vmatprep.subr.mxu0 0.0
      %1020 = vmatpush2.msra.mxu0 0.0
      %1021 = vmatprep.subr.mxu0 0.0
      %1022 = vmatpush2.msra.mxu0 0.0
      %1023 = vmatprep.subr.mxu0 0.0
      %1024 = vmatpush2.msra.mxu0 0.0
      %1025 = vmatprep.subr.mxu0 0.0
      %1026 = vmatpush2.msra.mxu0 0.0
      %1027 = vmatprep.subr.mxu0 0.0
      %1028 = vmatpush2.msra.mxu0 0.0
      %1029 = vmatprep.subr.mxu0 0.0
      %1030 = vmatpush2.msra.mxu0 0.0
      %1031 = vmatprep.subr.mxu0 0.0
      %1032 = vmatpush2.msra.mxu0 0.0
      %1033 = vmatprep.subr.mxu0 0.0
      %1034 = vmatpush2.msra.mxu0 0.0
      %1035 = vmatprep.mubr.f32.mxu0 0.0
      %1036 = vmatmul.mubr.f32.gmra.mxu0 %v966
      %v1037 = vpop.f32.mrf.mxu0
      %v1038 = vadd.f32 0.0, %v1037
      %v1039 = vpop.f32.mrf.mxu0
      %v1040 = vadd.f32 0.0, %v1039
      %1041 = vmatprep.mubr.f32.mxu0 0.0
      %1042 = vmatmul.mubr.f32.gmra.mxu0 %v969
      %v1043 = vpop.f32.mrf.mxu0
      %v1044 = vadd.f32 0.0, %v1043
      %v1045 = vpop.f32.mrf.mxu0
      %v1046 = vadd.f32 0.0, %v1045
      %1047 = vdwg.mxu0
      %1048 = vmatprep.subr.mxu0 0.0
      %1049 = vmatpush1.msra.mxu0 0.0
      %1050 = vmatprep.subr.mxu0 0.0
      %1051 = vmatpush1.msra.mxu0 0.0
      %1052 = vmatprep.subr.mxu0 0.0
      %1053 = vmatpush1.msra.mxu0 0.0
      %1054 = vmatprep.subr.mxu0 0.0
      %1055 = vmatpush1.msra.mxu0 0.0
      %1056 = vmatprep.subr.mxu0 0.0
      %1057 = vmatpush1.msra.mxu0 0.0
      %1058 = vmatprep.subr.mxu0 0.0
      %1059 = vmatpush1.msra.mxu0 0.0
      %1060 = vmatprep.subr.mxu0 0.0
      %1061 = vmatpush1.msra.mxu0 0.0
      %1062 = vmatprep.subr.mxu0 0.0
      %1063 = vmatpush1.msra.mxu0 0.0
      %1064 = vmatprep.subr.mxu0 0.0
      %1065 = vmatpush1.msra.mxu0 0.0
      %1066 = vmatprep.subr.mxu0 0.0
      %1067 = vmatpush1.msra.mxu0 0.0
      %1068 = vmatprep.subr.mxu0 0.0
      %1069 = vmatpush1.msra.mxu0 0.0
      %1070 = vmatprep.subr.mxu0 0.0
      %1071 = vmatpush1.msra.mxu0 0.0
      %1072 = vmatprep.subr.mxu0 0.0
      %1073 = vmatpush1.msra.mxu0 0.0
      %1074 = vmatprep.subr.mxu0 0.0
      %1075 = vmatpush1.msra.mxu0 0.0
      %1076 = vmatprep.subr.mxu0 %v953
      %1077 = vmatpush1.msra.mxu0 %v952
      %1078 = vmatprep.subr.mxu0 %v948
      %1079 = vmatpush1.msra.mxu0 %v947
      %1080 = vmatprep.subr.mxu0 0.0
      %1081 = vmatpush2.msra.mxu0 0.0
      %1082 = vmatprep.subr.mxu0 0.0
      %1083 = vmatpush2.msra.mxu0 0.0
      %1084 = vmatprep.subr.mxu0 0.0
      %1085 = vmatpush2.msra.mxu0 0.0
      %1086 = vmatprep.subr.mxu0 0.0
      %1087 = vmatpush2.msra.mxu0 0.0
      %1088 = vmatprep.subr.mxu0 0.0
      %1089 = vmatpush2.msra.mxu0 0.0
      %1090 = vmatprep.subr.mxu0 0.0
      %1091 = vmatpush2.msra.mxu0 0.0
      %1092 = vmatprep.subr.mxu0 0.0
      %1093 = vmatpush2.msra.mxu0 0.0
      %1094 = vmatprep.subr.mxu0 0.0
      %1095 = vmatpush2.msra.mxu0 0.0
      %1096 = vmatprep.subr.mxu0 0.0
      %1097 = vmatpush2.msra.mxu0 0.0
      %1098 = vmatprep.subr.mxu0 0.0
      %1099 = vmatpush2.msra.mxu0 0.0
      %1100 = vmatprep.subr.mxu0 0.0
      %1101 = vmatpush2.msra.mxu0 0.0
      %1102 = vmatprep.subr.mxu0 0.0
      %1103 = vmatpush2.msra.mxu0 0.0
      %1104 = vmatprep.subr.mxu0 0.0
      %1105 = vmatpush2.msra.mxu0 0.0
      %1106 = vmatprep.subr.mxu0 0.0
      %1107 = vmatpush2.msra.mxu0 0.0
      %1108 = vmatprep.subr.mxu0 0.0
      %1109 = vmatpush2.msra.mxu0 0.0
      %1110 = vmatprep.subr.mxu0 0.0
      %1111 = vmatpush2.msra.mxu0 0.0
      %1112 = vmatprep.mubr.f32.mxu0 0.0
      %1113 = vmatmul.mubr.f32.gmra.mxu0 %v966
      %v1114 = vpop.f32.mrf.mxu0
      %v1115 = vadd.f32 0.0, %v1114
      %v1116 = vpop.f32.mrf.mxu0
      %v1117 = vadd.f32 0.0, %v1116
      %1118 = vmatprep.mubr.f32.mxu0 0.0
      %1119 = vmatmul.mubr.f32.gmra.mxu0 %v969
      %v1120 = vpop.f32.mrf.mxu0
      %v1121 = vadd.f32 0.0, %v1120
      %v1122 = vpop.f32.mrf.mxu0
      %v1123 = vadd.f32 0.0, %v1122
      %1124 = vdwg.mxu0
      %1125 = vmatprep.subr.mxu0 0.0
      %1126 = vmatpush1.msra.mxu0 0.0
      %1127 = vmatprep.subr.mxu0 0.0
      %1128 = vmatpush1.msra.mxu0 0.0
      %1129 = vmatprep.subr.mxu0 0.0
      %1130 = vmatpush1.msra.mxu0 0.0
      %1131 = vmatprep.subr.mxu0 0.0
      %1132 = vmatpush1.msra.mxu0 0.0
      %1133 = vmatprep.subr.mxu0 0.0
      %1134 = vmatpush1.msra.mxu0 0.0
      %1135 = vmatprep.subr.mxu0 0.0
      %1136 = vmatpush1.msra.mxu0 0.0
      %1137 = vmatprep.subr.mxu0 0.0
      %1138 = vmatpush1.msra.mxu0 0.0
      %1139 = vmatprep.subr.mxu0 0.0
      %1140 = vmatpush1.msra.mxu0 0.0
      %1141 = vmatprep.subr.mxu0 0.0
      %1142 = vmatpush1.msra.mxu0 0.0
      %1143 = vmatprep.subr.mxu0 0.0
      %1144 = vmatpush1.msra.mxu0 0.0
      %1145 = vmatprep.subr.mxu0 0.0
      %1146 = vmatpush1.msra.mxu0 0.0
      %1147 = vmatprep.subr.mxu0 0.0
      %1148 = vmatpush1.msra.mxu0 0.0
      %1149 = vmatprep.subr.mxu0 0.0
      %1150 = vmatpush1.msra.mxu0 0.0
      %1151 = vmatprep.subr.mxu0 0.0
      %1152 = vmatpush1.msra.mxu0 0.0
      %1153 = vmatprep.subr.mxu0 0.0
      %1154 = vmatpush1.msra.mxu0 %v954
      %1155 = vmatprep.subr.mxu0 0.0
      %1156 = vmatpush1.msra.mxu0 %v949
      %1157 = vmatprep.subr.mxu0 0.0
      %1158 = vmatpush2.msra.mxu0 0.0
      %1159 = vmatprep.subr.mxu0 0.0
      %1160 = vmatpush2.msra.mxu0 0.0
      %1161 = vmatprep.subr.mxu0 0.0
      %1162 = vmatpush2.msra.mxu0 0.0
      %1163 = vmatprep.subr.mxu0 0.0
      %1164 = vmatpush2.msra.mxu0 0.0
      %1165 = vmatprep.subr.mxu0 0.0
      %1166 = vmatpush2.msra.mxu0 0.0
      %1167 = vmatprep.subr.mxu0 0.0
      %1168 = vmatpush2.msra.mxu0 0.0
      %1169 = vmatprep.subr.mxu0 0.0
      %1170 = vmatpush2.msra.mxu0 0.0
      %1171 = vmatprep.subr.mxu0 0.0
      %1172 = vmatpush2.msra.mxu0 0.0
      %1173 = vmatprep.subr.mxu0 0.0
      %1174 = vmatpush2.msra.mxu0 0.0
      %1175 = vmatprep.subr.mxu0 0.0
      %1176 = vmatpush2.msra.mxu0 0.0
      %1177 = vmatprep.subr.mxu0 0.0
      %1178 = vmatpush2.msra.mxu0 0.0
      %1179 = vmatprep.subr.mxu0 0.0
      %1180 = vmatpush2.msra.mxu0 0.0
      %1181 = vmatprep.subr.mxu0 0.0
      %1182 = vmatpush2.msra.mxu0 0.0
      %1183 = vmatprep.subr.mxu0 0.0
      %1184 = vmatpush2.msra.mxu0 0.0
      %1185 = vmatprep.subr.mxu0 0.0
      %1186 = vmatpush2.msra.mxu0 0.0
      %1187 = vmatprep.subr.mxu0 0.0
      %1188 = vmatpush2.msra.mxu0 0.0
      %1189 = vmatprep.mubr.f32.mxu0 0.0
      %1190 = vmatmul.mubr.f32.gmra.mxu0 %v966
      %v1191 = vpop.f32.mrf.mxu0
      %v1192 = vadd.f32 0.0, %v1191
      %v1193 = vpop.f32.mrf.mxu0
      %1194 = vmatprep.mubr.f32.mxu0 0.0
      %1195 = vmatmul.mubr.f32.gmra.mxu0 %v969
      %v1196 = vpop.f32.mrf.mxu0
      %v1197 = vadd.f32 0.0, %v1196
      %v1198 = vpop.f32.mrf.mxu0
      %1199 = vdwg.mxu0
      %v1200 = vadd.f32 %v884, %v1038
      %v1201 = vadd.f32 %v885, %v1040
      %v1202 = vadd.f32 %v886, %v1115
      %v1203 = vadd.f32 %v887, %v1117
      %v1204 = vadd.f32 %v888, %v1192
      %v1205 = vadd.f32 %v889, %v1044
      %v1206 = vadd.f32 %v890, %v1046
      %v1207 = vadd.f32 %v891, %v1121
      %v1208 = vadd.f32 %v892, %v1123
      %v1209 = vadd.f32 %v893, %v1197
      %v1210 = vld [vmem:[%s3 + $0x20] sm:$0xff]
      %v1211 = vld [vmem:[%s3 + $0x28] sm:$0xff]
      %1212 = vrot.lane.b32.xlu0 %v894, 126
      %v1213 = vpop.permute.xlu0 %1212
      %1214 = vrot.lane.b32.xlu0 %v895, 126
      %v1215 = vpop.permute.xlu0 %1214
      %1216 = vrot.lane.b32.xlu0 %v896, 126
      %v1217 = vpop.permute.xlu0 %1216
      %1218 = vrot.lane.b32.xlu0 %v897, 126
      %v1219 = vpop.permute.xlu0 %1218
      %1220 = vrot.lane.b32.xlu0 %v898, 126
      %v1221 = vpop.permute.xlu0 %1220
      %1222 = vrot.lane.b32.xlu0 %v899, 126
      %v1223 = vpop.permute.xlu0 %1222
      %1224 = vrot.lane.b32.xlu0 %v900, 126
      %v1225 = vpop.permute.xlu0 %1224
      %1226 = vrot.lane.b32.xlu0 %v901, 126
      %v1227 = vpop.permute.xlu0 %1226
      %1228 = vrot.lane.b32.xlu0 %v902, 126
      %v1229 = vpop.permute.xlu0 %1228
      %1230 = vrot.lane.b32.xlu0 %v903, 126
      %v1231 = vpop.permute.xlu0 %1230
      %1232 = vrot.lane.b32.xlu0 %v904, 126
      %v1233 = vpop.permute.xlu0 %1232
      %1234 = vrot.lane.b32.xlu0 %v905, 126
      %v1235 = vpop.permute.xlu0 %1234
      %vm1236 = vcmask 1031168
      %v1237 = vsel %vm1236, %v1213, %v1215
      %v1238 = vsel %vm1236, %v1215, %v1217
      %v1239 = vsel %vm1236, %v1217, %v1219
      %v1240 = vsel %vm1236, %v1219, %v1221
      %v1241 = vsel %vm1236, %v1221, %v1223
      %v1242 = vsel %vm1236, %v1225, %v1227
      %v1243 = vsel %vm1236, %v1227, %v1229
      %v1244 = vsel %vm1236, %v1229, %v1231
      %v1245 = vsel %vm1236, %v1231, %v1233
      %v1246 = vsel %vm1236, %v1233, %v1235
      %v1258 = vsel %vm648, %v1210, 0
      %v1261 = vsel %vm648, %v1211, 0
      %1263 = vmatprep.subr.mxu0 0.0
      %1264 = vmatpush1.msra.mxu0 0.0
      %1265 = vmatprep.subr.mxu0 0.0
      %1266 = vmatpush1.msra.mxu0 0.0
      %1267 = vmatprep.subr.mxu0 0.0
      %1268 = vmatpush1.msra.mxu0 0.0
      %1269 = vmatprep.subr.mxu0 0.0
      %1270 = vmatpush1.msra.mxu0 0.0
      %1271 = vmatprep.subr.mxu0 0.0
      %1272 = vmatpush1.msra.mxu0 0.0
      %1273 = vmatprep.subr.mxu0 0.0
      %1274 = vmatpush1.msra.mxu0 0.0
      %1275 = vmatprep.subr.mxu0 0.0
      %1276 = vmatpush1.msra.mxu0 0.0
      %1277 = vmatprep.subr.mxu0 0.0
      %1278 = vmatpush1.msra.mxu0 0.0
      %1279 = vmatprep.subr.mxu0 0.0
      %1280 = vmatpush1.msra.mxu0 0.0
      %1281 = vmatprep.subr.mxu0 0.0
      %1282 = vmatpush1.msra.mxu0 0.0
      %1283 = vmatprep.subr.mxu0 0.0
      %1284 = vmatpush1.msra.mxu0 0.0
      %1285 = vmatprep.subr.mxu0 0.0
      %1286 = vmatpush1.msra.mxu0 0.0
      %1287 = vmatprep.subr.mxu0 0.0
      %1288 = vmatpush1.msra.mxu0 0.0
      %1289 = vmatprep.subr.mxu0 0.0
      %1290 = vmatpush1.msra.mxu0 0.0
      %1291 = vmatprep.subr.mxu0 %v1243
      %1292 = vmatpush1.msra.mxu0 %v1242
      %1293 = vmatprep.subr.mxu0 %v1238
      %1294 = vmatpush1.msra.mxu0 %v1237
      %1295 = vmatprep.subr.mxu0 0.0
      %1296 = vmatpush2.msra.mxu0 0.0
      %1297 = vmatprep.subr.mxu0 0.0
      %1298 = vmatpush2.msra.mxu0 0.0
      %1299 = vmatprep.subr.mxu0 0.0
      %1300 = vmatpush2.msra.mxu0 0.0
      %1301 = vmatprep.subr.mxu0 0.0
      %1302 = vmatpush2.msra.mxu0 0.0
      %1303 = vmatprep.subr.mxu0 0.0
      %1304 = vmatpush2.msra.mxu0 0.0
      %1305 = vmatprep.subr.mxu0 0.0
      %1306 = vmatpush2.msra.mxu0 0.0
      %1307 = vmatprep.subr.mxu0 0.0
      %1308 = vmatpush2.msra.mxu0 0.0
      %1309 = vmatprep.subr.mxu0 0.0
      %1310 = vmatpush2.msra.mxu0 0.0
      %1311 = vmatprep.subr.mxu0 0.0
      %1312 = vmatpush2.msra.mxu0 0.0
      %1313 = vmatprep.subr.mxu0 0.0
      %1314 = vmatpush2.msra.mxu0 0.0
      %1315 = vmatprep.subr.mxu0 0.0
      %1316 = vmatpush2.msra.mxu0 0.0
      %1317 = vmatprep.subr.mxu0 0.0
      %1318 = vmatpush2.msra.mxu0 0.0
      %1319 = vmatprep.subr.mxu0 0.0
      %1320 = vmatpush2.msra.mxu0 0.0
      %1321 = vmatprep.subr.mxu0 0.0
      %1322 = vmatpush2.msra.mxu0 0.0
      %1323 = vmatprep.subr.mxu0 0.0
      %1324 = vmatpush2.msra.mxu0 0.0
      %1325 = vmatprep.subr.mxu0 0.0
      %1326 = vmatpush2.msra.mxu0 0.0
      %1327 = vmatprep.mubr.f32.mxu0 0.0
      %1328 = vmatmul.mubr.f32.gmra.mxu0 %v1258
      %v1329 = vpop.f32.mrf.mxu0
      %v1330 = vadd.f32 0.0, %v1329
      %v1331 = vpop.f32.mrf.mxu0
      %v1332 = vadd.f32 0.0, %v1331
      %1333 = vmatprep.mubr.f32.mxu0 0.0
      %1334 = vmatmul.mubr.f32.gmra.mxu0 %v1261
      %v1335 = vpop.f32.mrf.mxu0
      %v1336 = vadd.f32 0.0, %v1335
      %v1337 = vpop.f32.mrf.mxu0
      %v1338 = vadd.f32 0.0, %v1337
      %1339 = vdwg.mxu0
      %1340 = vmatprep.subr.mxu0 0.0
      %1341 = vmatpush1.msra.mxu0 0.0
      %1342 = vmatprep.subr.mxu0 0.0
      %1343 = vmatpush1.msra.mxu0 0.0
      %1344 = vmatprep.subr.mxu0 0.0
      %1345 = vmatpush1.msra.mxu0 0.0
      %1346 = vmatprep.subr.mxu0 0.0
      %1347 = vmatpush1.msra.mxu0 0.0
      %1348 = vmatprep.subr.mxu0 0.0
      %1349 = vmatpush1.msra.mxu0 0.0
      %1350 = vmatprep.subr.mxu0 0.0
      %1351 = vmatpush1.msra.mxu0 0.0
      %1352 = vmatprep.subr.mxu0 0.0
      %1353 = vmatpush1.msra.mxu0 0.0
      %1354 = vmatprep.subr.mxu0 0.0
      %1355 = vmatpush1.msra.mxu0 0.0
      %1356 = vmatprep.subr.mxu0 0.0
      %1357 = vmatpush1.msra.mxu0 0.0
      %1358 = vmatprep.subr.mxu0 0.0
      %1359 = vmatpush1.msra.mxu0 0.0
      %1360 = vmatprep.subr.mxu0 0.0
      %1361 = vmatpush1.msra.mxu0 0.0
      %1362 = vmatprep.subr.mxu0 0.0
      %1363 = vmatpush1.msra.mxu0 0.0
      %1364 = vmatprep.subr.mxu0 0.0
      %1365 = vmatpush1.msra.mxu0 0.0
      %1366 = vmatprep.subr.mxu0 0.0
      %1367 = vmatpush1.msra.mxu0 0.0
      %1368 = vmatprep.subr.mxu0 %v1245
      %1369 = vmatpush1.msra.mxu0 %v1244
      %1370 = vmatprep.subr.mxu0 %v1240
      %1371 = vmatpush1.msra.mxu0 %v1239
      %1372 = vmatprep.subr.mxu0 0.0
      %1373 = vmatpush2.msra.mxu0 0.0
      %1374 = vmatprep.subr.mxu0 0.0
      %1375 = vmatpush2.msra.mxu0 0.0
      %1376 = vmatprep.subr.mxu0 0.0
      %1377 = vmatpush2.msra.mxu0 0.0
      %1378 = vmatprep.subr.mxu0 0.0
      %1379 = vmatpush2.msra.mxu0 0.0
      %1380 = vmatprep.subr.mxu0 0.0
      %1381 = vmatpush2.msra.mxu0 0.0
      %1382 = vmatprep.subr.mxu0 0.0
      %1383 = vmatpush2.msra.mxu0 0.0
      %1384 = vmatprep.subr.mxu0 0.0
      %1385 = vmatpush2.msra.mxu0 0.0
      %1386 = vmatprep.subr.mxu0 0.0
      %1387 = vmatpush2.msra.mxu0 0.0
      %1388 = vmatprep.subr.mxu0 0.0
      %1389 = vmatpush2.msra.mxu0 0.0
      %1390 = vmatprep.subr.mxu0 0.0
      %1391 = vmatpush2.msra.mxu0 0.0
      %1392 = vmatprep.subr.mxu0 0.0
      %1393 = vmatpush2.msra.mxu0 0.0
      %1394 = vmatprep.subr.mxu0 0.0
      %1395 = vmatpush2.msra.mxu0 0.0
      %1396 = vmatprep.subr.mxu0 0.0
      %1397 = vmatpush2.msra.mxu0 0.0
      %1398 = vmatprep.subr.mxu0 0.0
      %1399 = vmatpush2.msra.mxu0 0.0
      %1400 = vmatprep.subr.mxu0 0.0
      %1401 = vmatpush2.msra.mxu0 0.0
      %1402 = vmatprep.subr.mxu0 0.0
      %1403 = vmatpush2.msra.mxu0 0.0
      %1404 = vmatprep.mubr.f32.mxu0 0.0
      %1405 = vmatmul.mubr.f32.gmra.mxu0 %v1258
      %v1406 = vpop.f32.mrf.mxu0
      %v1407 = vadd.f32 0.0, %v1406
      %v1408 = vpop.f32.mrf.mxu0
      %v1409 = vadd.f32 0.0, %v1408
      %1410 = vmatprep.mubr.f32.mxu0 0.0
      %1411 = vmatmul.mubr.f32.gmra.mxu0 %v1261
      %v1412 = vpop.f32.mrf.mxu0
      %v1413 = vadd.f32 0.0, %v1412
      %v1414 = vpop.f32.mrf.mxu0
      %v1415 = vadd.f32 0.0, %v1414
      %1416 = vdwg.mxu0
      %1417 = vmatprep.subr.mxu0 0.0
      %1418 = vmatpush1.msra.mxu0 0.0
      %1419 = vmatprep.subr.mxu0 0.0
      %1420 = vmatpush1.msra.mxu0 0.0
      %1421 = vmatprep.subr.mxu0 0.0
      %1422 = vmatpush1.msra.mxu0 0.0
      %1423 = vmatprep.subr.mxu0 0.0
      %1424 = vmatpush1.msra.mxu0 0.0
      %1425 = vmatprep.subr.mxu0 0.0
      %1426 = vmatpush1.msra.mxu0 0.0
      %1427 = vmatprep.subr.mxu0 0.0
      %1428 = vmatpush1.msra.mxu0 0.0
      %1429 = vmatprep.subr.mxu0 0.0
      %1430 = vmatpush1.msra.mxu0 0.0
      %1431 = vmatprep.subr.mxu0 0.0
      %1432 = vmatpush1.msra.mxu0 0.0
      %1433 = vmatprep.subr.mxu0 0.0
      %1434 = vmatpush1.msra.mxu0 0.0
      %1435 = vmatprep.subr.mxu0 0.0
      %1436 = vmatpush1.msra.mxu0 0.0
      %1437 = vmatprep.subr.mxu0 0.0
      %1438 = vmatpush1.msra.mxu0 0.0
      %1439 = vmatprep.subr.mxu0 0.0
      %1440 = vmatpush1.msra.mxu0 0.0
      %1441 = vmatprep.subr.mxu0 0.0
      %1442 = vmatpush1.msra.mxu0 0.0
      %1443 = vmatprep.subr.mxu0 0.0
      %1444 = vmatpush1.msra.mxu0 0.0
      %1445 = vmatprep.subr.mxu0 0.0
      %1446 = vmatpush1.msra.mxu0 %v1246
      %1447 = vmatprep.subr.mxu0 0.0
      %1448 = vmatpush1.msra.mxu0 %v1241
      %1449 = vmatprep.subr.mxu0 0.0
      %1450 = vmatpush2.msra.mxu0 0.0
      %1451 = vmatprep.subr.mxu0 0.0
      %1452 = vmatpush2.msra.mxu0 0.0
      %1453 = vmatprep.subr.mxu0 0.0
      %1454 = vmatpush2.msra.mxu0 0.0
      %1455 = vmatprep.subr.mxu0 0.0
      %1456 = vmatpush2.msra.mxu0 0.0
      %1457 = vmatprep.subr.mxu0 0.0
      %1458 = vmatpush2.msra.mxu0 0.0
      %1459 = vmatprep.subr.mxu0 0.0
      %1460 = vmatpush2.msra.mxu0 0.0
      %1461 = vmatprep.subr.mxu0 0.0
      %1462 = vmatpush2.msra.mxu0 0.0
      %1463 = vmatprep.subr.mxu0 0.0
      %1464 = vmatpush2.msra.mxu0 0.0
      %1465 = vmatprep.subr.mxu0 0.0
      %1466 = vmatpush2.msra.mxu0 0.0
      %1467 = vmatprep.subr.mxu0 0.0
      %1468 = vmatpush2.msra.mxu0 0.0
      %1469 = vmatprep.subr.mxu0 0.0
      %1470 = vmatpush2.msra.mxu0 0.0
      %1471 = vmatprep.subr.mxu0 0.0
      %1472 = vmatpush2.msra.mxu0 0.0
      %1473 = vmatprep.subr.mxu0 0.0
      %1474 = vmatpush2.msra.mxu0 0.0
      %1475 = vmatprep.subr.mxu0 0.0
      %1476 = vmatpush2.msra.mxu0 0.0
      %1477 = vmatprep.subr.mxu0 0.0
      %1478 = vmatpush2.msra.mxu0 0.0
      %1479 = vmatprep.subr.mxu0 0.0
      %1480 = vmatpush2.msra.mxu0 0.0
      %1481 = vmatprep.mubr.f32.mxu0 0.0
      %1482 = vmatmul.mubr.f32.gmra.mxu0 %v1258
      %v1483 = vpop.f32.mrf.mxu0
      %v1484 = vadd.f32 0.0, %v1483
      %v1485 = vpop.f32.mrf.mxu0
      %1486 = vmatprep.mubr.f32.mxu0 0.0
      %1487 = vmatmul.mubr.f32.gmra.mxu0 %v1261
      %v1488 = vpop.f32.mrf.mxu0
      %v1489 = vadd.f32 0.0, %v1488
      %v1490 = vpop.f32.mrf.mxu0
      %1491 = vdwg.mxu0
      %v1492 = vadd.f32 %v1200, %v1330
      %v1493 = vadd.f32 %v1201, %v1332
      %v1494 = vadd.f32 %v1202, %v1407
      %v1495 = vadd.f32 %v1203, %v1409
      %v1496 = vadd.f32 %v1204, %v1484
      %v1497 = vadd.f32 %v1205, %v1336
      %v1498 = vadd.f32 %v1206, %v1338
      %v1499 = vadd.f32 %v1207, %v1413
      %v1500 = vadd.f32 %v1208, %v1415
      %v1501 = vadd.f32 %v1209, %v1489
      %v1502 = vld [vmem:[%s3 + $0x30] sm:$0xff]
      %v1503 = vld [vmem:[%s3 + $0x38] sm:$0xff]
      %1504 = vrot.lane.b32.xlu0 %v894, 96
      %v1505 = vpop.permute.xlu0 %1504
      %1506 = vrot.lane.b32.xlu0 %v895, 96
      %v1507 = vpop.permute.xlu0 %1506
      %1508 = vrot.lane.b32.xlu0 %v896, 96
      %v1509 = vpop.permute.xlu0 %1508
      %1510 = vrot.lane.b32.xlu0 %v897, 96
      %v1511 = vpop.permute.xlu0 %1510
      %1512 = vrot.lane.b32.xlu0 %v898, 96
      %v1513 = vpop.permute.xlu0 %1512
      %1514 = vrot.lane.b32.xlu0 %v899, 96
      %v1515 = vpop.permute.xlu0 %1514
      %1516 = vrot.lane.b32.xlu0 %v900, 96
      %v1517 = vpop.permute.xlu0 %1516
      %1518 = vrot.lane.b32.xlu0 %v901, 96
      %v1519 = vpop.permute.xlu0 %1518
      %1520 = vrot.lane.b32.xlu0 %v902, 96
      %v1521 = vpop.permute.xlu0 %1520
      %1522 = vrot.lane.b32.xlu0 %v903, 96
      %v1523 = vpop.permute.xlu0 %1522
      %1524 = vrot.lane.b32.xlu0 %v904, 96
      %v1525 = vpop.permute.xlu0 %1524
      %1526 = vrot.lane.b32.xlu0 %v905, 96
      %v1527 = vpop.permute.xlu0 %1526
      %vm1528 = vcmask 785408
      %v1529 = vsel %vm1528, %v1505, %v1507
      %v1530 = vsel %vm1528, %v1507, %v1509
      %v1531 = vsel %vm1528, %v1509, %v1511
      %v1532 = vsel %vm1528, %v1511, %v1513
      %v1533 = vsel %vm1528, %v1513, %v1515
      %v1534 = vsel %vm1528, %v1517, %v1519
      %v1535 = vsel %vm1528, %v1519, %v1521
      %v1536 = vsel %vm1528, %v1521, %v1523
      %v1537 = vsel %vm1528, %v1523, %v1525
      %v1538 = vsel %vm1528, %v1525, %v1527
      %v1550 = vsel %vm648, %v1502, 0
      %v1553 = vsel %vm648, %v1503, 0
      %1555 = vmatprep.subr.mxu0 0.0
      %1556 = vmatpush1.msra.mxu0 0.0
      %1557 = vmatprep.subr.mxu0 0.0
      %1558 = vmatpush1.msra.mxu0 0.0
      %1559 = vmatprep.subr.mxu0 0.0
      %1560 = vmatpush1.msra.mxu0 0.0
      %1561 = vmatprep.subr.mxu0 0.0
      %1562 = vmatpush1.msra.mxu0 0.0
      %1563 = vmatprep.subr.mxu0 0.0
      %1564 = vmatpush1.msra.mxu0 0.0
      %1565 = vmatprep.subr.mxu0 0.0
      %1566 = vmatpush1.msra.mxu0 0.0
      %1567 = vmatprep.subr.mxu0 0.0
      %1568 = vmatpush1.msra.mxu0 0.0
      %1569 = vmatprep.subr.mxu0 0.0
      %1570 = vmatpush1.msra.mxu0 0.0
      %1571 = vmatprep.subr.mxu0 0.0
      %1572 = vmatpush1.msra.mxu0 0.0
      %1573 = vmatprep.subr.mxu0 0.0
      %1574 = vmatpush1.msra.mxu0 0.0
      %1575 = vmatprep.subr.mxu0 0.0
      %1576 = vmatpush1.msra.mxu0 0.0
      %1577 = vmatprep.subr.mxu0 0.0
      %1578 = vmatpush1.msra.mxu0 0.0
      %1579 = vmatprep.subr.mxu0 0.0
      %1580 = vmatpush1.msra.mxu0 0.0
      %1581 = vmatprep.subr.mxu0 0.0
      %1582 = vmatpush1.msra.mxu0 0.0
      %1583 = vmatprep.subr.mxu0 %v1535
      %1584 = vmatpush1.msra.mxu0 %v1534
      %1585 = vmatprep.subr.mxu0 %v1530
      %1586 = vmatpush1.msra.mxu0 %v1529
      %1587 = vmatprep.subr.mxu0 0.0
      %1588 = vmatpush2.msra.mxu0 0.0
      %1589 = vmatprep.subr.mxu0 0.0
      %1590 = vmatpush2.msra.mxu0 0.0
      %1591 = vmatprep.subr.mxu0 0.0
      %1592 = vmatpush2.msra.mxu0 0.0
      %1593 = vmatprep.subr.mxu0 0.0
      %1594 = vmatpush2.msra.mxu0 0.0
      %1595 = vmatprep.subr.mxu0 0.0
      %1596 = vmatpush2.msra.mxu0 0.0
      %1597 = vmatprep.subr.mxu0 0.0
      %1598 = vmatpush2.msra.mxu0 0.0
      %1599 = vmatprep.subr.mxu0 0.0
      %1600 = vmatpush2.msra.mxu0 0.0
      %1601 = vmatprep.subr.mxu0 0.0
      %1602 = vmatpush2.msra.mxu0 0.0
      %1603 = vmatprep.subr.mxu0 0.0
      %1604 = vmatpush2.msra.mxu0 0.0
      %1605 = vmatprep.subr.mxu0 0.0
      %1606 = vmatpush2.msra.mxu0 0.0
      %1607 = vmatprep.subr.mxu0 0.0
      %1608 = vmatpush2.msra.mxu0 0.0
      %1609 = vmatprep.subr.mxu0 0.0
      %1610 = vmatpush2.msra.mxu0 0.0
      %1611 = vmatprep.subr.mxu0 0.0
      %1612 = vmatpush2.msra.mxu0 0.0
      %1613 = vmatprep.subr.mxu0 0.0
      %1614 = vmatpush2.msra.mxu0 0.0
      %1615 = vmatprep.subr.mxu0 0.0
      %1616 = vmatpush2.msra.mxu0 0.0
      %1617 = vmatprep.subr.mxu0 0.0
      %1618 = vmatpush2.msra.mxu0 0.0
      %1619 = vmatprep.mubr.f32.mxu0 0.0
      %1620 = vmatmul.mubr.f32.gmra.mxu0 %v1550
      %v1621 = vpop.f32.mrf.mxu0
      %v1622 = vadd.f32 0.0, %v1621
      %v1623 = vpop.f32.mrf.mxu0
      %v1624 = vadd.f32 0.0, %v1623
      %1625 = vmatprep.mubr.f32.mxu0 0.0
      %1626 = vmatmul.mubr.f32.gmra.mxu0 %v1553
      %v1627 = vpop.f32.mrf.mxu0
      %v1628 = vadd.f32 0.0, %v1627
      %v1629 = vpop.f32.mrf.mxu0
      %v1630 = vadd.f32 0.0, %v1629
      %1631 = vdwg.mxu0
      %1632 = vmatprep.subr.mxu0 0.0
      %1633 = vmatpush1.msra.mxu0 0.0
      %1634 = vmatprep.subr.mxu0 0.0
      %1635 = vmatpush1.msra.mxu0 0.0
      %1636 = vmatprep.subr.mxu0 0.0
      %1637 = vmatpush1.msra.mxu0 0.0
      %1638 = vmatprep.subr.mxu0 0.0
      %1639 = vmatpush1.msra.mxu0 0.0
      %1640 = vmatprep.subr.mxu0 0.0
      %1641 = vmatpush1.msra.mxu0 0.0
      %1642 = vmatprep.subr.mxu0 0.0
      %1643 = vmatpush1.msra.mxu0 0.0
      %1644 = vmatprep.subr.mxu0 0.0
      %1645 = vmatpush1.msra.mxu0 0.0
      %1646 = vmatprep.subr.mxu0 0.0
      %1647 = vmatpush1.msra.mxu0 0.0
      %1648 = vmatprep.subr.mxu0 0.0
      %1649 = vmatpush1.msra.mxu0 0.0
      %1650 = vmatprep.subr.mxu0 0.0
      %1651 = vmatpush1.msra.mxu0 0.0
      %1652 = vmatprep.subr.mxu0 0.0
      %1653 = vmatpush1.msra.mxu0 0.0
      %1654 = vmatprep.subr.mxu0 0.0
      %1655 = vmatpush1.msra.mxu0 0.0
      %1656 = vmatprep.subr.mxu0 0.0
      %1657 = vmatpush1.msra.mxu0 0.0
      %1658 = vmatprep.subr.mxu0 0.0
      %1659 = vmatpush1.msra.mxu0 0.0
      %1660 = vmatprep.subr.mxu0 %v1537
      %1661 = vmatpush1.msra.mxu0 %v1536
      %1662 = vmatprep.subr.mxu0 %v1532
      %1663 = vmatpush1.msra.mxu0 %v1531
      %1664 = vmatprep.subr.mxu0 0.0
      %1665 = vmatpush2.msra.mxu0 0.0
      %1666 = vmatprep.subr.mxu0 0.0
      %1667 = vmatpush2.msra.mxu0 0.0
      %1668 = vmatprep.subr.mxu0 0.0
      %1669 = vmatpush2.msra.mxu0 0.0
      %1670 = vmatprep.subr.mxu0 0.0
      %1671 = vmatpush2.msra.mxu0 0.0
      %1672 = vmatprep.subr.mxu0 0.0
      %1673 = vmatpush2.msra.mxu0 0.0
      %1674 = vmatprep.subr.mxu0 0.0
      %1675 = vmatpush2.msra.mxu0 0.0
      %1676 = vmatprep.subr.mxu0 0.0
      %1677 = vmatpush2.msra.mxu0 0.0
      %1678 = vmatprep.subr.mxu0 0.0
      %1679 = vmatpush2.msra.mxu0 0.0
      %1680 = vmatprep.subr.mxu0 0.0
      %1681 = vmatpush2.msra.mxu0 0.0
      %1682 = vmatprep.subr.mxu0 0.0
      %1683 = vmatpush2.msra.mxu0 0.0
      %1684 = vmatprep.subr.mxu0 0.0
      %1685 = vmatpush2.msra.mxu0 0.0
      %1686 = vmatprep.subr.mxu0 0.0
      %1687 = vmatpush2.msra.mxu0 0.0
      %1688 = vmatprep.subr.mxu0 0.0
      %1689 = vmatpush2.msra.mxu0 0.0
      %1690 = vmatprep.subr.mxu0 0.0
      %1691 = vmatpush2.msra.mxu0 0.0
      %1692 = vmatprep.subr.mxu0 0.0
      %1693 = vmatpush2.msra.mxu0 0.0
      %1694 = vmatprep.subr.mxu0 0.0
      %1695 = vmatpush2.msra.mxu0 0.0
      %1696 = vmatprep.mubr.f32.mxu0 0.0
      %1697 = vmatmul.mubr.f32.gmra.mxu0 %v1550
      %v1698 = vpop.f32.mrf.mxu0
      %v1699 = vadd.f32 0.0, %v1698
      %v1700 = vpop.f32.mrf.mxu0
      %v1701 = vadd.f32 0.0, %v1700
      %1702 = vmatprep.mubr.f32.mxu0 0.0
      %1703 = vmatmul.mubr.f32.gmra.mxu0 %v1553
      %v1704 = vpop.f32.mrf.mxu0
      %v1705 = vadd.f32 0.0, %v1704
      %v1706 = vpop.f32.mrf.mxu0
      %v1707 = vadd.f32 0.0, %v1706
      %1708 = vdwg.mxu0
      %1709 = vmatprep.subr.mxu0 0.0
      %1710 = vmatpush1.msra.mxu0 0.0
      %1711 = vmatprep.subr.mxu0 0.0
      %1712 = vmatpush1.msra.mxu0 0.0
      %1713 = vmatprep.subr.mxu0 0.0
      %1714 = vmatpush1.msra.mxu0 0.0
      %1715 = vmatprep.subr.mxu0 0.0
      %1716 = vmatpush1.msra.mxu0 0.0
      %1717 = vmatprep.subr.mxu0 0.0
      %1718 = vmatpush1.msra.mxu0 0.0
      %1719 = vmatprep.subr.mxu0 0.0
      %1720 = vmatpush1.msra.mxu0 0.0
      %1721 = vmatprep.subr.mxu0 0.0
      %1722 = vmatpush1.msra.mxu0 0.0
      %1723 = vmatprep.subr.mxu0 0.0
      %1724 = vmatpush1.msra.mxu0 0.0
      %1725 = vmatprep.subr.mxu0 0.0
      %1726 = vmatpush1.msra.mxu0 0.0
      %1727 = vmatprep.subr.mxu0 0.0
      %1728 = vmatpush1.msra.mxu0 0.0
      %1729 = vmatprep.subr.mxu0 0.0
      %1730 = vmatpush1.msra.mxu0 0.0
      %1731 = vmatprep.subr.mxu0 0.0
      %1732 = vmatpush1.msra.mxu0 0.0
      %1733 = vmatprep.subr.mxu0 0.0
      %1734 = vmatpush1.msra.mxu0 0.0
      %1735 = vmatprep.subr.mxu0 0.0
      %1736 = vmatpush1.msra.mxu0 0.0
      %1737 = vmatprep.subr.mxu0 0.0
      %1738 = vmatpush1.msra.mxu0 %v1538
      %1739 = vmatprep.subr.mxu0 0.0
      %1740 = vmatpush1.msra.mxu0 %v1533
      %1741 = vmatprep.subr.mxu0 0.0
      %1742 = vmatpush2.msra.mxu0 0.0
      %1743 = vmatprep.subr.mxu0 0.0
      %1744 = vmatpush2.msra.mxu0 0.0
      %1745 = vmatprep.subr.mxu0 0.0
      %1746 = vmatpush2.msra.mxu0 0.0
      %1747 = vmatprep.subr.mxu0 0.0
      %1748 = vmatpush2.msra.mxu0 0.0
      %1749 = vmatprep.subr.mxu0 0.0
      %1750 = vmatpush2.msra.mxu0 0.0
      %1751 = vmatprep.subr.mxu0 0.0
      %1752 = vmatpush2.msra.mxu0 0.0
      %1753 = vmatprep.subr.mxu0 0.0
      %1754 = vmatpush2.msra.mxu0 0.0
      %1755 = vmatprep.subr.mxu0 0.0
      %1756 = vmatpush2.msra.mxu0 0.0
      %1757 = vmatprep.subr.mxu0 0.0
      %1758 = vmatpush2.msra.mxu0 0.0
      %1759 = vmatprep.subr.mxu0 0.0
      %1760 = vmatpush2.msra.mxu0 0.0
      %1761 = vmatprep.subr.mxu0 0.0
      %1762 = vmatpush2.msra.mxu0 0.0
      %1763 = vmatprep.subr.mxu0 0.0
      %1764 = vmatpush2.msra.mxu0 0.0
      %1765 = vmatprep.subr.mxu0 0.0
      %1766 = vmatpush2.msra.mxu0 0.0
      %1767 = vmatprep.subr.mxu0 0.0
      %1768 = vmatpush2.msra.mxu0 0.0
      %1769 = vmatprep.subr.mxu0 0.0
      %1770 = vmatpush2.msra.mxu0 0.0
      %1771 = vmatprep.subr.mxu0 0.0
      %1772 = vmatpush2.msra.mxu0 0.0
      %1773 = vmatprep.mubr.f32.mxu0 0.0
      %1774 = vmatmul.mubr.f32.gmra.mxu0 %v1550
      %v1775 = vpop.f32.mrf.mxu0
      %v1776 = vadd.f32 0.0, %v1775
      %v1777 = vpop.f32.mrf.mxu0
      %1778 = vmatprep.mubr.f32.mxu0 0.0
      %1779 = vmatmul.mubr.f32.gmra.mxu0 %v1553
      %v1780 = vpop.f32.mrf.mxu0
      %v1781 = vadd.f32 0.0, %v1780
      %v1782 = vpop.f32.mrf.mxu0
      %1783 = vdwg.mxu0
      %v1784 = vadd.f32 %v1492, %v1622
      %v1785 = vadd.f32 %v1493, %v1624
      %v1786 = vadd.f32 %v1494, %v1699
      %v1787 = vadd.f32 %v1495, %v1701
      %v1788 = vadd.f32 %v1496, %v1776
      %v1789 = vadd.f32 %v1497, %v1628
      %v1790 = vadd.f32 %v1498, %v1630
      %v1791 = vadd.f32 %v1499, %v1705
      %v1792 = vadd.f32 %v1500, %v1707
      %v1793 = vadd.f32 %v1501, %v1781
      %v1794 = vld [vmem:[%s3 + $0x40] sm:$0xff]
      %v1795 = vld [vmem:[%s3 + $0x48] sm:$0xff]
      %1796 = vrot.lane.b32.xlu0 %v894, 95
      %v1797 = vpop.permute.xlu0 %1796
      %1798 = vrot.lane.b32.xlu0 %v895, 95
      %v1799 = vpop.permute.xlu0 %1798
      %1800 = vrot.lane.b32.xlu0 %v896, 95
      %v1801 = vpop.permute.xlu0 %1800
      %1802 = vrot.lane.b32.xlu0 %v897, 95
      %v1803 = vpop.permute.xlu0 %1802
      %1804 = vrot.lane.b32.xlu0 %v898, 95
      %v1805 = vpop.permute.xlu0 %1804
      %1806 = vrot.lane.b32.xlu0 %v899, 95
      %v1807 = vpop.permute.xlu0 %1806
      %1808 = vrot.lane.b32.xlu0 %v900, 95
      %v1809 = vpop.permute.xlu0 %1808
      %1810 = vrot.lane.b32.xlu0 %v901, 95
      %v1811 = vpop.permute.xlu0 %1810
      %1812 = vrot.lane.b32.xlu0 %v902, 95
      %v1813 = vpop.permute.xlu0 %1812
      %1814 = vrot.lane.b32.xlu0 %v903, 95
      %v1815 = vpop.permute.xlu0 %1814
      %1816 = vrot.lane.b32.xlu0 %v904, 95
      %v1817 = vpop.permute.xlu0 %1816
      %1818 = vrot.lane.b32.xlu0 %v905, 95
      %v1819 = vpop.permute.xlu0 %1818
      %vm1820 = vcmask 777216
      %v1821 = vsel %vm1820, %v1797, %v1799
      %v1822 = vsel %vm1820, %v1799, %v1801
      %v1823 = vsel %vm1820, %v1801, %v1803
      %v1824 = vsel %vm1820, %v1803, %v1805
      %v1825 = vsel %vm1820, %v1805, %v1807
      %v1826 = vsel %vm1820, %v1809, %v1811
      %v1827 = vsel %vm1820, %v1811, %v1813
      %v1828 = vsel %vm1820, %v1813, %v1815
      %v1829 = vsel %vm1820, %v1815, %v1817
      %v1830 = vsel %vm1820, %v1817, %v1819
      %v1842 = vsel %vm648, %v1794, 0
      %v1845 = vsel %vm648, %v1795, 0
      %1847 = vmatprep.subr.mxu0 0.0
      %1848 = vmatpush1.msra.mxu0 0.0
      %1849 = vmatprep.subr.mxu0 0.0
      %1850 = vmatpush1.msra.mxu0 0.0
      %1851 = vmatprep.subr.mxu0 0.0
      %1852 = vmatpush1.msra.mxu0 0.0
      %1853 = vmatprep.subr.mxu0 0.0
      %1854 = vmatpush1.msra.mxu0 0.0
      %1855 = vmatprep.subr.mxu0 0.0
      %1856 = vmatpush1.msra.mxu0 0.0
      %1857 = vmatprep.subr.mxu0 0.0
      %1858 = vmatpush1.msra.mxu0 0.0
      %1859 = vmatprep.subr.mxu0 0.0
      %1860 = vmatpush1.msra.mxu0 0.0
      %1861 = vmatprep.subr.mxu0 0.0
      %1862 = vmatpush1.msra.mxu0 0.0
      %1863 = vmatprep.subr.mxu0 0.0
      %1864 = vmatpush1.msra.mxu0 0.0
      %1865 = vmatprep.subr.mxu0 0.0
      %1866 = vmatpush1.msra.mxu0 0.0
      %1867 = vmatprep.subr.mxu0 0.0
      %1868 = vmatpush1.msra.mxu0 0.0
      %1869 = vmatprep.subr.mxu0 0.0
      %1870 = vmatpush1.msra.mxu0 0.0
      %1871 = vmatprep.subr.mxu0 0.0
      %1872 = vmatpush1.msra.mxu0 0.0
      %1873 = vmatprep.subr.mxu0 0.0
      %1874 = vmatpush1.msra.mxu0 0.0
      %1875 = vmatprep.subr.mxu0 %v1827
      %1876 = vmatpush1.msra.mxu0 %v1826
      %1877 = vmatprep.subr.mxu0 %v1822
      %1878 = vmatpush1.msra.mxu0 %v1821
      %1879 = vmatprep.subr.mxu0 0.0
      %1880 = vmatpush2.msra.mxu0 0.0
      %1881 = vmatprep.subr.mxu0 0.0
      %1882 = vmatpush2.msra.mxu0 0.0
      %1883 = vmatprep.subr.mxu0 0.0
      %1884 = vmatpush2.msra.mxu0 0.0
      %1885 = vmatprep.subr.mxu0 0.0
      %1886 = vmatpush2.msra.mxu0 0.0
      %1887 = vmatprep.subr.mxu0 0.0
      %1888 = vmatpush2.msra.mxu0 0.0
      %1889 = vmatprep.subr.mxu0 0.0
      %1890 = vmatpush2.msra.mxu0 0.0
      %1891 = vmatprep.subr.mxu0 0.0
      %1892 = vmatpush2.msra.mxu0 0.0
      %1893 = vmatprep.subr.mxu0 0.0
      %1894 = vmatpush2.msra.mxu0 0.0
      %1895 = vmatprep.subr.mxu0 0.0
      %1896 = vmatpush2.msra.mxu0 0.0
      %1897 = vmatprep.subr.mxu0 0.0
      %1898 = vmatpush2.msra.mxu0 0.0
      %1899 = vmatprep.subr.mxu0 0.0
      %1900 = vmatpush2.msra.mxu0 0.0
      %1901 = vmatprep.subr.mxu0 0.0
      %1902 = vmatpush2.msra.mxu0 0.0
      %1903 = vmatprep.subr.mxu0 0.0
      %1904 = vmatpush2.msra.mxu0 0.0
      %1905 = vmatprep.subr.mxu0 0.0
      %1906 = vmatpush2.msra.mxu0 0.0
      %1907 = vmatprep.subr.mxu0 0.0
      %1908 = vmatpush2.msra.mxu0 0.0
      %1909 = vmatprep.subr.mxu0 0.0
      %1910 = vmatpush2.msra.mxu0 0.0
      %1911 = vmatprep.mubr.f32.mxu0 0.0
      %1912 = vmatmul.mubr.f32.gmra.mxu0 %v1842
      %v1913 = vpop.f32.mrf.mxu0
      %v1914 = vadd.f32 0.0, %v1913
      %v1915 = vpop.f32.mrf.mxu0
      %v1916 = vadd.f32 0.0, %v1915
      %1917 = vmatprep.mubr.f32.mxu0 0.0
      %1918 = vmatmul.mubr.f32.gmra.mxu0 %v1845
      %v1919 = vpop.f32.mrf.mxu0
      %v1920 = vadd.f32 0.0, %v1919
      %v1921 = vpop.f32.mrf.mxu0
      %v1922 = vadd.f32 0.0, %v1921
      %1923 = vdwg.mxu0
      %1924 = vmatprep.subr.mxu0 0.0
      %1925 = vmatpush1.msra.mxu0 0.0
      %1926 = vmatprep.subr.mxu0 0.0
      %1927 = vmatpush1.msra.mxu0 0.0
      %1928 = vmatprep.subr.mxu0 0.0
      %1929 = vmatpush1.msra.mxu0 0.0
      %1930 = vmatprep.subr.mxu0 0.0
      %1931 = vmatpush1.msra.mxu0 0.0
      %1932 = vmatprep.subr.mxu0 0.0
      %1933 = vmatpush1.msra.mxu0 0.0
      %1934 = vmatprep.subr.mxu0 0.0
      %1935 = vmatpush1.msra.mxu0 0.0
      %1936 = vmatprep.subr.mxu0 0.0
      %1937 = vmatpush1.msra.mxu0 0.0
      %1938 = vmatprep.subr.mxu0 0.0
      %1939 = vmatpush1.msra.mxu0 0.0
      %1940 = vmatprep.subr.mxu0 0.0
      %1941 = vmatpush1.msra.mxu0 0.0
      %1942 = vmatprep.subr.mxu0 0.0
      %1943 = vmatpush1.msra.mxu0 0.0
      %1944 = vmatprep.subr.mxu0 0.0
      %1945 = vmatpush1.msra.mxu0 0.0
      %1946 = vmatprep.subr.mxu0 0.0
      %1947 = vmatpush1.msra.mxu0 0.0
      %1948 = vmatprep.subr.mxu0 0.0
      %1949 = vmatpush1.msra.mxu0 0.0
      %1950 = vmatprep.subr.mxu0 0.0
      %1951 = vmatpush1.msra.mxu0 0.0
      %1952 = vmatprep.subr.mxu0 %v1829
      %1953 = vmatpush1.msra.mxu0 %v1828
      %1954 = vmatprep.subr.mxu0 %v1824
      %1955 = vmatpush1.msra.mxu0 %v1823
      %1956 = vmatprep.subr.mxu0 0.0
      %1957 = vmatpush2.msra.mxu0 0.0
      %1958 = vmatprep.subr.mxu0 0.0
      %1959 = vmatpush2.msra.mxu0 0.0
      %1960 = vmatprep.subr.mxu0 0.0
      %1961 = vmatpush2.msra.mxu0 0.0
      %1962 = vmatprep.subr.mxu0 0.0
      %1963 = vmatpush2.msra.mxu0 0.0
      %1964 = vmatprep.subr.mxu0 0.0
      %1965 = vmatpush2.msra.mxu0 0.0
      %1966 = vmatprep.subr.mxu0 0.0
      %1967 = vmatpush2.msra.mxu0 0.0
      %1968 = vmatprep.subr.mxu0 0.0
      %1969 = vmatpush2.msra.mxu0 0.0
      %1970 = vmatprep.subr.mxu0 0.0
      %1971 = vmatpush2.msra.mxu0 0.0
      %1972 = vmatprep.subr.mxu0 0.0
      %1973 = vmatpush2.msra.mxu0 0.0
      %1974 = vmatprep.subr.mxu0 0.0
      %1975 = vmatpush2.msra.mxu0 0.0
      %1976 = vmatprep.subr.mxu0 0.0
      %1977 = vmatpush2.msra.mxu0 0.0
      %1978 = vmatprep.subr.mxu0 0.0
      %1979 = vmatpush2.msra.mxu0 0.0
      %1980 = vmatprep.subr.mxu0 0.0
      %1981 = vmatpush2.msra.mxu0 0.0
      %1982 = vmatprep.subr.mxu0 0.0
      %1983 = vmatpush2.msra.mxu0 0.0
      %1984 = vmatprep.subr.mxu0 0.0
      %1985 = vmatpush2.msra.mxu0 0.0
      %1986 = vmatprep.subr.mxu0 0.0
      %1987 = vmatpush2.msra.mxu0 0.0
      %1988 = vmatprep.mubr.f32.mxu0 0.0
      %1989 = vmatmul.mubr.f32.gmra.mxu0 %v1842
      %v1990 = vpop.f32.mrf.mxu0
      %v1991 = vadd.f32 0.0, %v1990
      %v1992 = vpop.f32.mrf.mxu0
      %v1993 = vadd.f32 0.0, %v1992
      %1994 = vmatprep.mubr.f32.mxu0 0.0
      %1995 = vmatmul.mubr.f32.gmra.mxu0 %v1845
      %v1996 = vpop.f32.mrf.mxu0
      %v1997 = vadd.f32 0.0, %v1996
      %v1998 = vpop.f32.mrf.mxu0
      %v1999 = vadd.f32 0.0, %v1998
      %2000 = vdwg.mxu0
      %2001 = vmatprep.subr.mxu0 0.0
      %2002 = vmatpush1.msra.mxu0 0.0
      %2003 = vmatprep.subr.mxu0 0.0
      %2004 = vmatpush1.msra.mxu0 0.0
      %2005 = vmatprep.subr.mxu0 0.0
      %2006 = vmatpush1.msra.mxu0 0.0
      %2007 = vmatprep.subr.mxu0 0.0
      %2008 = vmatpush1.msra.mxu0 0.0
      %2009 = vmatprep.subr.mxu0 0.0
      %2010 = vmatpush1.msra.mxu0 0.0
      %2011 = vmatprep.subr.mxu0 0.0
      %2012 = vmatpush1.msra.mxu0 0.0
      %2013 = vmatprep.subr.mxu0 0.0
      %2014 = vmatpush1.msra.mxu0 0.0
      %2015 = vmatprep.subr.mxu0 0.0
      %2016 = vmatpush1.msra.mxu0 0.0
      %2017 = vmatprep.subr.mxu0 0.0
      %2018 = vmatpush1.msra.mxu0 0.0
      %2019 = vmatprep.subr.mxu0 0.0
      %2020 = vmatpush1.msra.mxu0 0.0
      %2021 = vmatprep.subr.mxu0 0.0
      %2022 = vmatpush1.msra.mxu0 0.0
      %2023 = vmatprep.subr.mxu0 0.0
      %2024 = vmatpush1.msra.mxu0 0.0
      %2025 = vmatprep.subr.mxu0 0.0
      %2026 = vmatpush1.msra.mxu0 0.0
      %2027 = vmatprep.subr.mxu0 0.0
      %2028 = vmatpush1.msra.mxu0 0.0
      %2029 = vmatprep.subr.mxu0 0.0
      %2030 = vmatpush1.msra.mxu0 %v1830
      %2031 = vmatprep.subr.mxu0 0.0
      %2032 = vmatpush1.msra.mxu0 %v1825
      %2033 = vmatprep.subr.mxu0 0.0
      %2034 = vmatpush2.msra.mxu0 0.0
      %2035 = vmatprep.subr.mxu0 0.0
      %2036 = vmatpush2.msra.mxu0 0.0
      %2037 = vmatprep.subr.mxu0 0.0
      %2038 = vmatpush2.msra.mxu0 0.0
      %2039 = vmatprep.subr.mxu0 0.0
      %2040 = vmatpush2.msra.mxu0 0.0
      %2041 = vmatprep.subr.mxu0 0.0
      %2042 = vmatpush2.msra.mxu0 0.0
      %2043 = vmatprep.subr.mxu0 0.0
      %2044 = vmatpush2.msra.mxu0 0.0
      %2045 = vmatprep.subr.mxu0 0.0
      %2046 = vmatpush2.msra.mxu0 0.0
      %2047 = vmatprep.subr.mxu0 0.0
      %2048 = vmatpush2.msra.mxu0 0.0
      %2049 = vmatprep.subr.mxu0 0.0
      %2050 = vmatpush2.msra.mxu0 0.0
      %2051 = vmatprep.subr.mxu0 0.0
      %2052 = vmatpush2.msra.mxu0 0.0
      %2053 = vmatprep.subr.mxu0 0.0
      %2054 = vmatpush2.msra.mxu0 0.0
      %2055 = vmatprep.subr.mxu0 0.0
      %2056 = vmatpush2.msra.mxu0 0.0
      %2057 = vmatprep.subr.mxu0 0.0
      %2058 = vmatpush2.msra.mxu0 0.0
      %2059 = vmatprep.subr.mxu0 0.0
      %2060 = vmatpush2.msra.mxu0 0.0
      %2061 = vmatprep.subr.mxu0 0.0
      %2062 = vmatpush2.msra.mxu0 0.0
      %2063 = vmatprep.subr.mxu0 0.0
      %2064 = vmatpush2.msra.mxu0 0.0
      %2065 = vmatprep.mubr.f32.mxu0 0.0
      %2066 = vmatmul.mubr.f32.gmra.mxu0 %v1842
      %v2067 = vpop.f32.mrf.mxu0
      %v2068 = vadd.f32 0.0, %v2067
      %v2069 = vpop.f32.mrf.mxu0
      %2070 = vmatprep.mubr.f32.mxu0 0.0
      %2071 = vmatmul.mubr.f32.gmra.mxu0 %v1845
      %v2072 = vpop.f32.mrf.mxu0
      %v2073 = vadd.f32 0.0, %v2072
      %v2074 = vpop.f32.mrf.mxu0
      %2075 = vdwg.mxu0
      %v2076 = vadd.f32 %v1784, %v1914
      %v2077 = vadd.f32 %v1785, %v1916
      %v2078 = vadd.f32 %v1786, %v1991
      %v2079 = vadd.f32 %v1787, %v1993
      %v2080 = vadd.f32 %v1788, %v2068
      %v2081 = vadd.f32 %v1789, %v1920
      %v2082 = vadd.f32 %v1790, %v1922
      %v2083 = vadd.f32 %v1791, %v1997
      %v2084 = vadd.f32 %v1792, %v1999
      %v2085 = vadd.f32 %v1793, %v2073
      %v2086 = vld [vmem:[%s3 + $0x50] sm:$0xff]
      %v2087 = vld [vmem:[%s3 + $0x58] sm:$0xff]
      %2088 = vrot.lane.b32.xlu0 %v894, 94
      %v2089 = vpop.permute.xlu0 %2088
      %2090 = vrot.lane.b32.xlu0 %v895, 94
      %v2091 = vpop.permute.xlu0 %2090
      %2092 = vrot.lane.b32.xlu0 %v896, 94
      %v2093 = vpop.permute.xlu0 %2092
      %2094 = vrot.lane.b32.xlu0 %v897, 94
      %v2095 = vpop.permute.xlu0 %2094
      %2096 = vrot.lane.b32.xlu0 %v898, 94
      %v2097 = vpop.permute.xlu0 %2096
      %2098 = vrot.lane.b32.xlu0 %v899, 94
      %v2099 = vpop.permute.xlu0 %2098
      %2100 = vrot.lane.b32.xlu0 %v900, 94
      %v2101 = vpop.permute.xlu0 %2100
      %2102 = vrot.lane.b32.xlu0 %v901, 94
      %v2103 = vpop.permute.xlu0 %2102
      %2104 = vrot.lane.b32.xlu0 %v902, 94
      %v2105 = vpop.permute.xlu0 %2104
      %2106 = vrot.lane.b32.xlu0 %v903, 94
      %v2107 = vpop.permute.xlu0 %2106
      %2108 = vrot.lane.b32.xlu0 %v904, 94
      %v2109 = vpop.permute.xlu0 %2108
      %2110 = vrot.lane.b32.xlu0 %v905, 94
      %v2111 = vpop.permute.xlu0 %2110
      %vm2112 = vcmask 769024
      %v2113 = vsel %vm2112, %v2089, %v2091
      %v2114 = vsel %vm2112, %v2091, %v2093
      %v2115 = vsel %vm2112, %v2093, %v2095
      %v2116 = vsel %vm2112, %v2095, %v2097
      %v2117 = vsel %vm2112, %v2097, %v2099
      %v2118 = vsel %vm2112, %v2101, %v2103
      %v2119 = vsel %vm2112, %v2103, %v2105
      %v2120 = vsel %vm2112, %v2105, %v2107
      %v2121 = vsel %vm2112, %v2107, %v2109
      %v2122 = vsel %vm2112, %v2109, %v2111
      %v2134 = vsel %vm648, %v2086, 0
      %v2137 = vsel %vm648, %v2087, 0
      %2139 = vmatprep.subr.mxu0 0.0
      %2140 = vmatpush1.msra.mxu0 0.0
      %2141 = vmatprep.subr.mxu0 0.0
      %2142 = vmatpush1.msra.mxu0 0.0
      %2143 = vmatprep.subr.mxu0 0.0
      %2144 = vmatpush1.msra.mxu0 0.0
      %2145 = vmatprep.subr.mxu0 0.0
      %2146 = vmatpush1.msra.mxu0 0.0
      %2147 = vmatprep.subr.mxu0 0.0
      %2148 = vmatpush1.msra.mxu0 0.0
      %2149 = vmatprep.subr.mxu0 0.0
      %2150 = vmatpush1.msra.mxu0 0.0
      %2151 = vmatprep.subr.mxu0 0.0
      %2152 = vmatpush1.msra.mxu0 0.0
      %2153 = vmatprep.subr.mxu0 0.0
      %2154 = vmatpush1.msra.mxu0 0.0
      %2155 = vmatprep.subr.mxu0 0.0
      %2156 = vmatpush1.msra.mxu0 0.0
      %2157 = vmatprep.subr.mxu0 0.0
      %2158 = vmatpush1.msra.mxu0 0.0
      %2159 = vmatprep.subr.mxu0 0.0
      %2160 = vmatpush1.msra.mxu0 0.0
      %2161 = vmatprep.subr.mxu0 0.0
      %2162 = vmatpush1.msra.mxu0 0.0
      %2163 = vmatprep.subr.mxu0 0.0
      %2164 = vmatpush1.msra.mxu0 0.0
      %2165 = vmatprep.subr.mxu0 0.0
      %2166 = vmatpush1.msra.mxu0 0.0
      %2167 = vmatprep.subr.mxu0 %v2119
      %2168 = vmatpush1.msra.mxu0 %v2118
      %2169 = vmatprep.subr.mxu0 %v2114
      %2170 = vmatpush1.msra.mxu0 %v2113
      %2171 = vmatprep.subr.mxu0 0.0
      %2172 = vmatpush2.msra.mxu0 0.0
      %2173 = vmatprep.subr.mxu0 0.0
      %2174 = vmatpush2.msra.mxu0 0.0
      %2175 = vmatprep.subr.mxu0 0.0
      %2176 = vmatpush2.msra.mxu0 0.0
      %2177 = vmatprep.subr.mxu0 0.0
      %2178 = vmatpush2.msra.mxu0 0.0
      %2179 = vmatprep.subr.mxu0 0.0
      %2180 = vmatpush2.msra.mxu0 0.0
      %2181 = vmatprep.subr.mxu0 0.0
      %2182 = vmatpush2.msra.mxu0 0.0
      %2183 = vmatprep.subr.mxu0 0.0
      %2184 = vmatpush2.msra.mxu0 0.0
      %2185 = vmatprep.subr.mxu0 0.0
      %2186 = vmatpush2.msra.mxu0 0.0
      %2187 = vmatprep.subr.mxu0 0.0
      %2188 = vmatpush2.msra.mxu0 0.0
      %2189 = vmatprep.subr.mxu0 0.0
      %2190 = vmatpush2.msra.mxu0 0.0
      %2191 = vmatprep.subr.mxu0 0.0
      %2192 = vmatpush2.msra.mxu0 0.0
      %2193 = vmatprep.subr.mxu0 0.0
      %2194 = vmatpush2.msra.mxu0 0.0
      %2195 = vmatprep.subr.mxu0 0.0
      %2196 = vmatpush2.msra.mxu0 0.0
      %2197 = vmatprep.subr.mxu0 0.0
      %2198 = vmatpush2.msra.mxu0 0.0
      %2199 = vmatprep.subr.mxu0 0.0
      %2200 = vmatpush2.msra.mxu0 0.0
      %2201 = vmatprep.subr.mxu0 0.0
      %2202 = vmatpush2.msra.mxu0 0.0
      %2203 = vmatprep.mubr.f32.mxu0 0.0
      %2204 = vmatmul.mubr.f32.gmra.mxu0 %v2134
      %v2205 = vpop.f32.mrf.mxu0
      %v2206 = vadd.f32 0.0, %v2205
      %v2207 = vpop.f32.mrf.mxu0
      %v2208 = vadd.f32 0.0, %v2207
      %2209 = vmatprep.mubr.f32.mxu0 0.0
      %2210 = vmatmul.mubr.f32.gmra.mxu0 %v2137
      %v2211 = vpop.f32.mrf.mxu0
      %v2212 = vadd.f32 0.0, %v2211
      %v2213 = vpop.f32.mrf.mxu0
      %v2214 = vadd.f32 0.0, %v2213
      %2215 = vdwg.mxu0
      %2216 = vmatprep.subr.mxu0 0.0
      %2217 = vmatpush1.msra.mxu0 0.0
      %2218 = vmatprep.subr.mxu0 0.0
      %2219 = vmatpush1.msra.mxu0 0.0
      %2220 = vmatprep.subr.mxu0 0.0
      %2221 = vmatpush1.msra.mxu0 0.0
      %2222 = vmatprep.subr.mxu0 0.0
      %2223 = vmatpush1.msra.mxu0 0.0
      %2224 = vmatprep.subr.mxu0 0.0
      %2225 = vmatpush1.msra.mxu0 0.0
      %2226 = vmatprep.subr.mxu0 0.0
      %2227 = vmatpush1.msra.mxu0 0.0
      %2228 = vmatprep.subr.mxu0 0.0
      %2229 = vmatpush1.msra.mxu0 0.0
      %2230 = vmatprep.subr.mxu0 0.0
      %2231 = vmatpush1.msra.mxu0 0.0
      %2232 = vmatprep.subr.mxu0 0.0
      %2233 = vmatpush1.msra.mxu0 0.0
      %2234 = vmatprep.subr.mxu0 0.0
      %2235 = vmatpush1.msra.mxu0 0.0
      %2236 = vmatprep.subr.mxu0 0.0
      %2237 = vmatpush1.msra.mxu0 0.0
      %2238 = vmatprep.subr.mxu0 0.0
      %2239 = vmatpush1.msra.mxu0 0.0
      %2240 = vmatprep.subr.mxu0 0.0
      %2241 = vmatpush1.msra.mxu0 0.0
      %2242 = vmatprep.subr.mxu0 0.0
      %2243 = vmatpush1.msra.mxu0 0.0
      %2244 = vmatprep.subr.mxu0 %v2121
      %2245 = vmatpush1.msra.mxu0 %v2120
      %2246 = vmatprep.subr.mxu0 %v2116
      %2247 = vmatpush1.msra.mxu0 %v2115
      %2248 = vmatprep.subr.mxu0 0.0
      %2249 = vmatpush2.msra.mxu0 0.0
      %2250 = vmatprep.subr.mxu0 0.0
      %2251 = vmatpush2.msra.mxu0 0.0
      %2252 = vmatprep.subr.mxu0 0.0
      %2253 = vmatpush2.msra.mxu0 0.0
      %2254 = vmatprep.subr.mxu0 0.0
      %2255 = vmatpush2.msra.mxu0 0.0
      %2256 = vmatprep.subr.mxu0 0.0
      %2257 = vmatpush2.msra.mxu0 0.0
      %2258 = vmatprep.subr.mxu0 0.0
      %2259 = vmatpush2.msra.mxu0 0.0
      %2260 = vmatprep.subr.mxu0 0.0
      %2261 = vmatpush2.msra.mxu0 0.0
      %2262 = vmatprep.subr.mxu0 0.0
      %2263 = vmatpush2.msra.mxu0 0.0
      %2264 = vmatprep.subr.mxu0 0.0
      %2265 = vmatpush2.msra.mxu0 0.0
      %2266 = vmatprep.subr.mxu0 0.0
      %2267 = vmatpush2.msra.mxu0 0.0
      %2268 = vmatprep.subr.mxu0 0.0
      %2269 = vmatpush2.msra.mxu0 0.0
      %2270 = vmatprep.subr.mxu0 0.0
      %2271 = vmatpush2.msra.mxu0 0.0
      %2272 = vmatprep.subr.mxu0 0.0
      %2273 = vmatpush2.msra.mxu0 0.0
      %2274 = vmatprep.subr.mxu0 0.0
      %2275 = vmatpush2.msra.mxu0 0.0
      %2276 = vmatprep.subr.mxu0 0.0
      %2277 = vmatpush2.msra.mxu0 0.0
      %2278 = vmatprep.subr.mxu0 0.0
      %2279 = vmatpush2.msra.mxu0 0.0
      %2280 = vmatprep.mubr.f32.mxu0 0.0
      %2281 = vmatmul.mubr.f32.gmra.mxu0 %v2134
      %v2282 = vpop.f32.mrf.mxu0
      %v2283 = vadd.f32 0.0, %v2282
      %v2284 = vpop.f32.mrf.mxu0
      %v2285 = vadd.f32 0.0, %v2284
      %2286 = vmatprep.mubr.f32.mxu0 0.0
      %2287 = vmatmul.mubr.f32.gmra.mxu0 %v2137
      %v2288 = vpop.f32.mrf.mxu0
      %v2289 = vadd.f32 0.0, %v2288
      %v2290 = vpop.f32.mrf.mxu0
      %v2291 = vadd.f32 0.0, %v2290
      %2292 = vdwg.mxu0
      %2293 = vmatprep.subr.mxu0 0.0
      %2294 = vmatpush1.msra.mxu0 0.0
      %2295 = vmatprep.subr.mxu0 0.0
      %2296 = vmatpush1.msra.mxu0 0.0
      %2297 = vmatprep.subr.mxu0 0.0
      %2298 = vmatpush1.msra.mxu0 0.0
      %2299 = vmatprep.subr.mxu0 0.0
      %2300 = vmatpush1.msra.mxu0 0.0
      %2301 = vmatprep.subr.mxu0 0.0
      %2302 = vmatpush1.msra.mxu0 0.0
      %2303 = vmatprep.subr.mxu0 0.0
      %2304 = vmatpush1.msra.mxu0 0.0
      %2305 = vmatprep.subr.mxu0 0.0
      %2306 = vmatpush1.msra.mxu0 0.0
      %2307 = vmatprep.subr.mxu0 0.0
      %2308 = vmatpush1.msra.mxu0 0.0
      %2309 = vmatprep.subr.mxu0 0.0
      %2310 = vmatpush1.msra.mxu0 0.0
      %2311 = vmatprep.subr.mxu0 0.0
      %2312 = vmatpush1.msra.mxu0 0.0
      %2313 = vmatprep.subr.mxu0 0.0
      %2314 = vmatpush1.msra.mxu0 0.0
      %2315 = vmatprep.subr.mxu0 0.0
      %2316 = vmatpush1.msra.mxu0 0.0
      %2317 = vmatprep.subr.mxu0 0.0
      %2318 = vmatpush1.msra.mxu0 0.0
      %2319 = vmatprep.subr.mxu0 0.0
      %2320 = vmatpush1.msra.mxu0 0.0
      %2321 = vmatprep.subr.mxu0 0.0
      %2322 = vmatpush1.msra.mxu0 %v2122
      %2323 = vmatprep.subr.mxu0 0.0
      %2324 = vmatpush1.msra.mxu0 %v2117
      %2325 = vmatprep.subr.mxu0 0.0
      %2326 = vmatpush2.msra.mxu0 0.0
      %2327 = vmatprep.subr.mxu0 0.0
      %2328 = vmatpush2.msra.mxu0 0.0
      %2329 = vmatprep.subr.mxu0 0.0
      %2330 = vmatpush2.msra.mxu0 0.0
      %2331 = vmatprep.subr.mxu0 0.0
      %2332 = vmatpush2.msra.mxu0 0.0
      %2333 = vmatprep.subr.mxu0 0.0
      %2334 = vmatpush2.msra.mxu0 0.0
      %2335 = vmatprep.subr.mxu0 0.0
      %2336 = vmatpush2.msra.mxu0 0.0
      %2337 = vmatprep.subr.mxu0 0.0
      %2338 = vmatpush2.msra.mxu0 0.0
      %2339 = vmatprep.subr.mxu0 0.0
      %2340 = vmatpush2.msra.mxu0 0.0
      %2341 = vmatprep.subr.mxu0 0.0
      %2342 = vmatpush2.msra.mxu0 0.0
      %2343 = vmatprep.subr.mxu0 0.0
      %2344 = vmatpush2.msra.mxu0 0.0
      %2345 = vmatprep.subr.mxu0 0.0
      %2346 = vmatpush2.msra.mxu0 0.0
      %2347 = vmatprep.subr.mxu0 0.0
      %2348 = vmatpush2.msra.mxu0 0.0
      %2349 = vmatprep.subr.mxu0 0.0
      %2350 = vmatpush2.msra.mxu0 0.0
      %2351 = vmatprep.subr.mxu0 0.0
      %2352 = vmatpush2.msra.mxu0 0.0
      %2353 = vmatprep.subr.mxu0 0.0
      %2354 = vmatpush2.msra.mxu0 0.0
      %2355 = vmatprep.subr.mxu0 0.0
      %2356 = vmatpush2.msra.mxu0 0.0
      %2357 = vmatprep.mubr.f32.mxu0 0.0
      %2358 = vmatmul.mubr.f32.gmra.mxu0 %v2134
      %v2359 = vpop.f32.mrf.mxu0
      %v2360 = vadd.f32 0.0, %v2359
      %v2361 = vpop.f32.mrf.mxu0
      %2362 = vmatprep.mubr.f32.mxu0 0.0
      %2363 = vmatmul.mubr.f32.gmra.mxu0 %v2137
      %v2364 = vpop.f32.mrf.mxu0
      %v2365 = vadd.f32 0.0, %v2364
      %v2366 = vpop.f32.mrf.mxu0
      %2367 = vdwg.mxu0
      %v2368 = vadd.f32 %v2076, %v2206
      %v2369 = vadd.f32 %v2077, %v2208
      %v2370 = vadd.f32 %v2078, %v2283
      %v2371 = vadd.f32 %v2079, %v2285
      %v2372 = vadd.f32 %v2080, %v2360
      %v2373 = vadd.f32 %v2081, %v2212
      %v2374 = vadd.f32 %v2082, %v2214
      %v2375 = vadd.f32 %v2083, %v2289
      %v2376 = vadd.f32 %v2084, %v2291
      %v2377 = vadd.f32 %v2085, %v2365
      %v2378 = vld [vmem:[%s3 + $0x60] sm:$0xff]
      %v2379 = vld [vmem:[%s3 + $0x68] sm:$0xff]
      %2380 = vrot.lane.b32.xlu0 %v894, 64
      %v2381 = vpop.permute.xlu0 %2380
      %2382 = vrot.lane.b32.xlu0 %v895, 64
      %v2383 = vpop.permute.xlu0 %2382
      %2384 = vrot.lane.b32.xlu0 %v896, 64
      %v2385 = vpop.permute.xlu0 %2384
      %2386 = vrot.lane.b32.xlu0 %v897, 64
      %v2387 = vpop.permute.xlu0 %2386
      %2388 = vrot.lane.b32.xlu0 %v898, 64
      %v2389 = vpop.permute.xlu0 %2388
      %2390 = vrot.lane.b32.xlu0 %v899, 64
      %v2391 = vpop.permute.xlu0 %2390
      %2392 = vrot.lane.b32.xlu0 %v900, 64
      %v2393 = vpop.permute.xlu0 %2392
      %2394 = vrot.lane.b32.xlu0 %v901, 64
      %v2395 = vpop.permute.xlu0 %2394
      %2396 = vrot.lane.b32.xlu0 %v902, 64
      %v2397 = vpop.permute.xlu0 %2396
      %2398 = vrot.lane.b32.xlu0 %v903, 64
      %v2399 = vpop.permute.xlu0 %2398
      %2400 = vrot.lane.b32.xlu0 %v904, 64
      %v2401 = vpop.permute.xlu0 %2400
      %2402 = vrot.lane.b32.xlu0 %v905, 64
      %v2403 = vpop.permute.xlu0 %2402
      %vm2404 = vcmask 523264
      %v2405 = vsel %vm2404, %v2381, %v2383
      %v2406 = vsel %vm2404, %v2383, %v2385
      %v2407 = vsel %vm2404, %v2385, %v2387
      %v2408 = vsel %vm2404, %v2387, %v2389
      %v2409 = vsel %vm2404, %v2389, %v2391
      %v2410 = vsel %vm2404, %v2393, %v2395
      %v2411 = vsel %vm2404, %v2395, %v2397
      %v2412 = vsel %vm2404, %v2397, %v2399
      %v2413 = vsel %vm2404, %v2399, %v2401
      %v2414 = vsel %vm2404, %v2401, %v2403
      %v2426 = vsel %vm648, %v2378, 0
      %v2429 = vsel %vm648, %v2379, 0
      %2431 = vmatprep.subr.mxu0 0.0
      %2432 = vmatpush1.msra.mxu0 0.0
      %2433 = vmatprep.subr.mxu0 0.0
      %2434 = vmatpush1.msra.mxu0 0.0
      %2435 = vmatprep.subr.mxu0 0.0
      %2436 = vmatpush1.msra.mxu0 0.0
      %2437 = vmatprep.subr.mxu0 0.0
      %2438 = vmatpush1.msra.mxu0 0.0
      %2439 = vmatprep.subr.mxu0 0.0
      %2440 = vmatpush1.msra.mxu0 0.0
      %2441 = vmatprep.subr.mxu0 0.0
      %2442 = vmatpush1.msra.mxu0 0.0
      %2443 = vmatprep.subr.mxu0 0.0
      %2444 = vmatpush1.msra.mxu0 0.0
      %2445 = vmatprep.subr.mxu0 0.0
      %2446 = vmatpush1.msra.mxu0 0.0
      %2447 = vmatprep.subr.mxu0 0.0
      %2448 = vmatpush1.msra.mxu0 0.0
      %2449 = vmatprep.subr.mxu0 0.0
      %2450 = vmatpush1.msra.mxu0 0.0
      %2451 = vmatprep.subr.mxu0 0.0
      %2452 = vmatpush1.msra.mxu0 0.0
      %2453 = vmatprep.subr.mxu0 0.0
      %2454 = vmatpush1.msra.mxu0 0.0
      %2455 = vmatprep.subr.mxu0 0.0
      %2456 = vmatpush1.msra.mxu0 0.0
      %2457 = vmatprep.subr.mxu0 0.0
      %2458 = vmatpush1.msra.mxu0 0.0
      %2459 = vmatprep.subr.mxu0 %v2411
      %2460 = vmatpush1.msra.mxu0 %v2410
      %2461 = vmatprep.subr.mxu0 %v2406
      %2462 = vmatpush1.msra.mxu0 %v2405
      %2463 = vmatprep.subr.mxu0 0.0
      %2464 = vmatpush2.msra.mxu0 0.0
      %2465 = vmatprep.subr.mxu0 0.0
      %2466 = vmatpush2.msra.mxu0 0.0
      %2467 = vmatprep.subr.mxu0 0.0
      %2468 = vmatpush2.msra.mxu0 0.0
      %2469 = vmatprep.subr.mxu0 0.0
      %2470 = vmatpush2.msra.mxu0 0.0
      %2471 = vmatprep.subr.mxu0 0.0
      %2472 = vmatpush2.msra.mxu0 0.0
      %2473 = vmatprep.subr.mxu0 0.0
      %2474 = vmatpush2.msra.mxu0 0.0
      %2475 = vmatprep.subr.mxu0 0.0
      %2476 = vmatpush2.msra.mxu0 0.0
      %2477 = vmatprep.subr.mxu0 0.0
      %2478 = vmatpush2.msra.mxu0 0.0
      %2479 = vmatprep.subr.mxu0 0.0
      %2480 = vmatpush2.msra.mxu0 0.0
      %2481 = vmatprep.subr.mxu0 0.0
      %2482 = vmatpush2.msra.mxu0 0.0
      %2483 = vmatprep.subr.mxu0 0.0
      %2484 = vmatpush2.msra.mxu0 0.0
      %2485 = vmatprep.subr.mxu0 0.0
      %2486 = vmatpush2.msra.mxu0 0.0
      %2487 = vmatprep.subr.mxu0 0.0
      %2488 = vmatpush2.msra.mxu0 0.0
      %2489 = vmatprep.subr.mxu0 0.0
      %2490 = vmatpush2.msra.mxu0 0.0
      %2491 = vmatprep.subr.mxu0 0.0
      %2492 = vmatpush2.msra.mxu0 0.0
      %2493 = vmatprep.subr.mxu0 0.0
      %2494 = vmatpush2.msra.mxu0 0.0
      %2495 = vmatprep.mubr.f32.mxu0 0.0
      %2496 = vmatmul.mubr.f32.gmra.mxu0 %v2426
      %v2497 = vpop.f32.mrf.mxu0
      %v2498 = vadd.f32 0.0, %v2497
      %v2499 = vpop.f32.mrf.mxu0
      %v2500 = vadd.f32 0.0, %v2499
      %2501 = vmatprep.mubr.f32.mxu0 0.0
      %2502 = vmatmul.mubr.f32.gmra.mxu0 %v2429
      %v2503 = vpop.f32.mrf.mxu0
      %v2504 = vadd.f32 0.0, %v2503
      %v2505 = vpop.f32.mrf.mxu0
      %v2506 = vadd.f32 0.0, %v2505
      %2507 = vdwg.mxu0
      %2508 = vmatprep.subr.mxu0 0.0
      %2509 = vmatpush1.msra.mxu0 0.0
      %2510 = vmatprep.subr.mxu0 0.0
      %2511 = vmatpush1.msra.mxu0 0.0
      %2512 = vmatprep.subr.mxu0 0.0
      %2513 = vmatpush1.msra.mxu0 0.0
      %2514 = vmatprep.subr.mxu0 0.0
      %2515 = vmatpush1.msra.mxu0 0.0
      %2516 = vmatprep.subr.mxu0 0.0
      %2517 = vmatpush1.msra.mxu0 0.0
      %2518 = vmatprep.subr.mxu0 0.0
      %2519 = vmatpush1.msra.mxu0 0.0
      %2520 = vmatprep.subr.mxu0 0.0
      %2521 = vmatpush1.msra.mxu0 0.0
      %2522 = vmatprep.subr.mxu0 0.0
      %2523 = vmatpush1.msra.mxu0 0.0
      %2524 = vmatprep.subr.mxu0 0.0
      %2525 = vmatpush1.msra.mxu0 0.0
      %2526 = vmatprep.subr.mxu0 0.0
      %2527 = vmatpush1.msra.mxu0 0.0
      %2528 = vmatprep.subr.mxu0 0.0
      %2529 = vmatpush1.msra.mxu0 0.0
      %2530 = vmatprep.subr.mxu0 0.0
      %2531 = vmatpush1.msra.mxu0 0.0
      %2532 = vmatprep.subr.mxu0 0.0
      %2533 = vmatpush1.msra.mxu0 0.0
      %2534 = vmatprep.subr.mxu0 0.0
      %2535 = vmatpush1.msra.mxu0 0.0
      %2536 = vmatprep.subr.mxu0 %v2413
      %2537 = vmatpush1.msra.mxu0 %v2412
      %2538 = vmatprep.subr.mxu0 %v2408
      %2539 = vmatpush1.msra.mxu0 %v2407
      %2540 = vmatprep.subr.mxu0 0.0
      %2541 = vmatpush2.msra.mxu0 0.0
      %2542 = vmatprep.subr.mxu0 0.0
      %2543 = vmatpush2.msra.mxu0 0.0
      %2544 = vmatprep.subr.mxu0 0.0
      %2545 = vmatpush2.msra.mxu0 0.0
      %2546 = vmatprep.subr.mxu0 0.0
      %2547 = vmatpush2.msra.mxu0 0.0
      %2548 = vmatprep.subr.mxu0 0.0
      %2549 = vmatpush2.msra.mxu0 0.0
      %2550 = vmatprep.subr.mxu0 0.0
      %2551 = vmatpush2.msra.mxu0 0.0
      %2552 = vmatprep.subr.mxu0 0.0
      %2553 = vmatpush2.msra.mxu0 0.0
      %2554 = vmatprep.subr.mxu0 0.0
      %2555 = vmatpush2.msra.mxu0 0.0
      %2556 = vmatprep.subr.mxu0 0.0
      %2557 = vmatpush2.msra.mxu0 0.0
      %2558 = vmatprep.subr.mxu0 0.0
      %2559 = vmatpush2.msra.mxu0 0.0
      %2560 = vmatprep.subr.mxu0 0.0
      %2561 = vmatpush2.msra.mxu0 0.0
      %2562 = vmatprep.subr.mxu0 0.0
      %2563 = vmatpush2.msra.mxu0 0.0
      %2564 = vmatprep.subr.mxu0 0.0
      %2565 = vmatpush2.msra.mxu0 0.0
      %2566 = vmatprep.subr.mxu0 0.0
      %2567 = vmatpush2.msra.mxu0 0.0
      %2568 = vmatprep.subr.mxu0 0.0
      %2569 = vmatpush2.msra.mxu0 0.0
      %2570 = vmatprep.subr.mxu0 0.0
      %2571 = vmatpush2.msra.mxu0 0.0
      %2572 = vmatprep.mubr.f32.mxu0 0.0
      %2573 = vmatmul.mubr.f32.gmra.mxu0 %v2426
      %v2574 = vpop.f32.mrf.mxu0
      %v2575 = vadd.f32 0.0, %v2574
      %v2576 = vpop.f32.mrf.mxu0
      %v2577 = vadd.f32 0.0, %v2576
      %2578 = vmatprep.mubr.f32.mxu0 0.0
      %2579 = vmatmul.mubr.f32.gmra.mxu0 %v2429
      %v2580 = vpop.f32.mrf.mxu0
      %v2581 = vadd.f32 0.0, %v2580
      %v2582 = vpop.f32.mrf.mxu0
      %v2583 = vadd.f32 0.0, %v2582
      %2584 = vdwg.mxu0
      %2585 = vmatprep.subr.mxu0 0.0
      %2586 = vmatpush1.msra.mxu0 0.0
      %2587 = vmatprep.subr.mxu0 0.0
      %2588 = vmatpush1.msra.mxu0 0.0
      %2589 = vmatprep.subr.mxu0 0.0
      %2590 = vmatpush1.msra.mxu0 0.0
      %2591 = vmatprep.subr.mxu0 0.0
      %2592 = vmatpush1.msra.mxu0 0.0
      %2593 = vmatprep.subr.mxu0 0.0
      %2594 = vmatpush1.msra.mxu0 0.0
      %2595 = vmatprep.subr.mxu0 0.0
      %2596 = vmatpush1.msra.mxu0 0.0
      %2597 = vmatprep.subr.mxu0 0.0
      %2598 = vmatpush1.msra.mxu0 0.0
      %2599 = vmatprep.subr.mxu0 0.0
      %2600 = vmatpush1.msra.mxu0 0.0
      %2601 = vmatprep.subr.mxu0 0.0
      %2602 = vmatpush1.msra.mxu0 0.0
      %2603 = vmatprep.subr.mxu0 0.0
      %2604 = vmatpush1.msra.mxu0 0.0
      %2605 = vmatprep.subr.mxu0 0.0
      %2606 = vmatpush1.msra.mxu0 0.0
      %2607 = vmatprep.subr.mxu0 0.0
      %2608 = vmatpush1.msra.mxu0 0.0
      %2609 = vmatprep.subr.mxu0 0.0
      %2610 = vmatpush1.msra.mxu0 0.0
      %2611 = vmatprep.subr.mxu0 0.0
      %2612 = vmatpush1.msra.mxu0 0.0
      %2613 = vmatprep.subr.mxu0 0.0
      %2614 = vmatpush1.msra.mxu0 %v2414
      %2615 = vmatprep.subr.mxu0 0.0
      %2616 = vmatpush1.msra.mxu0 %v2409
      %2617 = vmatprep.subr.mxu0 0.0
      %2618 = vmatpush2.msra.mxu0 0.0
      %2619 = vmatprep.subr.mxu0 0.0
      %2620 = vmatpush2.msra.mxu0 0.0
      %2621 = vmatprep.subr.mxu0 0.0
      %2622 = vmatpush2.msra.mxu0 0.0
      %2623 = vmatprep.subr.mxu0 0.0
      %2624 = vmatpush2.msra.mxu0 0.0
      %2625 = vmatprep.subr.mxu0 0.0
      %2626 = vmatpush2.msra.mxu0 0.0
      %2627 = vmatprep.subr.mxu0 0.0
      %2628 = vmatpush2.msra.mxu0 0.0
      %2629 = vmatprep.subr.mxu0 0.0
      %2630 = vmatpush2.msra.mxu0 0.0
      %2631 = vmatprep.subr.mxu0 0.0
      %2632 = vmatpush2.msra.mxu0 0.0
      %2633 = vmatprep.subr.mxu0 0.0
      %2634 = vmatpush2.msra.mxu0 0.0
      %2635 = vmatprep.subr.mxu0 0.0
      %2636 = vmatpush2.msra.mxu0 0.0
      %2637 = vmatprep.subr.mxu0 0.0
      %2638 = vmatpush2.msra.mxu0 0.0
      %2639 = vmatprep.subr.mxu0 0.0
      %2640 = vmatpush2.msra.mxu0 0.0
      %2641 = vmatprep.subr.mxu0 0.0
      %2642 = vmatpush2.msra.mxu0 0.0
      %2643 = vmatprep.subr.mxu0 0.0
      %2644 = vmatpush2.msra.mxu0 0.0
      %2645 = vmatprep.subr.mxu0 0.0
      %2646 = vmatpush2.msra.mxu0 0.0
      %2647 = vmatprep.subr.mxu0 0.0
      %2648 = vmatpush2.msra.mxu0 0.0
      %2649 = vmatprep.mubr.f32.mxu0 0.0
      %2650 = vmatmul.mubr.f32.gmra.mxu0 %v2426
      %v2651 = vpop.f32.mrf.mxu0
      %v2652 = vadd.f32 0.0, %v2651
      %v2653 = vpop.f32.mrf.mxu0
      %2654 = vmatprep.mubr.f32.mxu0 0.0
      %2655 = vmatmul.mubr.f32.gmra.mxu0 %v2429
      %v2656 = vpop.f32.mrf.mxu0
      %v2657 = vadd.f32 0.0, %v2656
      %v2658 = vpop.f32.mrf.mxu0
      %2659 = vdwg.mxu0
      %v2660 = vadd.f32 %v2368, %v2498
      %v2661 = vadd.f32 %v2369, %v2500
      %v2662 = vadd.f32 %v2370, %v2575
      %v2663 = vadd.f32 %v2371, %v2577
      %v2664 = vadd.f32 %v2372, %v2652
      %v2665 = vadd.f32 %v2373, %v2504
      %v2666 = vadd.f32 %v2374, %v2506
      %v2667 = vadd.f32 %v2375, %v2581
      %v2668 = vadd.f32 %v2376, %v2583
      %v2669 = vadd.f32 %v2377, %v2657
      %v2670 = vld [vmem:[%s3 + $0x70] sm:$0xff]
      %v2671 = vld [vmem:[%s3 + $0x78] sm:$0xff]
      %2672 = vrot.lane.b32.xlu0 %v894, 63
      %v2673 = vpop.permute.xlu0 %2672
      %2674 = vrot.lane.b32.xlu0 %v895, 63
      %v2675 = vpop.permute.xlu0 %2674
      %2676 = vrot.lane.b32.xlu0 %v896, 63
      %v2677 = vpop.permute.xlu0 %2676
      %2678 = vrot.lane.b32.xlu0 %v897, 63
      %v2679 = vpop.permute.xlu0 %2678
      %2680 = vrot.lane.b32.xlu0 %v898, 63
      %v2681 = vpop.permute.xlu0 %2680
      %2682 = vrot.lane.b32.xlu0 %v899, 63
      %v2683 = vpop.permute.xlu0 %2682
      %2684 = vrot.lane.b32.xlu0 %v900, 63
      %v2685 = vpop.permute.xlu0 %2684
      %2686 = vrot.lane.b32.xlu0 %v901, 63
      %v2687 = vpop.permute.xlu0 %2686
      %2688 = vrot.lane.b32.xlu0 %v902, 63
      %v2689 = vpop.permute.xlu0 %2688
      %2690 = vrot.lane.b32.xlu0 %v903, 63
      %v2691 = vpop.permute.xlu0 %2690
      %2692 = vrot.lane.b32.xlu0 %v904, 63
      %v2693 = vpop.permute.xlu0 %2692
      %2694 = vrot.lane.b32.xlu0 %v905, 63
      %v2695 = vpop.permute.xlu0 %2694
      %vm2696 = vcmask 515072
      %v2697 = vsel %vm2696, %v2673, %v2675
      %v2698 = vsel %vm2696, %v2675, %v2677
      %v2699 = vsel %vm2696, %v2677, %v2679
      %v2700 = vsel %vm2696, %v2679, %v2681
      %v2701 = vsel %vm2696, %v2681, %v2683
      %v2702 = vsel %vm2696, %v2685, %v2687
      %v2703 = vsel %vm2696, %v2687, %v2689
      %v2704 = vsel %vm2696, %v2689, %v2691
      %v2705 = vsel %vm2696, %v2691, %v2693
      %v2706 = vsel %vm2696, %v2693, %v2695
      %v2718 = vsel %vm648, %v2670, 0
      %v2721 = vsel %vm648, %v2671, 0
      %2723 = vmatprep.subr.mxu0 0.0
      %2724 = vmatpush1.msra.mxu0 0.0
      %2725 = vmatprep.subr.mxu0 0.0
      %2726 = vmatpush1.msra.mxu0 0.0
      %2727 = vmatprep.subr.mxu0 0.0
      %2728 = vmatpush1.msra.mxu0 0.0
      %2729 = vmatprep.subr.mxu0 0.0
      %2730 = vmatpush1.msra.mxu0 0.0
      %2731 = vmatprep.subr.mxu0 0.0
      %2732 = vmatpush1.msra.mxu0 0.0
      %2733 = vmatprep.subr.mxu0 0.0
      %2734 = vmatpush1.msra.mxu0 0.0
      %2735 = vmatprep.subr.mxu0 0.0
      %2736 = vmatpush1.msra.mxu0 0.0
      %2737 = vmatprep.subr.mxu0 0.0
      %2738 = vmatpush1.msra.mxu0 0.0
      %2739 = vmatprep.subr.mxu0 0.0
      %2740 = vmatpush1.msra.mxu0 0.0
      %2741 = vmatprep.subr.mxu0 0.0
      %2742 = vmatpush1.msra.mxu0 0.0
      %2743 = vmatprep.subr.mxu0 0.0
      %2744 = vmatpush1.msra.mxu0 0.0
      %2745 = vmatprep.subr.mxu0 0.0
      %2746 = vmatpush1.msra.mxu0 0.0
      %2747 = vmatprep.subr.mxu0 0.0
      %2748 = vmatpush1.msra.mxu0 0.0
      %2749 = vmatprep.subr.mxu0 0.0
      %2750 = vmatpush1.msra.mxu0 0.0
      %2751 = vmatprep.subr.mxu0 %v2703
      %2752 = vmatpush1.msra.mxu0 %v2702
      %2753 = vmatprep.subr.mxu0 %v2698
      %2754 = vmatpush1.msra.mxu0 %v2697
      %2755 = vmatprep.subr.mxu0 0.0
      %2756 = vmatpush2.msra.mxu0 0.0
      %2757 = vmatprep.subr.mxu0 0.0
      %2758 = vmatpush2.msra.mxu0 0.0
      %2759 = vmatprep.subr.mxu0 0.0
      %2760 = vmatpush2.msra.mxu0 0.0
      %2761 = vmatprep.subr.mxu0 0.0
      %2762 = vmatpush2.msra.mxu0 0.0
      %2763 = vmatprep.subr.mxu0 0.0
      %2764 = vmatpush2.msra.mxu0 0.0
      %2765 = vmatprep.subr.mxu0 0.0
      %2766 = vmatpush2.msra.mxu0 0.0
      %2767 = vmatprep.subr.mxu0 0.0
      %2768 = vmatpush2.msra.mxu0 0.0
      %2769 = vmatprep.subr.mxu0 0.0
      %2770 = vmatpush2.msra.mxu0 0.0
      %2771 = vmatprep.subr.mxu0 0.0
      %2772 = vmatpush2.msra.mxu0 0.0
      %2773 = vmatprep.subr.mxu0 0.0
      %2774 = vmatpush2.msra.mxu0 0.0
      %2775 = vmatprep.subr.mxu0 0.0
      %2776 = vmatpush2.msra.mxu0 0.0
      %2777 = vmatprep.subr.mxu0 0.0
      %2778 = vmatpush2.msra.mxu0 0.0
      %2779 = vmatprep.subr.mxu0 0.0
      %2780 = vmatpush2.msra.mxu0 0.0
      %2781 = vmatprep.subr.mxu0 0.0
      %2782 = vmatpush2.msra.mxu0 0.0
      %2783 = vmatprep.subr.mxu0 0.0
      %2784 = vmatpush2.msra.mxu0 0.0
      %2785 = vmatprep.subr.mxu0 0.0
      %2786 = vmatpush2.msra.mxu0 0.0
      %2787 = vmatprep.mubr.f32.mxu0 0.0
      %2788 = vmatmul.mubr.f32.gmra.mxu0 %v2718
      %v2789 = vpop.f32.mrf.mxu0
      %v2790 = vadd.f32 0.0, %v2789
      %v2791 = vpop.f32.mrf.mxu0
      %v2792 = vadd.f32 0.0, %v2791
      %2793 = vmatprep.mubr.f32.mxu0 0.0
      %2794 = vmatmul.mubr.f32.gmra.mxu0 %v2721
      %v2795 = vpop.f32.mrf.mxu0
      %v2796 = vadd.f32 0.0, %v2795
      %v2797 = vpop.f32.mrf.mxu0
      %v2798 = vadd.f32 0.0, %v2797
      %2799 = vdwg.mxu0
      %2800 = vmatprep.subr.mxu0 0.0
      %2801 = vmatpush1.msra.mxu0 0.0
      %2802 = vmatprep.subr.mxu0 0.0
      %2803 = vmatpush1.msra.mxu0 0.0
      %2804 = vmatprep.subr.mxu0 0.0
      %2805 = vmatpush1.msra.mxu0 0.0
      %2806 = vmatprep.subr.mxu0 0.0
      %2807 = vmatpush1.msra.mxu0 0.0
      %2808 = vmatprep.subr.mxu0 0.0
      %2809 = vmatpush1.msra.mxu0 0.0
      %2810 = vmatprep.subr.mxu0 0.0
      %2811 = vmatpush1.msra.mxu0 0.0
      %2812 = vmatprep.subr.mxu0 0.0
      %2813 = vmatpush1.msra.mxu0 0.0
      %2814 = vmatprep.subr.mxu0 0.0
      %2815 = vmatpush1.msra.mxu0 0.0
      %2816 = vmatprep.subr.mxu0 0.0
      %2817 = vmatpush1.msra.mxu0 0.0
      %2818 = vmatprep.subr.mxu0 0.0
      %2819 = vmatpush1.msra.mxu0 0.0
      %2820 = vmatprep.subr.mxu0 0.0
      %2821 = vmatpush1.msra.mxu0 0.0
      %2822 = vmatprep.subr.mxu0 0.0
      %2823 = vmatpush1.msra.mxu0 0.0
      %2824 = vmatprep.subr.mxu0 0.0
      %2825 = vmatpush1.msra.mxu0 0.0
      %2826 = vmatprep.subr.mxu0 0.0
      %2827 = vmatpush1.msra.mxu0 0.0
      %2828 = vmatprep.subr.mxu0 %v2705
      %2829 = vmatpush1.msra.mxu0 %v2704
      %2830 = vmatprep.subr.mxu0 %v2700
      %2831 = vmatpush1.msra.mxu0 %v2699
      %2832 = vmatprep.subr.mxu0 0.0
      %2833 = vmatpush2.msra.mxu0 0.0
      %2834 = vmatprep.subr.mxu0 0.0
      %2835 = vmatpush2.msra.mxu0 0.0
      %2836 = vmatprep.subr.mxu0 0.0
      %2837 = vmatpush2.msra.mxu0 0.0
      %2838 = vmatprep.subr.mxu0 0.0
      %2839 = vmatpush2.msra.mxu0 0.0
      %2840 = vmatprep.subr.mxu0 0.0
      %2841 = vmatpush2.msra.mxu0 0.0
      %2842 = vmatprep.subr.mxu0 0.0
      %2843 = vmatpush2.msra.mxu0 0.0
      %2844 = vmatprep.subr.mxu0 0.0
      %2845 = vmatpush2.msra.mxu0 0.0
      %2846 = vmatprep.subr.mxu0 0.0
      %2847 = vmatpush2.msra.mxu0 0.0
      %2848 = vmatprep.subr.mxu0 0.0
      %2849 = vmatpush2.msra.mxu0 0.0
      %2850 = vmatprep.subr.mxu0 0.0
      %2851 = vmatpush2.msra.mxu0 0.0
      %2852 = vmatprep.subr.mxu0 0.0
      %2853 = vmatpush2.msra.mxu0 0.0
      %2854 = vmatprep.subr.mxu0 0.0
      %2855 = vmatpush2.msra.mxu0 0.0
      %2856 = vmatprep.subr.mxu0 0.0
      %2857 = vmatpush2.msra.mxu0 0.0
      %2858 = vmatprep.subr.mxu0 0.0
      %2859 = vmatpush2.msra.mxu0 0.0
      %2860 = vmatprep.subr.mxu0 0.0
      %2861 = vmatpush2.msra.mxu0 0.0
      %2862 = vmatprep.subr.mxu0 0.0
      %2863 = vmatpush2.msra.mxu0 0.0
      %2864 = vmatprep.mubr.f32.mxu0 0.0
      %2865 = vmatmul.mubr.f32.gmra.mxu0 %v2718
      %v2866 = vpop.f32.mrf.mxu0
      %v2867 = vadd.f32 0.0, %v2866
      %v2868 = vpop.f32.mrf.mxu0
      %v2869 = vadd.f32 0.0, %v2868
      %2870 = vmatprep.mubr.f32.mxu0 0.0
      %2871 = vmatmul.mubr.f32.gmra.mxu0 %v2721
      %v2872 = vpop.f32.mrf.mxu0
      %v2873 = vadd.f32 0.0, %v2872
      %v2874 = vpop.f32.mrf.mxu0
      %v2875 = vadd.f32 0.0, %v2874
      %2876 = vdwg.mxu0
      %2877 = vmatprep.subr.mxu0 0.0
      %2878 = vmatpush1.msra.mxu0 0.0
      %2879 = vmatprep.subr.mxu0 0.0
      %2880 = vmatpush1.msra.mxu0 0.0
      %2881 = vmatprep.subr.mxu0 0.0
      %2882 = vmatpush1.msra.mxu0 0.0
      %2883 = vmatprep.subr.mxu0 0.0
      %2884 = vmatpush1.msra.mxu0 0.0
      %2885 = vmatprep.subr.mxu0 0.0
      %2886 = vmatpush1.msra.mxu0 0.0
      %2887 = vmatprep.subr.mxu0 0.0
      %2888 = vmatpush1.msra.mxu0 0.0
      %2889 = vmatprep.subr.mxu0 0.0
      %2890 = vmatpush1.msra.mxu0 0.0
      %2891 = vmatprep.subr.mxu0 0.0
      %2892 = vmatpush1.msra.mxu0 0.0
      %2893 = vmatprep.subr.mxu0 0.0
      %2894 = vmatpush1.msra.mxu0 0.0
      %2895 = vmatprep.subr.mxu0 0.0
      %2896 = vmatpush1.msra.mxu0 0.0
      %2897 = vmatprep.subr.mxu0 0.0
      %2898 = vmatpush1.msra.mxu0 0.0
      %2899 = vmatprep.subr.mxu0 0.0
      %2900 = vmatpush1.msra.mxu0 0.0
      %2901 = vmatprep.subr.mxu0 0.0
      %2902 = vmatpush1.msra.mxu0 0.0
      %2903 = vmatprep.subr.mxu0 0.0
      %2904 = vmatpush1.msra.mxu0 0.0
      %2905 = vmatprep.subr.mxu0 0.0
      %2906 = vmatpush1.msra.mxu0 %v2706
      %2907 = vmatprep.subr.mxu0 0.0
      %2908 = vmatpush1.msra.mxu0 %v2701
      %2909 = vmatprep.subr.mxu0 0.0
      %2910 = vmatpush2.msra.mxu0 0.0
      %2911 = vmatprep.subr.mxu0 0.0
      %2912 = vmatpush2.msra.mxu0 0.0
      %2913 = vmatprep.subr.mxu0 0.0
      %2914 = vmatpush2.msra.mxu0 0.0
      %2915 = vmatprep.subr.mxu0 0.0
      %2916 = vmatpush2.msra.mxu0 0.0
      %2917 = vmatprep.subr.mxu0 0.0
      %2918 = vmatpush2.msra.mxu0 0.0
      %2919 = vmatprep.subr.mxu0 0.0
      %2920 = vmatpush2.msra.mxu0 0.0
      %2921 = vmatprep.subr.mxu0 0.0
      %2922 = vmatpush2.msra.mxu0 0.0
      %2923 = vmatprep.subr.mxu0 0.0
      %2924 = vmatpush2.msra.mxu0 0.0
      %2925 = vmatprep.subr.mxu0 0.0
      %2926 = vmatpush2.msra.mxu0 0.0
      %2927 = vmatprep.subr.mxu0 0.0
      %2928 = vmatpush2.msra.mxu0 0.0
      %2929 = vmatprep.subr.mxu0 0.0
      %2930 = vmatpush2.msra.mxu0 0.0
      %2931 = vmatprep.subr.mxu0 0.0
      %2932 = vmatpush2.msra.mxu0 0.0
      %2933 = vmatprep.subr.mxu0 0.0
      %2934 = vmatpush2.msra.mxu0 0.0
      %2935 = vmatprep.subr.mxu0 0.0
      %2936 = vmatpush2.msra.mxu0 0.0
      %2937 = vmatprep.subr.mxu0 0.0
      %2938 = vmatpush2.msra.mxu0 0.0
      %2939 = vmatprep.subr.mxu0 0.0
      %2940 = vmatpush2.msra.mxu0 0.0
      %2941 = vmatprep.mubr.f32.mxu0 0.0
      %2942 = vmatmul.mubr.f32.gmra.mxu0 %v2718
      %v2943 = vpop.f32.mrf.mxu0
      %v2944 = vadd.f32 0.0, %v2943
      %v2945 = vpop.f32.mrf.mxu0
      %2946 = vmatprep.mubr.f32.mxu0 0.0
      %2947 = vmatmul.mubr.f32.gmra.mxu0 %v2721
      %v2948 = vpop.f32.mrf.mxu0
      %v2949 = vadd.f32 0.0, %v2948
      %v2950 = vpop.f32.mrf.mxu0
      %2951 = vdwg.mxu0
      %v2952 = vadd.f32 %v2660, %v2790
      %v2953 = vadd.f32 %v2661, %v2792
      %v2954 = vadd.f32 %v2662, %v2867
      %v2955 = vadd.f32 %v2663, %v2869
      %v2956 = vadd.f32 %v2664, %v2944
      %v2957 = vadd.f32 %v2665, %v2796
      %v2958 = vadd.f32 %v2666, %v2798
      %v2959 = vadd.f32 %v2667, %v2873
      %v2960 = vadd.f32 %v2668, %v2875
      %v2961 = vadd.f32 %v2669, %v2949
      %v2962 = vld [vmem:[%s3 + $0x80] sm:$0xff]
      %v2963 = vld [vmem:[%s3 + $0x88] sm:$0xff]
      %2964 = vrot.lane.b32.xlu0 %v894, 62
      %v2965 = vpop.permute.xlu0 %2964
      %2966 = vrot.lane.b32.xlu0 %v895, 62
      %v2967 = vpop.permute.xlu0 %2966
      %2968 = vrot.lane.b32.xlu0 %v896, 62
      %v2969 = vpop.permute.xlu0 %2968
      %2970 = vrot.lane.b32.xlu0 %v897, 62
      %v2971 = vpop.permute.xlu0 %2970
      %2972 = vrot.lane.b32.xlu0 %v898, 62
      %v2973 = vpop.permute.xlu0 %2972
      %2974 = vrot.lane.b32.xlu0 %v899, 62
      %v2975 = vpop.permute.xlu0 %2974
      %2976 = vrot.lane.b32.xlu0 %v900, 62
      %v2977 = vpop.permute.xlu0 %2976
      %2978 = vrot.lane.b32.xlu0 %v901, 62
      %v2979 = vpop.permute.xlu0 %2978
      %2980 = vrot.lane.b32.xlu0 %v902, 62
      %v2981 = vpop.permute.xlu0 %2980
      %2982 = vrot.lane.b32.xlu0 %v903, 62
      %v2983 = vpop.permute.xlu0 %2982
      %2984 = vrot.lane.b32.xlu0 %v904, 62
      %v2985 = vpop.permute.xlu0 %2984
      %2986 = vrot.lane.b32.xlu0 %v905, 62
      %v2987 = vpop.permute.xlu0 %2986
      %vm2988 = vcmask 506880
      %v2989 = vsel %vm2988, %v2965, %v2967
      %v2990 = vsel %vm2988, %v2967, %v2969
      %v2991 = vsel %vm2988, %v2969, %v2971
      %v2992 = vsel %vm2988, %v2971, %v2973
      %v2993 = vsel %vm2988, %v2973, %v2975
      %v2994 = vsel %vm2988, %v2977, %v2979
      %v2995 = vsel %vm2988, %v2979, %v2981
      %v2996 = vsel %vm2988, %v2981, %v2983
      %v2997 = vsel %vm2988, %v2983, %v2985
      %v2998 = vsel %vm2988, %v2985, %v2987
      %v3010 = vsel %vm648, %v2962, 0
      %v3013 = vsel %vm648, %v2963, 0
      %3015 = vmatprep.subr.mxu0 0.0
      %3016 = vmatpush1.msra.mxu0 0.0
      %3017 = vmatprep.subr.mxu0 0.0
      %3018 = vmatpush1.msra.mxu0 0.0
      %3019 = vmatprep.subr.mxu0 0.0
      %3020 = vmatpush1.msra.mxu0 0.0
      %3021 = vmatprep.subr.mxu0 0.0
      %3022 = vmatpush1.msra.mxu0 0.0
      %3023 = vmatprep.subr.mxu0 0.0
      %3024 = vmatpush1.msra.mxu0 0.0
      %3025 = vmatprep.subr.mxu0 0.0
      %3026 = vmatpush1.msra.mxu0 0.0
      %3027 = vmatprep.subr.mxu0 0.0
      %3028 = vmatpush1.msra.mxu0 0.0
      %3029 = vmatprep.subr.mxu0 0.0
      %3030 = vmatpush1.msra.mxu0 0.0
      %3031 = vmatprep.subr.mxu0 0.0
      %3032 = vmatpush1.msra.mxu0 0.0
      %3033 = vmatprep.subr.mxu0 0.0
      %3034 = vmatpush1.msra.mxu0 0.0
      %3035 = vmatprep.subr.mxu0 0.0
      %3036 = vmatpush1.msra.mxu0 0.0
      %3037 = vmatprep.subr.mxu0 0.0
      %3038 = vmatpush1.msra.mxu0 0.0
      %3039 = vmatprep.subr.mxu0 0.0
      %3040 = vmatpush1.msra.mxu0 0.0
      %3041 = vmatprep.subr.mxu0 0.0
      %3042 = vmatpush1.msra.mxu0 0.0
      %3043 = vmatprep.subr.mxu0 %v2995
      %3044 = vmatpush1.msra.mxu0 %v2994
      %3045 = vmatprep.subr.mxu0 %v2990
      %3046 = vmatpush1.msra.mxu0 %v2989
      %3047 = vmatprep.subr.mxu0 0.0
      %3048 = vmatpush2.msra.mxu0 0.0
      %3049 = vmatprep.subr.mxu0 0.0
      %3050 = vmatpush2.msra.mxu0 0.0
      %3051 = vmatprep.subr.mxu0 0.0
      %3052 = vmatpush2.msra.mxu0 0.0
      %3053 = vmatprep.subr.mxu0 0.0
      %3054 = vmatpush2.msra.mxu0 0.0
      %3055 = vmatprep.subr.mxu0 0.0
      %3056 = vmatpush2.msra.mxu0 0.0
      %3057 = vmatprep.subr.mxu0 0.0
      %3058 = vmatpush2.msra.mxu0 0.0
      %3059 = vmatprep.subr.mxu0 0.0
      %3060 = vmatpush2.msra.mxu0 0.0
      %3061 = vmatprep.subr.mxu0 0.0
      %3062 = vmatpush2.msra.mxu0 0.0
      %3063 = vmatprep.subr.mxu0 0.0
      %3064 = vmatpush2.msra.mxu0 0.0
      %3065 = vmatprep.subr.mxu0 0.0
      %3066 = vmatpush2.msra.mxu0 0.0
      %3067 = vmatprep.subr.mxu0 0.0
      %3068 = vmatpush2.msra.mxu0 0.0
      %3069 = vmatprep.subr.mxu0 0.0
      %3070 = vmatpush2.msra.mxu0 0.0
      %3071 = vmatprep.subr.mxu0 0.0
      %3072 = vmatpush2.msra.mxu0 0.0
      %3073 = vmatprep.subr.mxu0 0.0
      %3074 = vmatpush2.msra.mxu0 0.0
      %3075 = vmatprep.subr.mxu0 0.0
      %3076 = vmatpush2.msra.mxu0 0.0
      %3077 = vmatprep.subr.mxu0 0.0
      %3078 = vmatpush2.msra.mxu0 0.0
      %3079 = vmatprep.mubr.f32.mxu0 0.0
      %3080 = vmatmul.mubr.f32.gmra.mxu0 %v3010
      %v3081 = vpop.f32.mrf.mxu0
      %v3082 = vadd.f32 0.0, %v3081
      %v3083 = vpop.f32.mrf.mxu0
      %v3084 = vadd.f32 0.0, %v3083
      %3085 = vmatprep.mubr.f32.mxu0 0.0
      %3086 = vmatmul.mubr.f32.gmra.mxu0 %v3013
      %v3087 = vpop.f32.mrf.mxu0
      %v3088 = vadd.f32 0.0, %v3087
      %v3089 = vpop.f32.mrf.mxu0
      %v3090 = vadd.f32 0.0, %v3089
      %3091 = vdwg.mxu0
      %3092 = vmatprep.subr.mxu0 0.0
      %3093 = vmatpush1.msra.mxu0 0.0
      %3094 = vmatprep.subr.mxu0 0.0
      %3095 = vmatpush1.msra.mxu0 0.0
      %3096 = vmatprep.subr.mxu0 0.0
      %3097 = vmatpush1.msra.mxu0 0.0
      %3098 = vmatprep.subr.mxu0 0.0
      %3099 = vmatpush1.msra.mxu0 0.0
      %3100 = vmatprep.subr.mxu0 0.0
      %3101 = vmatpush1.msra.mxu0 0.0
      %3102 = vmatprep.subr.mxu0 0.0
      %3103 = vmatpush1.msra.mxu0 0.0
      %3104 = vmatprep.subr.mxu0 0.0
      %3105 = vmatpush1.msra.mxu0 0.0
      %3106 = vmatprep.subr.mxu0 0.0
      %3107 = vmatpush1.msra.mxu0 0.0
      %3108 = vmatprep.subr.mxu0 0.0
      %3109 = vmatpush1.msra.mxu0 0.0
      %3110 = vmatprep.subr.mxu0 0.0
      %3111 = vmatpush1.msra.mxu0 0.0
      %3112 = vmatprep.subr.mxu0 0.0
      %3113 = vmatpush1.msra.mxu0 0.0
      %3114 = vmatprep.subr.mxu0 0.0
      %3115 = vmatpush1.msra.mxu0 0.0
      %3116 = vmatprep.subr.mxu0 0.0
      %3117 = vmatpush1.msra.mxu0 0.0
      %3118 = vmatprep.subr.mxu0 0.0
      %3119 = vmatpush1.msra.mxu0 0.0
      %3120 = vmatprep.subr.mxu0 %v2997
      %3121 = vmatpush1.msra.mxu0 %v2996
      %3122 = vmatprep.subr.mxu0 %v2992
      %3123 = vmatpush1.msra.mxu0 %v2991
      %3124 = vmatprep.subr.mxu0 0.0
      %3125 = vmatpush2.msra.mxu0 0.0
      %3126 = vmatprep.subr.mxu0 0.0
      %3127 = vmatpush2.msra.mxu0 0.0
      %3128 = vmatprep.subr.mxu0 0.0
      %3129 = vmatpush2.msra.mxu0 0.0
      %3130 = vmatprep.subr.mxu0 0.0
      %3131 = vmatpush2.msra.mxu0 0.0
      %3132 = vmatprep.subr.mxu0 0.0
      %3133 = vmatpush2.msra.mxu0 0.0
      %3134 = vmatprep.subr.mxu0 0.0
      %3135 = vmatpush2.msra.mxu0 0.0
      %3136 = vmatprep.subr.mxu0 0.0
      %3137 = vmatpush2.msra.mxu0 0.0
      %3138 = vmatprep.subr.mxu0 0.0
      %3139 = vmatpush2.msra.mxu0 0.0
      %3140 = vmatprep.subr.mxu0 0.0
      %3141 = vmatpush2.msra.mxu0 0.0
      %3142 = vmatprep.subr.mxu0 0.0
      %3143 = vmatpush2.msra.mxu0 0.0
      %3144 = vmatprep.subr.mxu0 0.0
      %3145 = vmatpush2.msra.mxu0 0.0
      %3146 = vmatprep.subr.mxu0 0.0
      %3147 = vmatpush2.msra.mxu0 0.0
      %3148 = vmatprep.subr.mxu0 0.0
      %3149 = vmatpush2.msra.mxu0 0.0
      %3150 = vmatprep.subr.mxu0 0.0
      %3151 = vmatpush2.msra.mxu0 0.0
      %3152 = vmatprep.subr.mxu0 0.0
      %3153 = vmatpush2.msra.mxu0 0.0
      %3154 = vmatprep.subr.mxu0 0.0
      %3155 = vmatpush2.msra.mxu0 0.0
      %3156 = vmatprep.mubr.f32.mxu0 0.0
      %3157 = vmatmul.mubr.f32.gmra.mxu0 %v3010
      %v3158 = vpop.f32.mrf.mxu0
      %v3159 = vadd.f32 0.0, %v3158
      %v3160 = vpop.f32.mrf.mxu0
      %v3161 = vadd.f32 0.0, %v3160
      %3162 = vmatprep.mubr.f32.mxu0 0.0
      %3163 = vmatmul.mubr.f32.gmra.mxu0 %v3013
      %v3164 = vpop.f32.mrf.mxu0
      %v3165 = vadd.f32 0.0, %v3164
      %v3166 = vpop.f32.mrf.mxu0
      %v3167 = vadd.f32 0.0, %v3166
      %3168 = vdwg.mxu0
      %3169 = vmatprep.subr.mxu0 0.0
      %3170 = vmatpush1.msra.mxu0 0.0
      %3171 = vmatprep.subr.mxu0 0.0
      %3172 = vmatpush1.msra.mxu0 0.0
      %3173 = vmatprep.subr.mxu0 0.0
      %3174 = vmatpush1.msra.mxu0 0.0
      %3175 = vmatprep.subr.mxu0 0.0
      %3176 = vmatpush1.msra.mxu0 0.0
      %3177 = vmatprep.subr.mxu0 0.0
      %3178 = vmatpush1.msra.mxu0 0.0
      %3179 = vmatprep.subr.mxu0 0.0
      %3180 = vmatpush1.msra.mxu0 0.0
      %3181 = vmatprep.subr.mxu0 0.0
      %3182 = vmatpush1.msra.mxu0 0.0
      %3183 = vmatprep.subr.mxu0 0.0
      %3184 = vmatpush1.msra.mxu0 0.0
      %3185 = vmatprep.subr.mxu0 0.0
      %3186 = vmatpush1.msra.mxu0 0.0
      %3187 = vmatprep.subr.mxu0 0.0
      %3188 = vmatpush1.msra.mxu0 0.0
      %3189 = vmatprep.subr.mxu0 0.0
      %3190 = vmatpush1.msra.mxu0 0.0
      %3191 = vmatprep.subr.mxu0 0.0
      %3192 = vmatpush1.msra.mxu0 0.0
      %3193 = vmatprep.subr.mxu0 0.0
      %3194 = vmatpush1.msra.mxu0 0.0
      %3195 = vmatprep.subr.mxu0 0.0
      %3196 = vmatpush1.msra.mxu0 0.0
      %3197 = vmatprep.subr.mxu0 0.0
      %3198 = vmatpush1.msra.mxu0 %v2998
      %3199 = vmatprep.subr.mxu0 0.0
      %3200 = vmatpush1.msra.mxu0 %v2993
      %3201 = vmatprep.subr.mxu0 0.0
      %3202 = vmatpush2.msra.mxu0 0.0
      %3203 = vmatprep.subr.mxu0 0.0
      %3204 = vmatpush2.msra.mxu0 0.0
      %3205 = vmatprep.subr.mxu0 0.0
      %3206 = vmatpush2.msra.mxu0 0.0
      %3207 = vmatprep.subr.mxu0 0.0
      %3208 = vmatpush2.msra.mxu0 0.0
      %3209 = vmatprep.subr.mxu0 0.0
      %3210 = vmatpush2.msra.mxu0 0.0
      %3211 = vmatprep.subr.mxu0 0.0
      %3212 = vmatpush2.msra.mxu0 0.0
      %3213 = vmatprep.subr.mxu0 0.0
      %3214 = vmatpush2.msra.mxu0 0.0
      %3215 = vmatprep.subr.mxu0 0.0
      %3216 = vmatpush2.msra.mxu0 0.0
      %3217 = vmatprep.subr.mxu0 0.0
      %3218 = vmatpush2.msra.mxu0 0.0
      %3219 = vmatprep.subr.mxu0 0.0
      %3220 = vmatpush2.msra.mxu0 0.0
      %3221 = vmatprep.subr.mxu0 0.0
      %3222 = vmatpush2.msra.mxu0 0.0
      %3223 = vmatprep.subr.mxu0 0.0
      %3224 = vmatpush2.msra.mxu0 0.0
      %3225 = vmatprep.subr.mxu0 0.0
      %3226 = vmatpush2.msra.mxu0 0.0
      %3227 = vmatprep.subr.mxu0 0.0
      %3228 = vmatpush2.msra.mxu0 0.0
      %3229 = vmatprep.subr.mxu0 0.0
      %3230 = vmatpush2.msra.mxu0 0.0
      %3231 = vmatprep.subr.mxu0 0.0
      %3232 = vmatpush2.msra.mxu0 0.0
      %3233 = vmatprep.mubr.f32.mxu0 0.0
      %3234 = vmatmul.mubr.f32.gmra.mxu0 %v3010
      %v3235 = vpop.f32.mrf.mxu0
      %v3236 = vadd.f32 0.0, %v3235
      %v3237 = vpop.f32.mrf.mxu0
      %3238 = vmatprep.mubr.f32.mxu0 0.0
      %3239 = vmatmul.mubr.f32.gmra.mxu0 %v3013
      %v3240 = vpop.f32.mrf.mxu0
      %v3241 = vadd.f32 0.0, %v3240
      %v3242 = vpop.f32.mrf.mxu0
      %3243 = vdwg.mxu0
      %v3244 = vadd.f32 %v2952, %v3082
      %v3245 = vadd.f32 %v2953, %v3084
      %v3246 = vadd.f32 %v2954, %v3159
      %v3247 = vadd.f32 %v2955, %v3161
      %v3248 = vadd.f32 %v2956, %v3236
      %v3249 = vadd.f32 %v2957, %v3088
      %v3250 = vadd.f32 %v2958, %v3090
      %v3251 = vadd.f32 %v2959, %v3165
      %v3252 = vadd.f32 %v2960, %v3167
      %v3253 = vadd.f32 %v2961, %v3241
      %v3254 = vmul.f32 %v3244, %v1821
      %v3255 = vmul.f32 %v3245, %v1822
      %v3256 = vmul.f32 %v3246, %v1823
      %v3257 = vmul.f32 %v3247, %v1824
      %v3258 = vmul.f32 %v3248, %v1825
      %v3259 = vmul.f32 %v3249, %v1826
      %v3260 = vmul.f32 %v3250, %v1827
      %v3261 = vmul.f32 %v3251, %v1828
      %v3262 = vmul.f32 %v3252, %v1829
      %v3263 = vmul.f32 %v3253, %v1830
      %3264 = vst [vmem:[%s224] sm:$0xff] %v3254
      %3265 = vst [vmem:[%s224 + $0x8] sm:$0xff] %v3255
      %3266 = vst [vmem:[%s224 + $0x10] sm:$0xff] %v3256
      %3267 = vst [vmem:[%s224 + $0x18] sm:$0xff] %v3257
      %3268 = vst [vmem:[%s224 + $0x20] sm:$0xff] %v3258
      %3269 = vst [vmem:[%s224 + $0x28] sm:$0xff] %v3259
      %3270 = vst [vmem:[%s224 + $0x30] sm:$0xff] %v3260
      %3271 = vst [vmem:[%s224 + $0x38] sm:$0xff] %v3261
      %3272 = vst [vmem:[%s224 + $0x40] sm:$0xff] %v3262
      %3273 = vst [vmem:[%s224 + $0x48] sm:$0xff] %v3263
      %p3274 = scmp.lt.s32.totalorder %s16, 1
      %s3275 = scalar_select %p3274, %s16, 1
      %s3276 = smul.addr %s3275, 10
      %s3277 = smul.addr %s3276, 8
      %s3278 = scalar_lea.vmem %s5, %s3277
      // Predicated region
      $region41: #{model_forward.1} parent=39 // pred_check
        %p3279 = pneg %p144
      $region42: #{model_forward.1} parent=39 // pred_check_branch
        %3281 = sbr.rel (%p3279) target = $region44
      $region43: #{model_forward.1} parent=39 // pred_region
        _
      $region44: #{model_forward.1} parent=39 // pred_fallthru
        _
    $region40: #{model_forward.1} parent=5 // pred_fallthru
      _
    %p3282 = scmp.le.s32.totalorder 2, %s11
    // Predicated region
    $region45: #{model_forward.1} parent=5 // pred_check
      %p3283 = pneg %p3282
    $region46: #{model_forward.1} parent=5 // pred_check_branch
      %3285 = sbr.rel (%p3283) target = $region48
    $region47: #{model_forward.1} parent=5 // pred_region
      %s3286 = ssub.s32 %s11, 2
      // Predicated region
      $region49: #{model_forward.1} parent=47 // pred_check
        %p3287 = pneg %p150
      $region50: #{model_forward.1} parent=47 // pred_check_branch
        %3289 = sbr.rel (%p3287) target = $region52
      $region51: #{model_forward.1} parent=47 // pred_region
        %p3290 = scmp.lt.s32.totalorder %s17, 1
        %s3291 = scalar_select %p3290, %s17, 1
        %s3292 = smul.addr %s3291, 10
        %s3293 = smul.addr %s3292, 8
        %s3294 = scalar_lea.vmem %s5, %s3293
      $region52: #{model_forward.1} parent=47 // pred_fallthru
        _
    $region48: #{model_forward.1} parent=5 // pred_fallthru
      _
  $region6: #{model_forward.1} parent=0 // loop_footer
    %s15 = sadd.s32 1, %s11
  $region7: #{model_forward.1} parent=0 // loop_footer_branch
    %10 = sbr.rel target = $region3
  $region8: #{model_forward.1} parent=0 // loop_exit
    _

</llo_original>
